<compile_context>
chip_gen: v7x
topology: tpu7x:2x2x1
jax: 0.10.0
libtpu: 0.0.40
codegen_flags: <defaults>
</compile_context>

<pallas_src>
import numpy as np

import jax
import jax.numpy as jnp
from jax.experimental import pallas as pl
from jax.experimental.pallas import tpu as pltpu


# ----------------------------------------------------------------------------
# Init-time weight re-layout (all layout work hoisted out of the forward)
# ----------------------------------------------------------------------------
def _expand_conv_layer(wt, bt, h_in, w_in, stride, bb, out_order):
    """torch Conv2d(IC->OC, 3x3, stride=s, padding=1) -> per-kw-tap matmul form
    for BB lane-batched images.

    Activations are laid out A[(ic, hin), (b, win)]  (rows = channel*row,
    lanes = batch*width).  Per kw tap:
        out_tap = Wbig[kw] @ (A @ Sel[kw])
    with
      Sel[kw][(b, win), col] = 1 iff win == s*ow + kw - 1   (same image b)
        col = b*OW + ow ('bw' lane order)  or  col = ow*BB + b ('wb' order),
      Wbig[kw][(oc, oh), (ic, hin)] = wt[oc, ic, hin - s*oh + 1, kw].
    Sel folds the column stride, the zero padding AND the image boundary
    (block-diagonal over b), so no cross-image mixing can occur.
    """
    wt = np.asarray(wt, np.float32)
    bt = np.asarray(bt, np.float32)
    oc_n, ic_n = wt.shape[0], wt.shape[1]
    oh_n = (h_in - 1) // stride + 1
    ow_n = (w_in - 1) // stride + 1

    wbig = np.zeros((3, oc_n, oh_n, ic_n, h_in), np.float32)
    for kw in range(3):
        for kh in range(3):
            for oh in range(oh_n):
                hin = stride * oh + kh - 1
                if 0 <= hin < h_in:
                    wbig[kw, :, oh, :, hin] = wt[:, :, kh, kw]
    wbig = wbig.reshape(3, oc_n * oh_n, ic_n * h_in)

    sel = np.zeros((3, bb * w_in, bb * ow_n), np.float32)
    for kw in range(3):
        for b in range(bb):
            for ow in range(ow_n):
                win = stride * ow + kw - 1
                if 0 <= win < w_in:
                    col = b * ow_n + ow if out_order == "bw" else ow * bb + b
                    sel[kw, b * w_in + win, col] = 1.0

    bias = np.repeat(bt, oh_n)[:, None]          # rows = (oc, oh)
    # Weights in bf16 (MXU operands); sel is 0/1 so bf16 is exact; bias f32.
    return (jnp.asarray(wbig, jnp.bfloat16),
            jnp.asarray(sel, jnp.bfloat16),
            jnp.asarray(bias, jnp.float32))


def prepare_kernel_params(raw, h, w, bb):
    """Transform torch-layout params into kernel layouts (init-time only)."""
    conv = []
    h_cur, w_cur = h, w
    n_layers = len(raw["conv_ws"])
    for li, (wt, bt, stride) in enumerate(
            zip(raw["conv_ws"], raw["conv_bs"], raw["conv_strides"])):
        # Last conv emits lanes ordered (ow, b) so the MLP flatten needs no
        # in-kernel relayout; earlier layers keep (b, w) lane order.
        out_order = "wb" if li == n_layers - 1 else "bw"
        conv.append(_expand_conv_layer(wt, bt, h_cur, w_cur, stride, bb, out_order))
        h_cur = (h_cur - 1) // stride + 1
        w_cur = (w_cur - 1) // stride + 1
    ow_last = w_cur

    # First MLP layer consumes y[(oc,oh), (ow,b)] directly: the torch flatten
    # index (oc*OH + oh)*OW + ow is split into per-ow weight slabs wm1[:, ow::OW].
    wm1, bm1 = raw["mlp_hidden"][0]
    wm1 = np.asarray(wm1, np.float32)
    wm1c = np.stack([wm1[:, ow::ow_last] for ow in range(ow_last)], axis=0)
    mlp_first = (jnp.asarray(wm1c, jnp.bfloat16),
                 jnp.asarray(np.asarray(bm1, np.float32)[:, None], jnp.float32))

    mlp_extra = [(jnp.asarray(np.asarray(wi, np.float32), jnp.bfloat16),
                  jnp.asarray(np.asarray(bi, np.float32)[:, None], jnp.float32))
                 for (wi, bi) in raw["mlp_hidden"][1:]]

    wo, bo = raw["mlp_out"]
    mlp_out = (jnp.asarray(np.asarray(wo, np.float32), jnp.bfloat16),
               jnp.asarray(np.asarray(bo, np.float32)[:, None], jnp.float32))

    return {"conv": conv, "mlp_first": mlp_first,
            "mlp_extra": mlp_extra, "mlp_out": mlp_out}


# ----------------------------------------------------------------------------
# Deterministic parameter init (torch-default-like uniform, fixed PRNGKey)
# ----------------------------------------------------------------------------
def _uniform(key, shape, fan_in):
    bound = 1.0 / np.sqrt(float(fan_in))
    return jax.random.uniform(key, shape, jnp.float32, -bound, bound)


def init_raw_params(key, c, h, w, output_dim, conv_features, down_sampling,
                    mlp_features, mlp_layers):
    raw = {"conv_ws": [], "conv_bs": [], "conv_strides": [], "mlp_hidden": []}
    cf = conv_features // (2 ** down_sampling)
    key, k1, k2 = jax.random.split(key, 3)
    raw["conv_ws"].append(_uniform(k1, (cf, c, 3, 3), c * 9))
    raw["conv_bs"].append(_uniform(k2, (cf,), c * 9))
    raw["conv_strides"].append(1)
    in_cf = cf
    for _ in range(down_sampling):
        key, k1, k2 = jax.random.split(key, 3)
        raw["conv_ws"].append(_uniform(k1, (in_cf * 2, in_cf, 3, 3), in_cf * 9))
        raw["conv_bs"].append(_uniform(k2, (in_cf * 2,), in_cf * 9))
        raw["conv_strides"].append(2)
        in_cf *= 2
    flat_dim = in_cf * (h // 2 ** down_sampling) * (w // 2 ** down_sampling)
    d_in = flat_dim
    for _ in range(mlp_layers):
        key, k1, k2 = jax.random.split(key, 3)
        raw["mlp_hidden"].append((_uniform(k1, (mlp_features, d_in), d_in),
                                  _uniform(k2, (mlp_features,), d_in)))
        d_in = mlp_features
    key, k1, k2 = jax.random.split(key, 3)
    out_dim = 2 * output_dim  # dist_type='gauss' => 2 * output_dim
    raw["mlp_out"] = (_uniform(k1, (out_dim, d_in), d_in),
                      _uniform(k2, (out_dim,), d_in))
    return raw


# ----------------------------------------------------------------------------
# The fused encoder kernel
# ----------------------------------------------------------------------------
def _make_encoder_kernel(n_conv, n_extra, min_std):
    def kernel(*refs):
        i = 0
        x_ref = refs[i]; i += 1
        conv_ops = []
        for _ in range(n_conv):
            conv_ops.append((refs[i], refs[i + 1], refs[i + 2])); i += 3
        wm1_ref, bm1_ref = refs[i], refs[i + 1]; i += 2
        extra = []
        for _ in range(n_extra):
            extra.append((refs[i], refs[i + 1])); i += 2
        wout_ref, bout_ref = refs[i], refs[i + 1]; i += 2
        o_ref = refs[i]

        f32, bf16 = jnp.float32, jnp.bfloat16
        bb = o_ref.shape[-1]

        # ---- conv stack: batch lives on lanes; activations stay in vregs ----
        y = x_ref[0]                                      # [C*H, BB*W] f32
        for (wbig_ref, sel_ref, bias_ref) in conv_ops:
            yb = y.astype(bf16)
            acc = None
            for kw in range(3):
                # exact 0/1 column gather: folds stride, zero padding and the
                # per-image boundary (block-diagonal over batch).
                g = jnp.dot(yb, sel_ref[kw], preferred_element_type=f32)
                t = jnp.dot(wbig_ref[kw], g.astype(bf16),
                            preferred_element_type=f32)
                acc = t if acc is None else acc + t
            y = jnp.maximum(acc + bias_ref[...], 0.0)     # [(oc,oh), lanes]

        # ---- MLP hidden 1: last conv out has lanes ordered (ow, b); the
        # flatten is folded into per-ow weight slabs -> lane-dense matmuls.
        yb = y.astype(bf16)
        n_ow = wm1_ref.shape[0]
        hacc = None
        for ow in range(n_ow):
            part = jnp.dot(wm1_ref[ow], yb[:, ow * bb:(ow + 1) * bb],
                           preferred_element_type=f32)
            hacc = part if hacc is None else hacc + part
        h = jnp.maximum(hacc + bm1_ref[...], 0.0)         # [F, BB]
        for (w_ref, b_ref) in extra:
            h = jnp.maximum(
                jnp.dot(w_ref[...], h.astype(bf16),
                        preferred_element_type=f32) + b_ref[...], 0.0)

        # ---- MLP out + fused gauss head (chunk + softplus + min_std) ---------
        o = jnp.dot(wout_ref[...], h.astype(bf16),
                    preferred_element_type=f32) + bout_ref[...]   # [2D, BB]
        d = o.shape[0] // 2
        mu = o[:d, :]
        s = o[d:, :]
        # numerically stable softplus; matches torch F.softplus.
        std = jnp.maximum(s, 0.0) + jnp.log(1.0 + jnp.exp(-jnp.abs(s))) + min_std
        o_ref[...] = jnp.concatenate([mu, std], axis=0).reshape(o_ref.shape)

    return kernel


def conv_encoder_forward(kparams, x, *, bb=8, min_std=0.01):
    """ConvEncoder forward (dist_type='gauss'): returns (mu, std), each [B, D]."""
    B, C, H, W = x.shape
    x = x.astype(jnp.float32)

    conv_ops = kparams["conv"]
    wm1c, bm1 = kparams["mlp_first"]
    extra = kparams["mlp_extra"]
    wout, bout = kparams["mlp_out"]
    out_dim = wout.shape[0] // 2
    assert conv_ops[0][1].shape[1] == bb * W, "bb mismatch vs prepared params"

    nblocks = pl.cdiv(B, bb)
    b_pad = nblocks * bb
    if b_pad != B:
        x = jnp.concatenate([x, jnp.zeros((b_pad - B, C, H, W), x.dtype)], 0)
    # Wrapper-side lane-batching relayout (pure layout plumbing, cheap):
    # [nb, BB, C, H, W] -> [nb, C, H, BB, W] -> [nb, C*H, BB*W]
    xb = x.reshape(nblocks, bb, C, H, W).transpose(0, 2, 3, 1, 4)
    xb = xb.reshape(nblocks, C * H, bb * W)

    flat_ops = []
    for (wbig, sel, bias) in conv_ops:
        flat_ops += [wbig, sel, bias]
    flat_ops += [wm1c, bm1]
    for (wi, bi) in extra:
        flat_ops += [wi, bi]
    flat_ops += [wout, bout]

    in_specs = [pl.BlockSpec((1, C * H, bb * W), lambda gb: (gb, 0, 0))]
    for arr in flat_ops:
        zero = (0,) * arr.ndim
        in_specs.append(pl.BlockSpec(arr.shape, lambda gb, _z=zero: _z))

    # Rough cost hint so XLA schedules the wrapper-side relayouts around us.
    def mm(m, k, n):
        return 2 * m * k * n
    flops = 0
    for (wbig, sel, bias) in conv_ops:
        _, m_w, k_w = wbig.shape
        _, k_s, n_s = sel.shape
        flops += 3 * (mm(k_w, k_s, n_s) + mm(m_w, k_w, n_s))
    flops += wm1c.shape[0] * mm(wm1c.shape[1], wm1c.shape[2], bb)
    for (wi, _) in extra:
        flops += mm(wi.shape[0], wi.shape[1], bb)
    flops += mm(wout.shape[0], wout.shape[1], bb)
    flops *= nblocks
    transcendentals = nblocks * bb * out_dim
    bytes_accessed = int(xb.size * 4
                         + sum(a.size * a.dtype.itemsize for a in flat_ops)
                         + nblocks * 2 * out_dim * bb * 4)

    kernel = _make_encoder_kernel(len(conv_ops), len(extra), float(min_std))
    out = pl.pallas_call(
        kernel,
        out_shape=jax.ShapeDtypeStruct((nblocks, 2 * out_dim, bb), jnp.float32),
        grid=(nblocks,),
        in_specs=in_specs,
        out_specs=pl.BlockSpec((1, 2 * out_dim, bb), lambda gb: (gb, 0, 0)),
        compiler_params=pltpu.CompilerParams(
            dimension_semantics=("parallel",)),   # >= 2 blocks -> both v7x TCs
        cost_estimate=pl.CostEstimate(flops=int(flops),
                                      transcendentals=int(transcendentals),
                                      bytes_accessed=bytes_accessed),
    )(xb, *flat_ops)

    # [nb, 2D, BB] -> [B, 2D]  (lane-dense store in-kernel; split here)
    out = out.transpose(0, 2, 1).reshape(b_pad, 2 * out_dim)[:B]
    return out[:, :out_dim], out[:, out_dim:]


# ----------------------------------------------------------------------------
# Plain-JAX reference with the SAME bf16-operand / f32-accumulate numerics
# (validates layout/semantics independent of MXU precision).
# ----------------------------------------------------------------------------
def reference_forward_bf16(raw, x, min_std):
    bf16, f32 = jnp.bfloat16, jnp.float32
    h = x.astype(f32)
    for wt, bt, s in zip(raw["conv_ws"], raw["conv_bs"], raw["conv_strides"]):
        h = jax.lax.conv_general_dilated(
            h.astype(bf16), wt.astype(bf16), window_strides=(s, s),
            padding=((1, 1), (1, 1)),
            dimension_numbers=("NCHW", "OIHW", "NCHW"),
            preferred_element_type=f32)
        h = jnp.maximum(h + bt[None, :, None, None].astype(f32), 0.0)
    out = h.reshape(h.shape[0], -1)
    for wt, bt in raw["mlp_hidden"]:
        out = jnp.maximum(
            jnp.dot(out.astype(bf16), wt.astype(bf16).T,
                    preferred_element_type=f32) + bt[None, :], 0.0)
    wt, bt = raw["mlp_out"]
    out = jnp.dot(out.astype(bf16), wt.astype(bf16).T,
                  preferred_element_type=f32) + bt[None, :]
    d = out.shape[1] // 2
    return out[:, :d], jax.nn.softplus(out[:, d:]) + min_std


# ----------------------------------------------------------------------------
if __name__ == "__main__":
    # Module config
    c, h, w = 4, 16, 16
    output_dim = 8
    conv_features = 16
    down_sampling = 2
    mlp_features = 32
    mlp_layers = 1
    min_std = 0.01
    BB = 8   # images packed onto lanes per grid step (BB * W = 128 lanes)

    key = jax.random.PRNGKey(0)
    key, xkey = jax.random.split(key)
    x = jax.random.normal(xkey, (2, c, h, w), dtype=jnp.float32)  # NCHW

    raw = init_raw_params(key, c, h, w, output_dim, conv_features,
                          down_sampling, mlp_features, mlp_layers)
    kparams = prepare_kernel_params(raw, h, w, BB)

    fwd = jax.jit(lambda p, xx: conv_encoder_forward(p, xx, bb=BB,
                                                     min_std=min_std))
    mu, std = fwd(kparams, x)
    mu = jax.block_until_ready(mu)
    std = jax.block_until_ready(std)

    assert mu.shape == (2, output_dim) and std.shape == (2, output_dim)
    assert bool(jnp.all(std > 0.0))

    # Correctness check against a plain-JAX reference using the same bf16
    # operand / f32 accumulation numerics (only accumulation order differs).
    mu_ref, std_ref = reference_forward_bf16(raw, x, min_std)
    np.testing.assert_allclose(np.asarray(mu), np.asarray(mu_ref),
                               rtol=2e-2, atol=2e-2)
    np.testing.assert_allclose(np.asarray(std), np.asarray(std_ref),
                               rtol=2e-2, atol=2e-2)

    print("KERNEL_OK")
</pallas_src>

<mosaic_0001>
module attributes {stable_mosaic.version = 11 : i64} {
  func.func @kernel(%arg0: i32, %arg1: memref<1x64x128xf32, #tpu.memory_space<vmem>>, %arg2: memref<3x64x64xbf16, #tpu.memory_space<vmem>>, %arg3: memref<3x128x128xbf16, #tpu.memory_space<vmem>>, %arg4: memref<64x1xf32, #tpu.memory_space<vmem>>, %arg5: memref<3x64x64xbf16, #tpu.memory_space<vmem>>, %arg6: memref<3x128x64xbf16, #tpu.memory_space<vmem>>, %arg7: memref<64x1xf32, #tpu.memory_space<vmem>>, %arg8: memref<3x64x64xbf16, #tpu.memory_space<vmem>>, %arg9: memref<3x64x32xbf16, #tpu.memory_space<vmem>>, %arg10: memref<64x1xf32, #tpu.memory_space<vmem>>, %arg11: memref<4x32x64xbf16, #tpu.memory_space<vmem>>, %arg12: memref<32x1xf32, #tpu.memory_space<vmem>>, %arg13: memref<16x32xbf16, #tpu.memory_space<vmem>>, %arg14: memref<16x1xf32, #tpu.memory_space<vmem>>, %arg15: memref<1x16x8xf32, #tpu.memory_space<vmem>>) attributes {dimension_semantics = [#tpu.dimension_semantics<parallel>], iteration_bounds = array<i64: 1>, scalar_prefetch = 0 : i64, scratch_operands = 0 : i64, tpu.core_type = #tpu.core_type<tc>, window_params = [{transform_indices = @transform_0, window_bounds = array<i64: 1, 64, 128>}, {pipeline_mode = #tpu.pipeline_mode<synchronous>, transform_indices = @transform_1, window_bounds = array<i64: 3, 64, 64>}, {pipeline_mode = #tpu.pipeline_mode<synchronous>, transform_indices = @transform_2, window_bounds = array<i64: 3, 128, 128>}, {pipeline_mode = #tpu.pipeline_mode<synchronous>, transform_indices = @transform_3, window_bounds = array<i64: 64, 1>}, {pipeline_mode = #tpu.pipeline_mode<synchronous>, transform_indices = @transform_4, window_bounds = array<i64: 3, 64, 64>}, {pipeline_mode = #tpu.pipeline_mode<synchronous>, transform_indices = @transform_5, window_bounds = array<i64: 3, 128, 64>}, {pipeline_mode = #tpu.pipeline_mode<synchronous>, transform_indices = @transform_6, window_bounds = array<i64: 64, 1>}, {pipeline_mode = #tpu.pipeline_mode<synchronous>, transform_indices = @transform_7, window_bounds = array<i64: 3, 64, 64>}, {pipeline_mode = #tpu.pipeline_mode<synchronous>, transform_indices = @transform_8, window_bounds = array<i64: 3, 64, 32>}, {pipeline_mode = #tpu.pipeline_mode<synchronous>, transform_indices = @transform_9, window_bounds = array<i64: 64, 1>}, {pipeline_mode = #tpu.pipeline_mode<synchronous>, transform_indices = @transform_10, window_bounds = array<i64: 4, 32, 64>}, {pipeline_mode = #tpu.pipeline_mode<synchronous>, transform_indices = @transform_11, window_bounds = array<i64: 32, 1>}, {pipeline_mode = #tpu.pipeline_mode<synchronous>, transform_indices = @transform_12, window_bounds = array<i64: 16, 32>}, {pipeline_mode = #tpu.pipeline_mode<synchronous>, transform_indices = @transform_13, window_bounds = array<i64: 16, 1>}, {transform_indices = @transform_14, window_bounds = array<i64: 1, 16, 8>}]} {
    %c0 = arith.constant 0 : index
    %c0_0 = arith.constant 0 : index
    %c0_1 = arith.constant 0 : index
    %0 = vector.load %arg1[%c0, %c0_0, %c0_1] : memref<1x64x128xf32, #tpu.memory_space<vmem>>, vector<1x64x128xf32>
    %1 = vector.shape_cast %0 : vector<1x64x128xf32> to vector<64x128xf32>
    %2 = arith.truncf %1 : vector<64x128xf32> to vector<64x128xbf16>
    %c0_2 = arith.constant 0 : index
    %c0_3 = arith.constant 0 : index
    %c0_4 = arith.constant 0 : index
    %3 = vector.load %arg3[%c0_2, %c0_3, %c0_4] : memref<3x128x128xbf16, #tpu.memory_space<vmem>>, vector<1x128x128xbf16>
    %4 = vector.shape_cast %3 : vector<1x128x128xbf16> to vector<128x128xbf16>
    %cst = arith.constant dense<0.000000e+00> : vector<64x128xf32>
    %5 = tpu.matmul %2, %4, %cst {dimension_numbers = #tpu.dot_dimension_numbers<[1], [0], [0], [1], [0, 0, 1, 1], [], []>} : vector<64x128xbf16>, vector<128x128xbf16>, vector<64x128xf32> -> vector<64x128xf32>
    %c0_5 = arith.constant 0 : index
    %c0_6 = arith.constant 0 : index
    %c0_7 = arith.constant 0 : index
    %6 = vector.load %arg2[%c0_5, %c0_6, %c0_7] : memref<3x64x64xbf16, #tpu.memory_space<vmem>>, vector<1x64x64xbf16>
    %7 = vector.shape_cast %6 : vector<1x64x64xbf16> to vector<64x64xbf16>
    %8 = arith.truncf %5 : vector<64x128xf32> to vector<64x128xbf16>
    %cst_8 = arith.constant dense<0.000000e+00> : vector<64x128xf32>
    %9 = tpu.matmul %7, %8, %cst_8 {dimension_numbers = #tpu.dot_dimension_numbers<[1], [0], [0], [1], [0, 0, 1, 1], [], []>} : vector<64x64xbf16>, vector<64x128xbf16>, vector<64x128xf32> -> vector<64x128xf32>
    %c1 = arith.constant 1 : index
    %c0_9 = arith.constant 0 : index
    %c0_10 = arith.constant 0 : index
    %10 = vector.load %arg3[%c1, %c0_9, %c0_10] : memref<3x128x128xbf16, #tpu.memory_space<vmem>>, vector<1x128x128xbf16>
    %11 = vector.shape_cast %10 : vector<1x128x128xbf16> to vector<128x128xbf16>
    %cst_11 = arith.constant dense<0.000000e+00> : vector<64x128xf32>
    %12 = tpu.matmul %2, %11, %cst_11 {dimension_numbers = #tpu.dot_dimension_numbers<[1], [0], [0], [1], [0, 0, 1, 1], [], []>} : vector<64x128xbf16>, vector<128x128xbf16>, vector<64x128xf32> -> vector<64x128xf32>
    %c1_12 = arith.constant 1 : index
    %c0_13 = arith.constant 0 : index
    %c0_14 = arith.constant 0 : index
    %13 = vector.load %arg2[%c1_12, %c0_13, %c0_14] : memref<3x64x64xbf16, #tpu.memory_space<vmem>>, vector<1x64x64xbf16>
    %14 = vector.shape_cast %13 : vector<1x64x64xbf16> to vector<64x64xbf16>
    %15 = arith.truncf %12 : vector<64x128xf32> to vector<64x128xbf16>
    %cst_15 = arith.constant dense<0.000000e+00> : vector<64x128xf32>
    %16 = tpu.matmul %14, %15, %cst_15 {dimension_numbers = #tpu.dot_dimension_numbers<[1], [0], [0], [1], [0, 0, 1, 1], [], []>} : vector<64x64xbf16>, vector<64x128xbf16>, vector<64x128xf32> -> vector<64x128xf32>
    %17 = arith.addf %9, %16 : vector<64x128xf32>
    %c2 = arith.constant 2 : index
    %c0_16 = arith.constant 0 : index
    %c0_17 = arith.constant 0 : index
    %18 = vector.load %arg3[%c2, %c0_16, %c0_17] : memref<3x128x128xbf16, #tpu.memory_space<vmem>>, vector<1x128x128xbf16>
    %19 = vector.shape_cast %18 : vector<1x128x128xbf16> to vector<128x128xbf16>
    %cst_18 = arith.constant dense<0.000000e+00> : vector<64x128xf32>
    %20 = tpu.matmul %2, %19, %cst_18 {dimension_numbers = #tpu.dot_dimension_numbers<[1], [0], [0], [1], [0, 0, 1, 1], [], []>} : vector<64x128xbf16>, vector<128x128xbf16>, vector<64x128xf32> -> vector<64x128xf32>
    %c2_19 = arith.constant 2 : index
    %c0_20 = arith.constant 0 : index
    %c0_21 = arith.constant 0 : index
    %21 = vector.load %arg2[%c2_19, %c0_20, %c0_21] : memref<3x64x64xbf16, #tpu.memory_space<vmem>>, vector<1x64x64xbf16>
    %22 = vector.shape_cast %21 : vector<1x64x64xbf16> to vector<64x64xbf16>
    %23 = arith.truncf %20 : vector<64x128xf32> to vector<64x128xbf16>
    %cst_22 = arith.constant dense<0.000000e+00> : vector<64x128xf32>
    %24 = tpu.matmul %22, %23, %cst_22 {dimension_numbers = #tpu.dot_dimension_numbers<[1], [0], [0], [1], [0, 0, 1, 1], [], []>} : vector<64x64xbf16>, vector<64x128xbf16>, vector<64x128xf32> -> vector<64x128xf32>
    %25 = arith.addf %17, %24 : vector<64x128xf32>
    %c0_23 = arith.constant 0 : index
    %c0_24 = arith.constant 0 : index
    %26 = vector.load %arg4[%c0_23, %c0_24] : memref<64x1xf32, #tpu.memory_space<vmem>>, vector<64x1xf32>
    %27 = vector.broadcast %26 : vector<64x1xf32> to vector<64x128xf32>
    %28 = arith.addf %25, %27 : vector<64x128xf32>
    %cst_25 = arith.constant 0.000000e+00 : f32
    %29 = vector.broadcast %cst_25 : f32 to vector<64x128xf32>
    %30 = arith.maximumf %28, %29 : vector<64x128xf32>
    %31 = arith.truncf %30 : vector<64x128xf32> to vector<64x128xbf16>
    %c0_26 = arith.constant 0 : index
    %c0_27 = arith.constant 0 : index
    %c0_28 = arith.constant 0 : index
    %32 = vector.load %arg6[%c0_26, %c0_27, %c0_28] : memref<3x128x64xbf16, #tpu.memory_space<vmem>>, vector<1x128x64xbf16>
    %33 = vector.shape_cast %32 : vector<1x128x64xbf16> to vector<128x64xbf16>
    %cst_29 = arith.constant dense<0.000000e+00> : vector<64x64xf32>
    %34 = tpu.matmul %31, %33, %cst_29 {dimension_numbers = #tpu.dot_dimension_numbers<[1], [0], [0], [1], [0, 0, 1, 1], [], []>} : vector<64x128xbf16>, vector<128x64xbf16>, vector<64x64xf32> -> vector<64x64xf32>
    %c0_30 = arith.constant 0 : index
    %c0_31 = arith.constant 0 : index
    %c0_32 = arith.constant 0 : index
    %35 = vector.load %arg5[%c0_30, %c0_31, %c0_32] : memref<3x64x64xbf16, #tpu.memory_space<vmem>>, vector<1x64x64xbf16>
    %36 = vector.shape_cast %35 : vector<1x64x64xbf16> to vector<64x64xbf16>
    %37 = arith.truncf %34 : vector<64x64xf32> to vector<64x64xbf16>
    %cst_33 = arith.constant dense<0.000000e+00> : vector<64x64xf32>
    %38 = tpu.matmul %36, %37, %cst_33 {dimension_numbers = #tpu.dot_dimension_numbers<[1], [0], [0], [1], [0, 0, 1, 1], [], []>} : vector<64x64xbf16>, vector<64x64xbf16>, vector<64x64xf32> -> vector<64x64xf32>
    %c1_34 = arith.constant 1 : index
    %c0_35 = arith.constant 0 : index
    %c0_36 = arith.constant 0 : index
    %39 = vector.load %arg6[%c1_34, %c0_35, %c0_36] : memref<3x128x64xbf16, #tpu.memory_space<vmem>>, vector<1x128x64xbf16>
    %40 = vector.shape_cast %39 : vector<1x128x64xbf16> to vector<128x64xbf16>
    %cst_37 = arith.constant dense<0.000000e+00> : vector<64x64xf32>
    %41 = tpu.matmul %31, %40, %cst_37 {dimension_numbers = #tpu.dot_dimension_numbers<[1], [0], [0], [1], [0, 0, 1, 1], [], []>} : vector<64x128xbf16>, vector<128x64xbf16>, vector<64x64xf32> -> vector<64x64xf32>
    %c1_38 = arith.constant 1 : index
    %c0_39 = arith.constant 0 : index
    %c0_40 = arith.constant 0 : index
    %42 = vector.load %arg5[%c1_38, %c0_39, %c0_40] : memref<3x64x64xbf16, #tpu.memory_space<vmem>>, vector<1x64x64xbf16>
    %43 = vector.shape_cast %42 : vector<1x64x64xbf16> to vector<64x64xbf16>
    %44 = arith.truncf %41 : vector<64x64xf32> to vector<64x64xbf16>
    %cst_41 = arith.constant dense<0.000000e+00> : vector<64x64xf32>
    %45 = tpu.matmul %43, %44, %cst_41 {dimension_numbers = #tpu.dot_dimension_numbers<[1], [0], [0], [1], [0, 0, 1, 1], [], []>} : vector<64x64xbf16>, vector<64x64xbf16>, vector<64x64xf32> -> vector<64x64xf32>
    %46 = arith.addf %38, %45 : vector<64x64xf32>
    %c2_42 = arith.constant 2 : index
    %c0_43 = arith.constant 0 : index
    %c0_44 = arith.constant 0 : index
    %47 = vector.load %arg6[%c2_42, %c0_43, %c0_44] : memref<3x128x64xbf16, #tpu.memory_space<vmem>>, vector<1x128x64xbf16>
    %48 = vector.shape_cast %47 : vector<1x128x64xbf16> to vector<128x64xbf16>
    %cst_45 = arith.constant dense<0.000000e+00> : vector<64x64xf32>
    %49 = tpu.matmul %31, %48, %cst_45 {dimension_numbers = #tpu.dot_dimension_numbers<[1], [0], [0], [1], [0, 0, 1, 1], [], []>} : vector<64x128xbf16>, vector<128x64xbf16>, vector<64x64xf32> -> vector<64x64xf32>
    %c2_46 = arith.constant 2 : index
    %c0_47 = arith.constant 0 : index
    %c0_48 = arith.constant 0 : index
    %50 = vector.load %arg5[%c2_46, %c0_47, %c0_48] : memref<3x64x64xbf16, #tpu.memory_space<vmem>>, vector<1x64x64xbf16>
    %51 = vector.shape_cast %50 : vector<1x64x64xbf16> to vector<64x64xbf16>
    %52 = arith.truncf %49 : vector<64x64xf32> to vector<64x64xbf16>
    %cst_49 = arith.constant dense<0.000000e+00> : vector<64x64xf32>
    %53 = tpu.matmul %51, %52, %cst_49 {dimension_numbers = #tpu.dot_dimension_numbers<[1], [0], [0], [1], [0, 0, 1, 1], [], []>} : vector<64x64xbf16>, vector<64x64xbf16>, vector<64x64xf32> -> vector<64x64xf32>
    %54 = arith.addf %46, %53 : vector<64x64xf32>
    %c0_50 = arith.constant 0 : index
    %c0_51 = arith.constant 0 : index
    %55 = vector.load %arg7[%c0_50, %c0_51] : memref<64x1xf32, #tpu.memory_space<vmem>>, vector<64x1xf32>
    %56 = vector.broadcast %55 : vector<64x1xf32> to vector<64x64xf32>
    %57 = arith.addf %54, %56 : vector<64x64xf32>
    %cst_52 = arith.constant 0.000000e+00 : f32
    %58 = vector.broadcast %cst_52 : f32 to vector<64x64xf32>
    %59 = arith.maximumf %57, %58 : vector<64x64xf32>
    %60 = arith.truncf %59 : vector<64x64xf32> to vector<64x64xbf16>
    %c0_53 = arith.constant 0 : index
    %c0_54 = arith.constant 0 : index
    %c0_55 = arith.constant 0 : index
    %61 = vector.load %arg9[%c0_53, %c0_54, %c0_55] : memref<3x64x32xbf16, #tpu.memory_space<vmem>>, vector<1x64x32xbf16>
    %62 = vector.shape_cast %61 : vector<1x64x32xbf16> to vector<64x32xbf16>
    %cst_56 = arith.constant dense<0.000000e+00> : vector<64x32xf32>
    %63 = tpu.matmul %60, %62, %cst_56 {dimension_numbers = #tpu.dot_dimension_numbers<[1], [0], [0], [1], [0, 0, 1, 1], [], []>} : vector<64x64xbf16>, vector<64x32xbf16>, vector<64x32xf32> -> vector<64x32xf32>
    %c0_57 = arith.constant 0 : index
    %c0_58 = arith.constant 0 : index
    %c0_59 = arith.constant 0 : index
    %64 = vector.load %arg8[%c0_57, %c0_58, %c0_59] : memref<3x64x64xbf16, #tpu.memory_space<vmem>>, vector<1x64x64xbf16>
    %65 = vector.shape_cast %64 : vector<1x64x64xbf16> to vector<64x64xbf16>
    %66 = arith.truncf %63 : vector<64x32xf32> to vector<64x32xbf16>
    %cst_60 = arith.constant dense<0.000000e+00> : vector<64x32xf32>
    %67 = tpu.matmul %65, %66, %cst_60 {dimension_numbers = #tpu.dot_dimension_numbers<[1], [0], [0], [1], [0, 0, 1, 1], [], []>} : vector<64x64xbf16>, vector<64x32xbf16>, vector<64x32xf32> -> vector<64x32xf32>
    %c1_61 = arith.constant 1 : index
    %c0_62 = arith.constant 0 : index
    %c0_63 = arith.constant 0 : index
    %68 = vector.load %arg9[%c1_61, %c0_62, %c0_63] : memref<3x64x32xbf16, #tpu.memory_space<vmem>>, vector<1x64x32xbf16>
    %69 = vector.shape_cast %68 : vector<1x64x32xbf16> to vector<64x32xbf16>
    %cst_64 = arith.constant dense<0.000000e+00> : vector<64x32xf32>
    %70 = tpu.matmul %60, %69, %cst_64 {dimension_numbers = #tpu.dot_dimension_numbers<[1], [0], [0], [1], [0, 0, 1, 1], [], []>} : vector<64x64xbf16>, vector<64x32xbf16>, vector<64x32xf32> -> vector<64x32xf32>
    %c1_65 = arith.constant 1 : index
    %c0_66 = arith.constant 0 : index
    %c0_67 = arith.constant 0 : index
    %71 = vector.load %arg8[%c1_65, %c0_66, %c0_67] : memref<3x64x64xbf16, #tpu.memory_space<vmem>>, vector<1x64x64xbf16>
    %72 = vector.shape_cast %71 : vector<1x64x64xbf16> to vector<64x64xbf16>
    %73 = arith.truncf %70 : vector<64x32xf32> to vector<64x32xbf16>
    %cst_68 = arith.constant dense<0.000000e+00> : vector<64x32xf32>
    %74 = tpu.matmul %72, %73, %cst_68 {dimension_numbers = #tpu.dot_dimension_numbers<[1], [0], [0], [1], [0, 0, 1, 1], [], []>} : vector<64x64xbf16>, vector<64x32xbf16>, vector<64x32xf32> -> vector<64x32xf32>
    %75 = arith.addf %67, %74 : vector<64x32xf32>
    %c2_69 = arith.constant 2 : index
    %c0_70 = arith.constant 0 : index
    %c0_71 = arith.constant 0 : index
    %76 = vector.load %arg9[%c2_69, %c0_70, %c0_71] : memref<3x64x32xbf16, #tpu.memory_space<vmem>>, vector<1x64x32xbf16>
    %77 = vector.shape_cast %76 : vector<1x64x32xbf16> to vector<64x32xbf16>
    %cst_72 = arith.constant dense<0.000000e+00> : vector<64x32xf32>
    %78 = tpu.matmul %60, %77, %cst_72 {dimension_numbers = #tpu.dot_dimension_numbers<[1], [0], [0], [1], [0, 0, 1, 1], [], []>} : vector<64x64xbf16>, vector<64x32xbf16>, vector<64x32xf32> -> vector<64x32xf32>
    %c2_73 = arith.constant 2 : index
    %c0_74 = arith.constant 0 : index
    %c0_75 = arith.constant 0 : index
    %79 = vector.load %arg8[%c2_73, %c0_74, %c0_75] : memref<3x64x64xbf16, #tpu.memory_space<vmem>>, vector<1x64x64xbf16>
    %80 = vector.shape_cast %79 : vector<1x64x64xbf16> to vector<64x64xbf16>
    %81 = arith.truncf %78 : vector<64x32xf32> to vector<64x32xbf16>
    %cst_76 = arith.constant dense<0.000000e+00> : vector<64x32xf32>
    %82 = tpu.matmul %80, %81, %cst_76 {dimension_numbers = #tpu.dot_dimension_numbers<[1], [0], [0], [1], [0, 0, 1, 1], [], []>} : vector<64x64xbf16>, vector<64x32xbf16>, vector<64x32xf32> -> vector<64x32xf32>
    %83 = arith.addf %75, %82 : vector<64x32xf32>
    %c0_77 = arith.constant 0 : index
    %c0_78 = arith.constant 0 : index
    %84 = vector.load %arg10[%c0_77, %c0_78] : memref<64x1xf32, #tpu.memory_space<vmem>>, vector<64x1xf32>
    %85 = vector.broadcast %84 : vector<64x1xf32> to vector<64x32xf32>
    %86 = arith.addf %83, %85 : vector<64x32xf32>
    %cst_79 = arith.constant 0.000000e+00 : f32
    %87 = vector.broadcast %cst_79 : f32 to vector<64x32xf32>
    %88 = arith.maximumf %86, %87 : vector<64x32xf32>
    %89 = arith.truncf %88 : vector<64x32xf32> to vector<64x32xbf16>
    %c0_80 = arith.constant 0 : index
    %c0_81 = arith.constant 0 : index
    %c0_82 = arith.constant 0 : index
    %90 = vector.load %arg11[%c0_80, %c0_81, %c0_82] : memref<4x32x64xbf16, #tpu.memory_space<vmem>>, vector<1x32x64xbf16>
    %91 = vector.shape_cast %90 : vector<1x32x64xbf16> to vector<32x64xbf16>
    %92 = vector.extract_strided_slice %89 {offsets = [0, 0], sizes = [64, 8], strides = [1, 1]} : vector<64x32xbf16> to vector<64x8xbf16>
    %cst_83 = arith.constant dense<0.000000e+00> : vector<32x8xf32>
    %93 = tpu.matmul %91, %92, %cst_83 {dimension_numbers = #tpu.dot_dimension_numbers<[1], [0], [0], [1], [0, 0, 1, 1], [], []>} : vector<32x64xbf16>, vector<64x8xbf16>, vector<32x8xf32> -> vector<32x8xf32>
    %c1_84 = arith.constant 1 : index
    %c0_85 = arith.constant 0 : index
    %c0_86 = arith.constant 0 : index
    %94 = vector.load %arg11[%c1_84, %c0_85, %c0_86] : memref<4x32x64xbf16, #tpu.memory_space<vmem>>, vector<1x32x64xbf16>
    %95 = vector.shape_cast %94 : vector<1x32x64xbf16> to vector<32x64xbf16>
    %96 = vector.extract_strided_slice %89 {offsets = [0, 8], sizes = [64, 8], strides = [1, 1]} : vector<64x32xbf16> to vector<64x8xbf16>
    %cst_87 = arith.constant dense<0.000000e+00> : vector<32x8xf32>
    %97 = tpu.matmul %95, %96, %cst_87 {dimension_numbers = #tpu.dot_dimension_numbers<[1], [0], [0], [1], [0, 0, 1, 1], [], []>} : vector<32x64xbf16>, vector<64x8xbf16>, vector<32x8xf32> -> vector<32x8xf32>
    %98 = arith.addf %93, %97 : vector<32x8xf32>
    %c2_88 = arith.constant 2 : index
    %c0_89 = arith.constant 0 : index
    %c0_90 = arith.constant 0 : index
    %99 = vector.load %arg11[%c2_88, %c0_89, %c0_90] : memref<4x32x64xbf16, #tpu.memory_space<vmem>>, vector<1x32x64xbf16>
    %100 = vector.shape_cast %99 : vector<1x32x64xbf16> to vector<32x64xbf16>
    %101 = vector.extract_strided_slice %89 {offsets = [0, 16], sizes = [64, 8], strides = [1, 1]} : vector<64x32xbf16> to vector<64x8xbf16>
    %cst_91 = arith.constant dense<0.000000e+00> : vector<32x8xf32>
    %102 = tpu.matmul %100, %101, %cst_91 {dimension_numbers = #tpu.dot_dimension_numbers<[1], [0], [0], [1], [0, 0, 1, 1], [], []>} : vector<32x64xbf16>, vector<64x8xbf16>, vector<32x8xf32> -> vector<32x8xf32>
    %103 = arith.addf %98, %102 : vector<32x8xf32>
    %c3 = arith.constant 3 : index
    %c0_92 = arith.constant 0 : index
    %c0_93 = arith.constant 0 : index
    %104 = vector.load %arg11[%c3, %c0_92, %c0_93] : memref<4x32x64xbf16, #tpu.memory_space<vmem>>, vector<1x32x64xbf16>
    %105 = vector.shape_cast %104 : vector<1x32x64xbf16> to vector<32x64xbf16>
    %106 = vector.extract_strided_slice %89 {offsets = [0, 24], sizes = [64, 8], strides = [1, 1]} : vector<64x32xbf16> to vector<64x8xbf16>
    %cst_94 = arith.constant dense<0.000000e+00> : vector<32x8xf32>
    %107 = tpu.matmul %105, %106, %cst_94 {dimension_numbers = #tpu.dot_dimension_numbers<[1], [0], [0], [1], [0, 0, 1, 1], [], []>} : vector<32x64xbf16>, vector<64x8xbf16>, vector<32x8xf32> -> vector<32x8xf32>
    %108 = arith.addf %103, %107 : vector<32x8xf32>
    %c0_95 = arith.constant 0 : index
    %c0_96 = arith.constant 0 : index
    %109 = vector.load %arg12[%c0_95, %c0_96] : memref<32x1xf32, #tpu.memory_space<vmem>>, vector<32x1xf32>
    %110 = vector.broadcast %109 : vector<32x1xf32> to vector<32x8xf32>
    %111 = arith.addf %108, %110 : vector<32x8xf32>
    %cst_97 = arith.constant 0.000000e+00 : f32
    %112 = vector.broadcast %cst_97 : f32 to vector<32x8xf32>
    %113 = arith.maximumf %111, %112 : vector<32x8xf32>
    %c0_98 = arith.constant 0 : index
    %c0_99 = arith.constant 0 : index
    %114 = vector.load %arg13[%c0_98, %c0_99] : memref<16x32xbf16, #tpu.memory_space<vmem>>, vector<16x32xbf16>
    %115 = arith.truncf %113 : vector<32x8xf32> to vector<32x8xbf16>
    %cst_100 = arith.constant dense<0.000000e+00> : vector<16x8xf32>
    %116 = tpu.matmul %114, %115, %cst_100 {dimension_numbers = #tpu.dot_dimension_numbers<[1], [0], [0], [1], [0, 0, 1, 1], [], []>} : vector<16x32xbf16>, vector<32x8xbf16>, vector<16x8xf32> -> vector<16x8xf32>
    %c0_101 = arith.constant 0 : index
    %c0_102 = arith.constant 0 : index
    %117 = vector.load %arg14[%c0_101, %c0_102] : memref<16x1xf32, #tpu.memory_space<vmem>>, vector<16x1xf32>
    %118 = vector.broadcast %117 : vector<16x1xf32> to vector<16x8xf32>
    %119 = arith.addf %116, %118 : vector<16x8xf32>
    %120 = vector.extract_strided_slice %119 {offsets = [0, 0], sizes = [8, 8], strides = [1, 1]} : vector<16x8xf32> to vector<8x8xf32>
    %121 = vector.extract_strided_slice %119 {offsets = [8, 0], sizes = [8, 8], strides = [1, 1]} : vector<16x8xf32> to vector<8x8xf32>
    %cst_103 = arith.constant 0.000000e+00 : f32
    %122 = vector.broadcast %cst_103 : f32 to vector<8x8xf32>
    %123 = arith.maximumf %121, %122 : vector<8x8xf32>
    %124 = math.absf %121 : vector<8x8xf32>
    %cst_104 = arith.constant 0.000000e+00 : f32
    %125 = vector.broadcast %cst_104 : f32 to vector<8x8xf32>
    %126 = arith.subf %125, %124 : vector<8x8xf32>
    %127 = math.exp %126 : vector<8x8xf32>
    %cst_105 = arith.constant 1.000000e+00 : f32
    %128 = vector.broadcast %cst_105 : f32 to vector<8x8xf32>
    %129 = arith.addf %128, %127 : vector<8x8xf32>
    %130 = math.log %129 : vector<8x8xf32>
    %131 = arith.addf %123, %130 : vector<8x8xf32>
    %cst_106 = arith.constant 0.00999999977 : f32
    %132 = vector.broadcast %cst_106 : f32 to vector<8x8xf32>
    %133 = arith.addf %131, %132 : vector<8x8xf32>
    %134 = tpu.concatenate %120, %133 in 0 : vector<8x8xf32>, vector<8x8xf32> -> vector<16x8xf32>
    %135 = vector.shape_cast %134 : vector<16x8xf32> to vector<1x16x8xf32>
    %c0_107 = arith.constant 0 : index
    %c0_108 = arith.constant 0 : index
    %c0_109 = arith.constant 0 : index
    %136 = vector.load %arg15[%c0_107, %c0_108, %c0_109] : memref<1x16x8xf32, #tpu.memory_space<vmem>>, vector<1x16x8xf32>
    tpu.vector_store %arg15[%c0_107, %c0_108, %c0_109], %135 {strides = array<i32>} : memref<1x16x8xf32, #tpu.memory_space<vmem>>, vector<1x16x8xf32>,
    return
  }
  func.func @transform_0(%arg0: i32) -> (i32, i32, i32) {
    %c0_i32 = arith.constant 0 : i32
    %c0_i32_0 = arith.constant 0 : i32
    %c0_i32_1 = arith.constant 0 : i32
    return %arg0, %c0_i32, %c0_i32_0 : i32, i32, i32
  }
  func.func @transform_1(%arg0: i32) -> (i32, i32, i32) {
    %c0_i32 = arith.constant 0 : i32
    %c0_i32_0 = arith.constant 0 : i32
    %c0_i32_1 = arith.constant 0 : i32
    %c0_i32_2 = arith.constant 0 : i32
    return %c0_i32, %c0_i32_0, %c0_i32_1 : i32, i32, i32
  }
  func.func @transform_2(%arg0: i32) -> (i32, i32, i32) {
    %c0_i32 = arith.constant 0 : i32
    %c0_i32_0 = arith.constant 0 : i32
    %c0_i32_1 = arith.constant 0 : i32
    %c0_i32_2 = arith.constant 0 : i32
    return %c0_i32, %c0_i32_0, %c0_i32_1 : i32, i32, i32
  }
  func.func @transform_3(%arg0: i32) -> (i32, i32) {
    %c0_i32 = arith.constant 0 : i32
    %c0_i32_0 = arith.constant 0 : i32
    %c0_i32_1 = arith.constant 0 : i32
    return %c0_i32, %c0_i32_0 : i32, i32
  }
  func.func @transform_4(%arg0: i32) -> (i32, i32, i32) {
    %c0_i32 = arith.constant 0 : i32
    %c0_i32_0 = arith.constant 0 : i32
    %c0_i32_1 = arith.constant 0 : i32
    %c0_i32_2 = arith.constant 0 : i32
    return %c0_i32, %c0_i32_0, %c0_i32_1 : i32, i32, i32
  }
  func.func @transform_5(%arg0: i32) -> (i32, i32, i32) {
    %c0_i32 = arith.constant 0 : i32
    %c0_i32_0 = arith.constant 0 : i32
    %c0_i32_1 = arith.constant 0 : i32
    %c0_i32_2 = arith.constant 0 : i32
    return %c0_i32, %c0_i32_0, %c0_i32_1 : i32, i32, i32
  }
  func.func @transform_6(%arg0: i32) -> (i32, i32) {
    %c0_i32 = arith.constant 0 : i32
    %c0_i32_0 = arith.constant 0 : i32
    %c0_i32_1 = arith.constant 0 : i32
    return %c0_i32, %c0_i32_0 : i32, i32
  }
  func.func @transform_7(%arg0: i32) -> (i32, i32, i32) {
    %c0_i32 = arith.constant 0 : i32
    %c0_i32_0 = arith.constant 0 : i32
    %c0_i32_1 = arith.constant 0 : i32
    %c0_i32_2 = arith.constant 0 : i32
    return %c0_i32, %c0_i32_0, %c0_i32_1 : i32, i32, i32
  }
  func.func @transform_8(%arg0: i32) -> (i32, i32, i32) {
    %c0_i32 = arith.constant 0 : i32
    %c0_i32_0 = arith.constant 0 : i32
    %c0_i32_1 = arith.constant 0 : i32
    %c0_i32_2 = arith.constant 0 : i32
    return %c0_i32, %c0_i32_0, %c0_i32_1 : i32, i32, i32
  }
  func.func @transform_9(%arg0: i32) -> (i32, i32) {
    %c0_i32 = arith.constant 0 : i32
    %c0_i32_0 = arith.constant 0 : i32
    %c0_i32_1 = arith.constant 0 : i32
    return %c0_i32, %c0_i32_0 : i32, i32
  }
  func.func @transform_10(%arg0: i32) -> (i32, i32, i32) {
    %c0_i32 = arith.constant 0 : i32
    %c0_i32_0 = arith.constant 0 : i32
    %c0_i32_1 = arith.constant 0 : i32
    %c0_i32_2 = arith.constant 0 : i32
    return %c0_i32, %c0_i32_0, %c0_i32_1 : i32, i32, i32
  }
  func.func @transform_11(%arg0: i32) -> (i32, i32) {
    %c0_i32 = arith.constant 0 : i32
    %c0_i32_0 = arith.constant 0 : i32
    %c0_i32_1 = arith.constant 0 : i32
    return %c0_i32, %c0_i32_0 : i32, i32
  }
  func.func @transform_12(%arg0: i32) -> (i32, i32) {
    %c0_i32 = arith.constant 0 : i32
    %c0_i32_0 = arith.constant 0 : i32
    %c0_i32_1 = arith.constant 0 : i32
    return %c0_i32, %c0_i32_0 : i32, i32
  }
  func.func @transform_13(%arg0: i32) -> (i32, i32) {
    %c0_i32 = arith.constant 0 : i32
    %c0_i32_0 = arith.constant 0 : i32
    %c0_i32_1 = arith.constant 0 : i32
    return %c0_i32, %c0_i32_0 : i32, i32
  }
  func.func @transform_14(%arg0: i32) -> (i32, i32, i32) {
    %c0_i32 = arith.constant 0 : i32
    %c0_i32_0 = arith.constant 0 : i32
    %c0_i32_1 = arith.constant 0 : i32
    return %arg0, %c0_i32, %c0_i32_0 : i32, i32, i32
  }
}

</mosaic_0001>

<llo_original>
// kernel: _lambda_.1
$region0: #{_lambda_.1}
  #allocation0 [shape = 'u32[]', space=smem, size = 0x4, offset = 0x4, fixed_abs, tag = 'smem constant byte address 0x4 - core index']
  #allocation1 [shape = 'u32[144,128]{1,0:T(1,128)}', space=vmem, size = 0x12000, scoped, tag = 'internal scratch']
  %s0 = inlined_call_operand.vmem [shape: f32[1,64,128], index: 0, kind: input, shape index: {}]
  %s1 = inlined_call_operand.vmem [shape: bf16[3,64,64], index: 1, kind: input, shape index: {}]
  %s2 = inlined_call_operand.vmem [shape: bf16[3,128,128], index: 2, kind: input, shape index: {}]
  %s3 = inlined_call_operand.vmem [shape: f32[64,1], index: 3, kind: input, shape index: {}]
  %s4 = inlined_call_operand.vmem [shape: bf16[3,64,64], index: 4, kind: input, shape index: {}]
  %s5 = inlined_call_operand.vmem [shape: bf16[3,128,64], index: 5, kind: input, shape index: {}]
  %s6 = inlined_call_operand.vmem [shape: f32[64,1], index: 6, kind: input, shape index: {}]
  %s7 = inlined_call_operand.vmem [shape: bf16[3,64,64], index: 7, kind: input, shape index: {}]
  %s8 = inlined_call_operand.vmem [shape: bf16[3,64,32], index: 8, kind: input, shape index: {}]
  %s9 = inlined_call_operand.vmem [shape: f32[64,1], index: 9, kind: input, shape index: {}]
  %s10 = inlined_call_operand.vmem [shape: bf16[4,32,64], index: 10, kind: input, shape index: {}]
  %s11 = inlined_call_operand.vmem [shape: f32[32,1], index: 11, kind: input, shape index: {}]
  %s12 = inlined_call_operand.vmem [shape: bf16[16,32], index: 12, kind: input, shape index: {}]
  %s13 = inlined_call_operand.vmem [shape: f32[16,1], index: 13, kind: input, shape index: {}]
  %s14 = inlined_call_operand.vmem [shape: f32[1,16,8], index: 14, kind: output, shape index: {}]
  %s15 = sld [smem:[#allocation0]]
  $region66: #{_lambda_.1} parent=0
    _
  %s17 = ssub.s32 1, %s15
  %s18 = scalar_select 0, %s17, %s15
  // Predicated region
  $region2: #{_lambda_.1} parent=0 // pred_check
    _
  $region3: #{_lambda_.1} parent=0 // pred_check_branch
    %20 = sbr.rel (0) target = $region5
  $region4: #{_lambda_.1} parent=0 // pred_region
    _
  $region5: #{_lambda_.1} parent=0 // pred_fallthru
    _
  // Predicated region
  $region6: #{_lambda_.1} parent=0 // pred_check
    _
  $region7: #{_lambda_.1} parent=0 // pred_check_branch
    %22 = sbr.rel (0) target = $region9
  $region8: #{_lambda_.1} parent=0 // pred_region
    _
  $region9: #{_lambda_.1} parent=0 // pred_fallthru
    _
  // Predicated region
  $region10: #{_lambda_.1} parent=0 // pred_check
    _
  $region11: #{_lambda_.1} parent=0 // pred_check_branch
    %24 = sbr.rel (0) target = $region13
  $region12: #{_lambda_.1} parent=0 // pred_region
    _
  $region13: #{_lambda_.1} parent=0 // pred_fallthru
    _
  // Predicated region
  $region14: #{_lambda_.1} parent=0 // pred_check
    _
  $region15: #{_lambda_.1} parent=0 // pred_check_branch
    %26 = sbr.rel (0) target = $region17
  $region16: #{_lambda_.1} parent=0 // pred_region
    _
  $region17: #{_lambda_.1} parent=0 // pred_fallthru
    _
  // Predicated region
  $region18: #{_lambda_.1} parent=0 // pred_check
    _
  $region19: #{_lambda_.1} parent=0 // pred_check_branch
    %28 = sbr.rel (0) target = $region21
  $region20: #{_lambda_.1} parent=0 // pred_region
    _
  $region21: #{_lambda_.1} parent=0 // pred_fallthru
    _
  // Predicated region
  $region22: #{_lambda_.1} parent=0 // pred_check
    _
  $region23: #{_lambda_.1} parent=0 // pred_check_branch
    %30 = sbr.rel (0) target = $region25
  $region24: #{_lambda_.1} parent=0 // pred_region
    _
  $region25: #{_lambda_.1} parent=0 // pred_fallthru
    _
  // Predicated region
  $region26: #{_lambda_.1} parent=0 // pred_check
    _
  $region27: #{_lambda_.1} parent=0 // pred_check_branch
    %32 = sbr.rel (0) target = $region29
  $region28: #{_lambda_.1} parent=0 // pred_region
    _
  $region29: #{_lambda_.1} parent=0 // pred_fallthru
    _
  // Predicated region
  $region30: #{_lambda_.1} parent=0 // pred_check
    _
  $region31: #{_lambda_.1} parent=0 // pred_check_branch
    %34 = sbr.rel (0) target = $region33
  $region32: #{_lambda_.1} parent=0 // pred_region
    _
  $region33: #{_lambda_.1} parent=0 // pred_fallthru
    _
  // Predicated region
  $region34: #{_lambda_.1} parent=0 // pred_check
    _
  $region35: #{_lambda_.1} parent=0 // pred_check_branch
    %36 = sbr.rel (0) target = $region37
  $region36: #{_lambda_.1} parent=0 // pred_region
    _
  $region37: #{_lambda_.1} parent=0 // pred_fallthru
    _
  // Predicated region
  $region38: #{_lambda_.1} parent=0 // pred_check
    _
  $region39: #{_lambda_.1} parent=0 // pred_check_branch
    %38 = sbr.rel (0) target = $region41
  $region40: #{_lambda_.1} parent=0 // pred_region
    _
  $region41: #{_lambda_.1} parent=0 // pred_fallthru
    _
  // Predicated region
  $region42: #{_lambda_.1} parent=0 // pred_check
    _
  $region43: #{_lambda_.1} parent=0 // pred_check_branch
    %40 = sbr.rel (0) target = $region45
  $region44: #{_lambda_.1} parent=0 // pred_region
    _
  $region45: #{_lambda_.1} parent=0 // pred_fallthru
    _
  // Predicated region
  $region46: #{_lambda_.1} parent=0 // pred_check
    _
  $region47: #{_lambda_.1} parent=0 // pred_check_branch
    %42 = sbr.rel (0) target = $region49
  $region48: #{_lambda_.1} parent=0 // pred_region
    _
  $region49: #{_lambda_.1} parent=0 // pred_fallthru
    _
  // Predicated region
  $region50: #{_lambda_.1} parent=0 // pred_check
    _
  $region51: #{_lambda_.1} parent=0 // pred_check_branch
    %44 = sbr.rel (0) target = $region53
  $region52: #{_lambda_.1} parent=0 // pred_region
    _
  $region53: #{_lambda_.1} parent=0 // pred_fallthru
    _
  // Predicated region
  $region54: #{_lambda_.1} parent=0 // pred_check
    _
  $region55: #{_lambda_.1} parent=0 // pred_check_branch
    %46 = sbr.rel (0) target = $region57
  $region56: #{_lambda_.1} parent=0 // pred_region
    _
  $region57: #{_lambda_.1} parent=0 // pred_fallthru
    _
  %v48 = vld [vmem:[%s0] sm:$0xff]
  %v49 = vld [vmem:[%s0 + $0x8] sm:$0xff]
  %v50 = vld [vmem:[%s0 + $0x10] sm:$0xff]
  %v51 = vld [vmem:[%s0 + $0x18] sm:$0xff]
  %v52 = vld [vmem:[%s0 + $0x20] sm:$0xff]
  %v53 = vld [vmem:[%s0 + $0x28] sm:$0xff]
  %v54 = vld [vmem:[%s0 + $0x30] sm:$0xff]
  %v55 = vld [vmem:[%s0 + $0x38] sm:$0xff]
  %v56 = vpack.c.bf16 %v49, %v48
  %v57 = vpack.c.bf16 %v51, %v50
  %v58 = vpack.c.bf16 %v53, %v52
  %v59 = vpack.c.bf16 %v55, %v54
  %v60 = vld [vmem:[%s2] sm:$0xf]
  %v61 = vld [vmem:[%s2 + $0x4] sm:$0xf]
  %v62 = vld [vmem:[%s2 + $0x8] sm:$0xf]
  %v63 = vld [vmem:[%s2 + $0xc] sm:$0xf]
  %v64 = vld [vmem:[%s2 + $0x10] sm:$0xf]
  %v65 = vld [vmem:[%s2 + $0x14] sm:$0xf]
  %v66 = vld [vmem:[%s2 + $0x18] sm:$0xf]
  %v67 = vld [vmem:[%s2 + $0x1c] sm:$0xf]
  %v68 = vld [vmem:[%s2 + $0x20] sm:$0xf]
  %v69 = vld [vmem:[%s2 + $0x24] sm:$0xf]
  %v70 = vld [vmem:[%s2 + $0x28] sm:$0xf]
  %v71 = vld [vmem:[%s2 + $0x2c] sm:$0xf]
  %v72 = vld [vmem:[%s2 + $0x30] sm:$0xf]
  %v73 = vld [vmem:[%s2 + $0x34] sm:$0xf]
  %v74 = vld [vmem:[%s2 + $0x38] sm:$0xf]
  %v75 = vld [vmem:[%s2 + $0x3c] sm:$0xf]
  %v92 = vunpack.c.l.b16 %v60
  %v93 = vunpack.c.l.b16 %v61
  %v94 = vunpack.c.l.b16 %v62
  %v95 = vunpack.c.l.b16 %v63
  %v96 = vunpack.c.l.b16 %v64
  %v97 = vunpack.c.l.b16 %v65
  %v98 = vunpack.c.l.b16 %v66
  %v99 = vunpack.c.l.b16 %v67
  %v100 = vunpack.c.l.b16 %v68
  %v101 = vunpack.c.l.b16 %v69
  %v102 = vunpack.c.l.b16 %v70
  %v103 = vunpack.c.l.b16 %v71
  %v104 = vunpack.c.l.b16 %v72
  %v105 = vunpack.c.l.b16 %v73
  %v106 = vunpack.c.l.b16 %v74
  %v107 = vunpack.c.l.b16 %v75
  %v108 = vpack.c.b16 %v93, %v92
  %v109 = vpack.c.b16 %v95, %v94
  %v110 = vpack.c.b16 %v97, %v96
  %v111 = vpack.c.b16 %v99, %v98
  %v112 = vpack.c.b16 %v101, %v100
  %v113 = vpack.c.b16 %v103, %v102
  %v114 = vpack.c.b16 %v105, %v104
  %v115 = vpack.c.b16 %v107, %v106
  %124 = vmatprep.subr.bf16.mxu0 0
  %125 = vmatpush1.bf16.msra.mxu0 %v108
  %126 = vmatprep.subr.bf16.mxu0 0
  %127 = vmatpush1.bf16.msra.mxu0 %v109
  %128 = vmatprep.subr.bf16.mxu0 0
  %129 = vmatpush1.bf16.msra.mxu0 %v110
  %130 = vmatprep.subr.bf16.mxu0 0
  %131 = vmatpush1.bf16.msra.mxu0 %v111
  %132 = vmatprep.subr.bf16.mxu0 0
  %133 = vmatpush1.bf16.msra.mxu0 %v112
  %134 = vmatprep.subr.bf16.mxu0 0
  %135 = vmatpush1.bf16.msra.mxu0 %v113
  %136 = vmatprep.subr.bf16.mxu0 0
  %137 = vmatpush1.bf16.msra.mxu0 %v114
  %138 = vmatprep.subr.bf16.mxu0 0
  %139 = vmatpush1.bf16.msra.mxu0 %v115
  %140 = vmatprep.subr.bf16.mxu0 0
  %141 = vmatpush1.bf16.msra.mxu0 0
  %142 = vmatprep.subr.bf16.mxu0 0
  %143 = vmatpush1.bf16.msra.mxu0 0
  %144 = vmatprep.subr.bf16.mxu0 0
  %145 = vmatpush1.bf16.msra.mxu0 0
  %146 = vmatprep.subr.bf16.mxu0 0
  %147 = vmatpush1.bf16.msra.mxu0 0
  %148 = vmatprep.subr.bf16.mxu0 0
  %149 = vmatpush1.bf16.msra.mxu0 0
  %150 = vmatprep.subr.bf16.mxu0 0
  %151 = vmatpush1.bf16.msra.mxu0 0
  %152 = vmatprep.subr.bf16.mxu0 0
  %153 = vmatpush1.bf16.msra.mxu0 0
  %154 = vmatprep.subr.bf16.mxu0 0
  %155 = vmatpush1.bf16.msra.mxu0 0
  %156 = vmatprep.mubr.bf16.mxu0 0
  %157 = vmatmul.mubr.bf16.gmra.mrb[0].mxu0 %v56
  %v158 = vpop.f32.mrb[0].mxu0
  %v159 = vadd.f32 0.0, %v158
  %v160 = vpop.f32.mrb[0].mxu0
  %v161 = vpop.f32.mrb[0].mxu0
  %v162 = vadd.f32 0.0, %v161
  %v163 = vpop.f32.mrb[0].mxu0
  %164 = vmatprep.mubr.bf16.mxu0 0
  %165 = vmatmul.mubr.bf16.gmra.mrb[0].mxu0 %v57
  %v166 = vpop.f32.mrb[0].mxu0
  %v167 = vadd.f32 0.0, %v166
  %v168 = vpop.f32.mrb[0].mxu0
  %v169 = vpop.f32.mrb[0].mxu0
  %v170 = vadd.f32 0.0, %v169
  %v171 = vpop.f32.mrb[0].mxu0
  %172 = vmatprep.mubr.bf16.mxu0 0
  %173 = vmatmul.mubr.bf16.gmra.mrb[0].mxu0 %v58
  %v174 = vpop.f32.mrb[0].mxu0
  %v175 = vadd.f32 0.0, %v174
  %v176 = vpop.f32.mrb[0].mxu0
  %v177 = vpop.f32.mrb[0].mxu0
  %v178 = vadd.f32 0.0, %v177
  %v179 = vpop.f32.mrb[0].mxu0
  %180 = vmatprep.mubr.bf16.mxu0 0
  %181 = vmatmul.mubr.bf16.gmra.mrb[0].mxu0 %v59
  %v182 = vpop.f32.mrb[0].mxu0
  %v183 = vadd.f32 0.0, %v182
  %v184 = vpop.f32.mrb[0].mxu0
  %v185 = vpop.f32.mrb[0].mxu0
  %v186 = vadd.f32 0.0, %v185
  %v187 = vpop.f32.mrb[0].mxu0
  %188 = vdwg.mxu0
  %v189 = vld [vmem:[%s1] sm:$0xf]
  %v190 = vld [vmem:[%s1 + $0x4] sm:$0xf]
  %v191 = vld [vmem:[%s1 + $0x8] sm:$0xf]
  %v192 = vld [vmem:[%s1 + $0xc] sm:$0xf]
  %v193 = vld [vmem:[%s1 + $0x10] sm:$0xf]
  %v194 = vld [vmem:[%s1 + $0x14] sm:$0xf]
  %v195 = vld [vmem:[%s1 + $0x18] sm:$0xf]
  %v196 = vld [vmem:[%s1 + $0x1c] sm:$0xf]
  %v197 = vpack.c.bf16 %v162, %v159
  %v198 = vpack.c.bf16 %v170, %v167
  %v199 = vpack.c.bf16 %v178, %v175
  %v200 = vpack.c.bf16 %v186, %v183
  %s201 = scalar_lea.vmem %s2, 64
  %v202 = vld [vmem:[%s201] sm:$0xf]
  %v203 = vld [vmem:[%s201 + $0x4] sm:$0xf]
  %v204 = vld [vmem:[%s201 + $0x8] sm:$0xf]
  %v205 = vld [vmem:[%s201 + $0xc] sm:$0xf]
  %v206 = vld [vmem:[%s201 + $0x10] sm:$0xf]
  %v207 = vld [vmem:[%s201 + $0x14] sm:$0xf]
  %v208 = vld [vmem:[%s201 + $0x18] sm:$0xf]
  %v209 = vld [vmem:[%s201 + $0x1c] sm:$0xf]
  %v210 = vld [vmem:[%s201 + $0x20] sm:$0xf]
  %v211 = vld [vmem:[%s201 + $0x24] sm:$0xf]
  %v212 = vld [vmem:[%s201 + $0x28] sm:$0xf]
  %v213 = vld [vmem:[%s201 + $0x2c] sm:$0xf]
  %v214 = vld [vmem:[%s201 + $0x30] sm:$0xf]
  %v215 = vld [vmem:[%s201 + $0x34] sm:$0xf]
  %v216 = vld [vmem:[%s201 + $0x38] sm:$0xf]
  %v217 = vld [vmem:[%s201 + $0x3c] sm:$0xf]
  %v234 = vunpack.c.l.b16 %v202
  %v235 = vunpack.c.l.b16 %v203
  %v236 = vunpack.c.l.b16 %v204
  %v237 = vunpack.c.l.b16 %v205
  %v238 = vunpack.c.l.b16 %v206
  %v239 = vunpack.c.l.b16 %v207
  %v240 = vunpack.c.l.b16 %v208
  %v241 = vunpack.c.l.b16 %v209
  %v242 = vunpack.c.l.b16 %v210
  %v243 = vunpack.c.l.b16 %v211
  %v244 = vunpack.c.l.b16 %v212
  %v245 = vunpack.c.l.b16 %v213
  %v246 = vunpack.c.l.b16 %v214
  %v247 = vunpack.c.l.b16 %v215
  %v248 = vunpack.c.l.b16 %v216
  %v249 = vunpack.c.l.b16 %v217
  %v250 = vpack.c.b16 %v235, %v234
  %v251 = vpack.c.b16 %v237, %v236
  %v252 = vpack.c.b16 %v239, %v238
  %v253 = vpack.c.b16 %v241, %v240
  %v254 = vpack.c.b16 %v243, %v242
  %v255 = vpack.c.b16 %v245, %v244
  %v256 = vpack.c.b16 %v247, %v246
  %v257 = vpack.c.b16 %v249, %v248
  %266 = vmatprep.subr.bf16.mxu0 0
  %267 = vmatpush1.bf16.msra.mxu0 %v250
  %268 = vmatprep.subr.bf16.mxu0 0
  %269 = vmatpush1.bf16.msra.mxu0 %v251
  %270 = vmatprep.subr.bf16.mxu0 0
  %271 = vmatpush1.bf16.msra.mxu0 %v252
  %272 = vmatprep.subr.bf16.mxu0 0
  %273 = vmatpush1.bf16.msra.mxu0 %v253
  %274 = vmatprep.subr.bf16.mxu0 0
  %275 = vmatpush1.bf16.msra.mxu0 %v254
  %276 = vmatprep.subr.bf16.mxu0 0
  %277 = vmatpush1.bf16.msra.mxu0 %v255
  %278 = vmatprep.subr.bf16.mxu0 0
  %279 = vmatpush1.bf16.msra.mxu0 %v256
  %280 = vmatprep.subr.bf16.mxu0 0
  %281 = vmatpush1.bf16.msra.mxu0 %v257
  %282 = vmatprep.subr.bf16.mxu0 0
  %283 = vmatpush1.bf16.msra.mxu0 0
  %284 = vmatprep.subr.bf16.mxu0 0
  %285 = vmatpush1.bf16.msra.mxu0 0
  %286 = vmatprep.subr.bf16.mxu0 0
  %287 = vmatpush1.bf16.msra.mxu0 0
  %288 = vmatprep.subr.bf16.mxu0 0
  %289 = vmatpush1.bf16.msra.mxu0 0
  %290 = vmatprep.subr.bf16.mxu0 0
  %291 = vmatpush1.bf16.msra.mxu0 0
  %292 = vmatprep.subr.bf16.mxu0 0
  %293 = vmatpush1.bf16.msra.mxu0 0
  %294 = vmatprep.subr.bf16.mxu0 0
  %295 = vmatpush1.bf16.msra.mxu0 0
  %296 = vmatprep.subr.bf16.mxu0 0
  %297 = vmatpush1.bf16.msra.mxu0 0
  %298 = vmatprep.mubr.bf16.mxu0 0
  %299 = vmatmul.mubr.bf16.gmra.mrb[0].mxu0 %v56
  %v300 = vpop.f32.mrb[0].mxu0
  %v301 = vadd.f32 0.0, %v300
  %v302 = vpop.f32.mrb[0].mxu0
  %v303 = vpop.f32.mrb[0].mxu0
  %v304 = vadd.f32 0.0, %v303
  %v305 = vpop.f32.mrb[0].mxu0
  %306 = vmatprep.mubr.bf16.mxu0 0
  %307 = vmatmul.mubr.bf16.gmra.mrb[0].mxu0 %v57
  %v308 = vpop.f32.mrb[0].mxu0
  %v309 = vadd.f32 0.0, %v308
  %v310 = vpop.f32.mrb[0].mxu0
  %v311 = vpop.f32.mrb[0].mxu0
  %v312 = vadd.f32 0.0, %v311
  %v313 = vpop.f32.mrb[0].mxu0
  %314 = vmatprep.mubr.bf16.mxu0 0
  %315 = vmatmul.mubr.bf16.gmra.mrb[0].mxu0 %v58
  %v316 = vpop.f32.mrb[0].mxu0
  %v317 = vadd.f32 0.0, %v316
  %v318 = vpop.f32.mrb[0].mxu0
  %v319 = vpop.f32.mrb[0].mxu0
  %v320 = vadd.f32 0.0, %v319
  %v321 = vpop.f32.mrb[0].mxu0
  %322 = vmatprep.mubr.bf16.mxu0 0
  %323 = vmatmul.mubr.bf16.gmra.mrb[0].mxu0 %v59
  %v324 = vpop.f32.mrb[0].mxu0
  %v325 = vadd.f32 0.0, %v324
  %v326 = vpop.f32.mrb[0].mxu0
  %v327 = vpop.f32.mrb[0].mxu0
  %v328 = vadd.f32 0.0, %v327
  %v329 = vpop.f32.mrb[0].mxu0
  %330 = vdwg.mxu0
  %s331 = scalar_lea.vmem %s1, 32
  %v332 = vld [vmem:[%s331] sm:$0xf]
  %v333 = vld [vmem:[%s331 + $0x4] sm:$0xf]
  %v334 = vld [vmem:[%s331 + $0x8] sm:$0xf]
  %v335 = vld [vmem:[%s331 + $0xc] sm:$0xf]
  %v336 = vld [vmem:[%s331 + $0x10] sm:$0xf]
  %v337 = vld [vmem:[%s331 + $0x14] sm:$0xf]
  %v338 = vld [vmem:[%s331 + $0x18] sm:$0xf]
  %v339 = vld [vmem:[%s331 + $0x1c] sm:$0xf]
  %v340 = vpack.c.bf16 %v304, %v301
  %v341 = vpack.c.bf16 %v312, %v309
  %v342 = vpack.c.bf16 %v320, %v317
  %v343 = vpack.c.bf16 %v328, %v325
  %v352 = vunpack.c.l.b16 %v332
  %v353 = vunpack.c.l.b16 %v333
  %v354 = vunpack.c.l.b16 %v334
  %v355 = vunpack.c.l.b16 %v335
  %v356 = vunpack.c.l.b16 %v336
  %v357 = vunpack.c.l.b16 %v337
  %v358 = vunpack.c.l.b16 %v338
  %v359 = vunpack.c.l.b16 %v339
  %v360 = vpack.c.b16 %v353, %v352
  %v361 = vpack.c.b16 %v355, %v354
  %v362 = vpack.c.b16 %v357, %v356
  %v363 = vpack.c.b16 %v359, %v358
  %vm364 = vcmask 523264
  %v366 = vsel %vm364, %v360, 0
  %v369 = vsel %vm364, %v361, 0
  %v372 = vsel %vm364, %v362, 0
  %v375 = vsel %vm364, %v363, 0
  %377 = vmatprep.subr.bf16.mxu0 0
  %378 = vmatpush1.bf16.msra.mxu0 %v340
  %379 = vmatprep.subr.bf16.mxu0 0
  %380 = vmatpush1.bf16.msra.mxu0 %v341
  %381 = vmatprep.subr.bf16.mxu0 0
  %382 = vmatpush1.bf16.msra.mxu0 %v342
  %383 = vmatprep.subr.bf16.mxu0 0
  %384 = vmatpush1.bf16.msra.mxu0 %v343
  %385 = vmatprep.subr.bf16.mxu0 0
  %386 = vmatpush1.bf16.msra.mxu0 0
  %387 = vmatprep.subr.bf16.mxu0 0
  %388 = vmatpush1.bf16.msra.mxu0 0
  %389 = vmatprep.subr.bf16.mxu0 0
  %390 = vmatpush1.bf16.msra.mxu0 0
  %391 = vmatprep.subr.bf16.mxu0 0
  %392 = vmatpush1.bf16.msra.mxu0 0
  %393 = vmatprep.subr.bf16.mxu0 0
  %394 = vmatpush1.bf16.msra.mxu0 0
  %395 = vmatprep.subr.bf16.mxu0 0
  %396 = vmatpush1.bf16.msra.mxu0 0
  %397 = vmatprep.subr.bf16.mxu0 0
  %398 = vmatpush1.bf16.msra.mxu0 0
  %399 = vmatprep.subr.bf16.mxu0 0
  %400 = vmatpush1.bf16.msra.mxu0 0
  %401 = vmatprep.subr.bf16.mxu0 0
  %402 = vmatpush1.bf16.msra.mxu0 0
  %403 = vmatprep.subr.bf16.mxu0 0
  %404 = vmatpush1.bf16.msra.mxu0 0
  %405 = vmatprep.subr.bf16.mxu0 0
  %406 = vmatpush1.bf16.msra.mxu0 0
  %407 = vmatprep.subr.bf16.mxu0 0
  %408 = vmatpush1.bf16.msra.mxu0 0
  %409 = vmatprep.mubr.bf16.mxu0 0
  %410 = vmatmul.mubr.bf16.gmra.mrb[0].mxu0 %v366
  %v411 = vpop.f32.mrb[0].mxu0
  %v412 = vadd.f32 0.0, %v411
  %v413 = vpop.f32.mrb[0].mxu0
  %v414 = vpop.f32.mrb[0].mxu0
  %v415 = vadd.f32 0.0, %v414
  %v416 = vpop.f32.mrb[0].mxu0
  %417 = vmatprep.mubr.bf16.mxu0 0
  %418 = vmatmul.mubr.bf16.gmra.mrb[0].mxu0 %v369
  %v419 = vpop.f32.mrb[0].mxu0
  %v420 = vadd.f32 0.0, %v419
  %v421 = vpop.f32.mrb[0].mxu0
  %v422 = vpop.f32.mrb[0].mxu0
  %v423 = vadd.f32 0.0, %v422
  %v424 = vpop.f32.mrb[0].mxu0
  %425 = vmatprep.mubr.bf16.mxu0 0
  %426 = vmatmul.mubr.bf16.gmra.mrb[0].mxu0 %v372
  %v427 = vpop.f32.mrb[0].mxu0
  %v428 = vadd.f32 0.0, %v427
  %v429 = vpop.f32.mrb[0].mxu0
  %v430 = vpop.f32.mrb[0].mxu0
  %v431 = vadd.f32 0.0, %v430
  %v432 = vpop.f32.mrb[0].mxu0
  %433 = vmatprep.mubr.bf16.mxu0 0
  %434 = vmatmul.mubr.bf16.gmra.mrb[0].mxu0 %v375
  %v435 = vpop.f32.mrb[0].mxu0
  %v436 = vadd.f32 0.0, %v435
  %v437 = vpop.f32.mrb[0].mxu0
  %v438 = vpop.f32.mrb[0].mxu0
  %v439 = vadd.f32 0.0, %v438
  %v440 = vpop.f32.mrb[0].mxu0
  %441 = vdwg.mxu0
  %v450 = vunpack.c.l.b16 %v189
  %v451 = vunpack.c.l.b16 %v190
  %v452 = vunpack.c.l.b16 %v191
  %v453 = vunpack.c.l.b16 %v192
  %v454 = vunpack.c.l.b16 %v193
  %v455 = vunpack.c.l.b16 %v194
  %v456 = vunpack.c.l.b16 %v195
  %v457 = vunpack.c.l.b16 %v196
  %v458 = vpack.c.b16 %v451, %v450
  %v459 = vpack.c.b16 %v453, %v452
  %v460 = vpack.c.b16 %v455, %v454
  %v461 = vpack.c.b16 %v457, %v456
  %v463 = vsel %vm364, %v458, 0
  %v466 = vsel %vm364, %v459, 0
  %v469 = vsel %vm364, %v460, 0
  %v472 = vsel %vm364, %v461, 0
  %474 = vmatprep.subr.bf16.mxu0 0
  %475 = vmatpush1.bf16.msra.mxu0 %v197
  %476 = vmatprep.subr.bf16.mxu0 0
  %477 = vmatpush1.bf16.msra.mxu0 %v198
  %478 = vmatprep.subr.bf16.mxu0 0
  %479 = vmatpush1.bf16.msra.mxu0 %v199
  %480 = vmatprep.subr.bf16.mxu0 0
  %481 = vmatpush1.bf16.msra.mxu0 %v200
  %482 = vmatprep.subr.bf16.mxu0 0
  %483 = vmatpush1.bf16.msra.mxu0 0
  %484 = vmatprep.subr.bf16.mxu0 0
  %485 = vmatpush1.bf16.msra.mxu0 0
  %486 = vmatprep.subr.bf16.mxu0 0
  %487 = vmatpush1.bf16.msra.mxu0 0
  %488 = vmatprep.subr.bf16.mxu0 0
  %489 = vmatpush1.bf16.msra.mxu0 0
  %490 = vmatprep.subr.bf16.mxu0 0
  %491 = vmatpush1.bf16.msra.mxu0 0
  %492 = vmatprep.subr.bf16.mxu0 0
  %493 = vmatpush1.bf16.msra.mxu0 0
  %494 = vmatprep.subr.bf16.mxu0 0
  %495 = vmatpush1.bf16.msra.mxu0 0
  %496 = vmatprep.subr.bf16.mxu0 0
  %497 = vmatpush1.bf16.msra.mxu0 0
  %498 = vmatprep.subr.bf16.mxu0 0
  %499 = vmatpush1.bf16.msra.mxu0 0
  %500 = vmatprep.subr.bf16.mxu0 0
  %501 = vmatpush1.bf16.msra.mxu0 0
  %502 = vmatprep.subr.bf16.mxu0 0
  %503 = vmatpush1.bf16.msra.mxu0 0
  %504 = vmatprep.subr.bf16.mxu0 0
  %505 = vmatpush1.bf16.msra.mxu0 0
  %506 = vmatprep.mubr.bf16.mxu0 0
  %507 = vmatmul.mubr.bf16.gmra.mrb[0].mxu0 %v463
  %v508 = vpop.f32.mrb[0].mxu0
  %v509 = vadd.f32 %v412, %v508
  %v510 = vpop.f32.mrb[0].mxu0
  %v511 = vpop.f32.mrb[0].mxu0
  %v512 = vadd.f32 %v415, %v511
  %v513 = vpop.f32.mrb[0].mxu0
  %514 = vmatprep.mubr.bf16.mxu0 0
  %515 = vmatmul.mubr.bf16.gmra.mrb[0].mxu0 %v466
  %v516 = vpop.f32.mrb[0].mxu0
  %v517 = vadd.f32 %v420, %v516
  %v518 = vpop.f32.mrb[0].mxu0
  %v519 = vpop.f32.mrb[0].mxu0
  %v520 = vadd.f32 %v423, %v519
  %v521 = vpop.f32.mrb[0].mxu0
  %522 = vmatprep.mubr.bf16.mxu0 0
  %523 = vmatmul.mubr.bf16.gmra.mrb[0].mxu0 %v469
  %v524 = vpop.f32.mrb[0].mxu0
  %v525 = vadd.f32 %v428, %v524
  %v526 = vpop.f32.mrb[0].mxu0
  %v527 = vpop.f32.mrb[0].mxu0
  %v528 = vadd.f32 %v431, %v527
  %v529 = vpop.f32.mrb[0].mxu0
  %530 = vmatprep.mubr.bf16.mxu0 0
  %531 = vmatmul.mubr.bf16.gmra.mrb[0].mxu0 %v472
  %v532 = vpop.f32.mrb[0].mxu0
  %v533 = vadd.f32 %v436, %v532
  %v534 = vpop.f32.mrb[0].mxu0
  %v535 = vpop.f32.mrb[0].mxu0
  %v536 = vadd.f32 %v439, %v535
  %v537 = vpop.f32.mrb[0].mxu0
  %538 = vdwg.mxu0
  %s539 = scalar_lea.vmem %s2, 128
  %v540 = vld [vmem:[%s539] sm:$0xf]
  %v541 = vld [vmem:[%s539 + $0x4] sm:$0xf]
  %v542 = vld [vmem:[%s539 + $0x8] sm:$0xf]
  %v543 = vld [vmem:[%s539 + $0xc] sm:$0xf]
  %v544 = vld [vmem:[%s539 + $0x10] sm:$0xf]
  %v545 = vld [vmem:[%s539 + $0x14] sm:$0xf]
  %v546 = vld [vmem:[%s539 + $0x18] sm:$0xf]
  %v547 = vld [vmem:[%s539 + $0x1c] sm:$0xf]
  %v548 = vld [vmem:[%s539 + $0x20] sm:$0xf]
  %v549 = vld [vmem:[%s539 + $0x24] sm:$0xf]
  %v550 = vld [vmem:[%s539 + $0x28] sm:$0xf]
  %v551 = vld [vmem:[%s539 + $0x2c] sm:$0xf]
  %v552 = vld [vmem:[%s539 + $0x30] sm:$0xf]
  %v553 = vld [vmem:[%s539 + $0x34] sm:$0xf]
  %v554 = vld [vmem:[%s539 + $0x38] sm:$0xf]
  %v555 = vld [vmem:[%s539 + $0x3c] sm:$0xf]
  %v572 = vunpack.c.l.b16 %v540
  %v573 = vunpack.c.l.b16 %v541
  %v574 = vunpack.c.l.b16 %v542
  %v575 = vunpack.c.l.b16 %v543
  %v576 = vunpack.c.l.b16 %v544
  %v577 = vunpack.c.l.b16 %v545
  %v578 = vunpack.c.l.b16 %v546
  %v579 = vunpack.c.l.b16 %v547
  %v580 = vunpack.c.l.b16 %v548
  %v581 = vunpack.c.l.b16 %v549
  %v582 = vunpack.c.l.b16 %v550
  %v583 = vunpack.c.l.b16 %v551
  %v584 = vunpack.c.l.b16 %v552
  %v585 = vunpack.c.l.b16 %v553
  %v586 = vunpack.c.l.b16 %v554
  %v587 = vunpack.c.l.b16 %v555
  %v588 = vpack.c.b16 %v573, %v572
  %v589 = vpack.c.b16 %v575, %v574
  %v590 = vpack.c.b16 %v577, %v576
  %v591 = vpack.c.b16 %v579, %v578
  %v592 = vpack.c.b16 %v581, %v580
  %v593 = vpack.c.b16 %v583, %v582
  %v594 = vpack.c.b16 %v585, %v584
  %v595 = vpack.c.b16 %v587, %v586
  %604 = vmatprep.subr.bf16.mxu0 0
  %605 = vmatpush1.bf16.msra.mxu0 %v588
  %606 = vmatprep.subr.bf16.mxu0 0
  %607 = vmatpush1.bf16.msra.mxu0 %v589
  %608 = vmatprep.subr.bf16.mxu0 0
  %609 = vmatpush1.bf16.msra.mxu0 %v590
  %610 = vmatprep.subr.bf16.mxu0 0
  %611 = vmatpush1.bf16.msra.mxu0 %v591
  %612 = vmatprep.subr.bf16.mxu0 0
  %613 = vmatpush1.bf16.msra.mxu0 %v592
  %614 = vmatprep.subr.bf16.mxu0 0
  %615 = vmatpush1.bf16.msra.mxu0 %v593
  %616 = vmatprep.subr.bf16.mxu0 0
  %617 = vmatpush1.bf16.msra.mxu0 %v594
  %618 = vmatprep.subr.bf16.mxu0 0
  %619 = vmatpush1.bf16.msra.mxu0 %v595
  %620 = vmatprep.subr.bf16.mxu0 0
  %621 = vmatpush1.bf16.msra.mxu0 0
  %622 = vmatprep.subr.bf16.mxu0 0
  %623 = vmatpush1.bf16.msra.mxu0 0
  %624 = vmatprep.subr.bf16.mxu0 0
  %625 = vmatpush1.bf16.msra.mxu0 0
  %626 = vmatprep.subr.bf16.mxu0 0
  %627 = vmatpush1.bf16.msra.mxu0 0
  %628 = vmatprep.subr.bf16.mxu0 0
  %629 = vmatpush1.bf16.msra.mxu0 0
  %630 = vmatprep.subr.bf16.mxu0 0
  %631 = vmatpush1.bf16.msra.mxu0 0
  %632 = vmatprep.subr.bf16.mxu0 0
  %633 = vmatpush1.bf16.msra.mxu0 0
  %634 = vmatprep.subr.bf16.mxu0 0
  %635 = vmatpush1.bf16.msra.mxu0 0
  %636 = vmatprep.mubr.bf16.mxu0 0
  %637 = vmatmul.mubr.bf16.gmra.mrb[0].mxu0 %v56
  %v638 = vpop.f32.mrb[0].mxu0
  %v639 = vadd.f32 0.0, %v638
  %v640 = vpop.f32.mrb[0].mxu0
  %v641 = vpop.f32.mrb[0].mxu0
  %v642 = vadd.f32 0.0, %v641
  %v643 = vpop.f32.mrb[0].mxu0
  %644 = vmatprep.mubr.bf16.mxu0 0
  %645 = vmatmul.mubr.bf16.gmra.mrb[0].mxu0 %v57
  %v646 = vpop.f32.mrb[0].mxu0
  %v647 = vadd.f32 0.0, %v646
  %v648 = vpop.f32.mrb[0].mxu0
  %v649 = vpop.f32.mrb[0].mxu0
  %v650 = vadd.f32 0.0, %v649
  %v651 = vpop.f32.mrb[0].mxu0
  %652 = vmatprep.mubr.bf16.mxu0 0
  %653 = vmatmul.mubr.bf16.gmra.mrb[0].mxu0 %v58
  %v654 = vpop.f32.mrb[0].mxu0
  %v655 = vadd.f32 0.0, %v654
  %v656 = vpop.f32.mrb[0].mxu0
  %v657 = vpop.f32.mrb[0].mxu0
  %v658 = vadd.f32 0.0, %v657
  %v659 = vpop.f32.mrb[0].mxu0
  %660 = vmatprep.mubr.bf16.mxu0 0
  %661 = vmatmul.mubr.bf16.gmra.mrb[0].mxu0 %v59
  %v662 = vpop.f32.mrb[0].mxu0
  %v663 = vadd.f32 0.0, %v662
  %v664 = vpop.f32.mrb[0].mxu0
  %v665 = vpop.f32.mrb[0].mxu0
  %v666 = vadd.f32 0.0, %v665
  %v667 = vpop.f32.mrb[0].mxu0
  %668 = vdwg.mxu0
  %s669 = scalar_lea.vmem %s1, 64
  %v670 = vld [vmem:[%s669] sm:$0xf]
  %v671 = vld [vmem:[%s669 + $0x4] sm:$0xf]
  %v672 = vld [vmem:[%s669 + $0x8] sm:$0xf]
  %v673 = vld [vmem:[%s669 + $0xc] sm:$0xf]
  %v674 = vld [vmem:[%s669 + $0x10] sm:$0xf]
  %v675 = vld [vmem:[%s669 + $0x14] sm:$0xf]
  %v676 = vld [vmem:[%s669 + $0x18] sm:$0xf]
  %v677 = vld [vmem:[%s669 + $0x1c] sm:$0xf]
  %v678 = vpack.c.bf16 %v642, %v639
  %v679 = vpack.c.bf16 %v650, %v647
  %v680 = vpack.c.bf16 %v658, %v655
  %v681 = vpack.c.bf16 %v666, %v663
  %v690 = vunpack.c.l.b16 %v670
  %v691 = vunpack.c.l.b16 %v671
  %v692 = vunpack.c.l.b16 %v672
  %v693 = vunpack.c.l.b16 %v673
  %v694 = vunpack.c.l.b16 %v674
  %v695 = vunpack.c.l.b16 %v675
  %v696 = vunpack.c.l.b16 %v676
  %v697 = vunpack.c.l.b16 %v677
  %v698 = vpack.c.b16 %v691, %v690
  %v699 = vpack.c.b16 %v693, %v692
  %v700 = vpack.c.b16 %v695, %v694
  %v701 = vpack.c.b16 %v697, %v696
  %v703 = vsel %vm364, %v698, 0
  %v706 = vsel %vm364, %v699, 0
  %v709 = vsel %vm364, %v700, 0
  %v712 = vsel %vm364, %v701, 0
  %714 = vmatprep.subr.bf16.mxu0 0
  %715 = vmatpush1.bf16.msra.mxu0 %v678
  %716 = vmatprep.subr.bf16.mxu0 0
  %717 = vmatpush1.bf16.msra.mxu0 %v679
  %718 = vmatprep.subr.bf16.mxu0 0
  %719 = vmatpush1.bf16.msra.mxu0 %v680
  %720 = vmatprep.subr.bf16.mxu0 0
  %721 = vmatpush1.bf16.msra.mxu0 %v681
  %722 = vmatprep.subr.bf16.mxu0 0
  %723 = vmatpush1.bf16.msra.mxu0 0
  %724 = vmatprep.subr.bf16.mxu0 0
  %725 = vmatpush1.bf16.msra.mxu0 0
  %726 = vmatprep.subr.bf16.mxu0 0
  %727 = vmatpush1.bf16.msra.mxu0 0
  %728 = vmatprep.subr.bf16.mxu0 0
  %729 = vmatpush1.bf16.msra.mxu0 0
  %730 = vmatprep.subr.bf16.mxu0 0
  %731 = vmatpush1.bf16.msra.mxu0 0
  %732 = vmatprep.subr.bf16.mxu0 0
  %733 = vmatpush1.bf16.msra.mxu0 0
  %734 = vmatprep.subr.bf16.mxu0 0
  %735 = vmatpush1.bf16.msra.mxu0 0
  %736 = vmatprep.subr.bf16.mxu0 0
  %737 = vmatpush1.bf16.msra.mxu0 0
  %738 = vmatprep.subr.bf16.mxu0 0
  %739 = vmatpush1.bf16.msra.mxu0 0
  %740 = vmatprep.subr.bf16.mxu0 0
  %741 = vmatpush1.bf16.msra.mxu0 0
  %742 = vmatprep.subr.bf16.mxu0 0
  %743 = vmatpush1.bf16.msra.mxu0 0
  %744 = vmatprep.subr.bf16.mxu0 0
  %745 = vmatpush1.bf16.msra.mxu0 0
  %746 = vmatprep.mubr.bf16.mxu0 0
  %747 = vmatmul.mubr.bf16.gmra.mrb[0].mxu0 %v703
  %v748 = vpop.f32.mrb[0].mxu0
  %v749 = vadd.f32 0.0, %v748
  %v750 = vpop.f32.mrb[0].mxu0
  %v751 = vpop.f32.mrb[0].mxu0
  %v752 = vadd.f32 0.0, %v751
  %v753 = vpop.f32.mrb[0].mxu0
  %754 = vmatprep.mubr.bf16.mxu0 0
  %755 = vmatmul.mubr.bf16.gmra.mrb[0].mxu0 %v706
  %v756 = vpop.f32.mrb[0].mxu0
  %v757 = vadd.f32 0.0, %v756
  %v758 = vpop.f32.mrb[0].mxu0
  %v759 = vpop.f32.mrb[0].mxu0
  %v760 = vadd.f32 0.0, %v759
  %v761 = vpop.f32.mrb[0].mxu0
  %762 = vmatprep.mubr.bf16.mxu0 0
  %763 = vmatmul.mubr.bf16.gmra.mrb[0].mxu0 %v709
  %v764 = vpop.f32.mrb[0].mxu0
  %v765 = vadd.f32 0.0, %v764
  %v766 = vpop.f32.mrb[0].mxu0
  %v767 = vpop.f32.mrb[0].mxu0
  %v768 = vadd.f32 0.0, %v767
  %v769 = vpop.f32.mrb[0].mxu0
  %770 = vmatprep.mubr.bf16.mxu0 0
  %771 = vmatmul.mubr.bf16.gmra.mrb[0].mxu0 %v712
  %v772 = vpop.f32.mrb[0].mxu0
  %v773 = vadd.f32 0.0, %v772
  %v774 = vpop.f32.mrb[0].mxu0
  %v775 = vpop.f32.mrb[0].mxu0
  %v776 = vadd.f32 0.0, %v775
  %v777 = vpop.f32.mrb[0].mxu0
  %778 = vdwg.mxu0
  %v779 = vadd.f32 %v509, %v749
  %v780 = vadd.f32 %v512, %v752
  %v781 = vadd.f32 %v517, %v757
  %v782 = vadd.f32 %v520, %v760
  %v783 = vadd.f32 %v525, %v765
  %v784 = vadd.f32 %v528, %v768
  %v785 = vadd.f32 %v533, %v773
  %v786 = vadd.f32 %v536, %v776
  %v787 = vld [vmem:[%s3] sm:$0xff]
  %v788 = vld [vmem:[%s3 + $0x8] sm:$0xff]
  %v789 = vld [vmem:[%s3 + $0x10] sm:$0xff]
  %v790 = vld [vmem:[%s3 + $0x18] sm:$0xff]
  %v791 = vld [vmem:[%s3 + $0x20] sm:$0xff]
  %v792 = vld [vmem:[%s3 + $0x28] sm:$0xff]
  %v793 = vld [vmem:[%s3 + $0x30] sm:$0xff]
  %v794 = vld [vmem:[%s3 + $0x38] sm:$0xff]
  %796 = vset.pattern.permute.xlu0 0
  %797 = vperm.xlu0 %796, %v787
  %v798 = vpop.permute.xlu0 %797
  %801 = vset.pattern.permute.xlu0 0
  %802 = vperm.xlu0 %801, %v788
  %v803 = vpop.permute.xlu0 %802
  %806 = vset.pattern.permute.xlu0 0
  %807 = vperm.xlu0 %806, %v789
  %v808 = vpop.permute.xlu0 %807
  %811 = vset.pattern.permute.xlu0 0
  %812 = vperm.xlu0 %811, %v790
  %v813 = vpop.permute.xlu0 %812
  %816 = vset.pattern.permute.xlu0 0
  %817 = vperm.xlu0 %816, %v791
  %v818 = vpop.permute.xlu0 %817
  %821 = vset.pattern.permute.xlu0 0
  %822 = vperm.xlu0 %821, %v792
  %v823 = vpop.permute.xlu0 %822
  %826 = vset.pattern.permute.xlu0 0
  %827 = vperm.xlu0 %826, %v793
  %v828 = vpop.permute.xlu0 %827
  %831 = vset.pattern.permute.xlu0 0
  %832 = vperm.xlu0 %831, %v794
  %v833 = vpop.permute.xlu0 %832
  %v835 = vadd.f32 %v779, %v798
  %v836 = vadd.f32 %v780, %v803
  %v837 = vadd.f32 %v781, %v808
  %v838 = vadd.f32 %v782, %v813
  %v839 = vadd.f32 %v783, %v818
  %v840 = vadd.f32 %v784, %v823
  %v841 = vadd.f32 %v785, %v828
  %v842 = vadd.f32 %v786, %v833
  %v843 = vmax.f32 %v835, 0.0
  %v844 = vmax.f32 %v836, 0.0
  %v845 = vmax.f32 %v837, 0.0
  %v846 = vmax.f32 %v838, 0.0
  %v847 = vmax.f32 %v839, 0.0
  %v848 = vmax.f32 %v840, 0.0
  %v849 = vmax.f32 %v841, 0.0
  %v850 = vmax.f32 %v842, 0.0
  %v851 = vpack.c.bf16 %v844, %v843
  %v852 = vpack.c.bf16 %v846, %v845
  %v853 = vpack.c.bf16 %v848, %v847
  %v854 = vpack.c.bf16 %v850, %v849
  %v855 = vld [vmem:[%s5] sm:$0xf]
  %v856 = vld [vmem:[%s5 + $0x4] sm:$0xf]
  %v857 = vld [vmem:[%s5 + $0x8] sm:$0xf]
  %v858 = vld [vmem:[%s5 + $0xc] sm:$0xf]
  %v859 = vld [vmem:[%s5 + $0x10] sm:$0xf]
  %v860 = vld [vmem:[%s5 + $0x14] sm:$0xf]
  %v861 = vld [vmem:[%s5 + $0x18] sm:$0xf]
  %v862 = vld [vmem:[%s5 + $0x1c] sm:$0xf]
  %v863 = vld [vmem:[%s5 + $0x20] sm:$0xf]
  %v864 = vld [vmem:[%s5 + $0x24] sm:$0xf]
  %v865 = vld [vmem:[%s5 + $0x28] sm:$0xf]
  %v866 = vld [vmem:[%s5 + $0x2c] sm:$0xf]
  %v867 = vld [vmem:[%s5 + $0x30] sm:$0xf]
  %v868 = vld [vmem:[%s5 + $0x34] sm:$0xf]
  %v869 = vld [vmem:[%s5 + $0x38] sm:$0xf]
  %v870 = vld [vmem:[%s5 + $0x3c] sm:$0xf]
  %v887 = vunpack.c.l.b16 %v855
  %v888 = vunpack.c.l.b16 %v856
  %v889 = vunpack.c.l.b16 %v857
  %v890 = vunpack.c.l.b16 %v858
  %v891 = vunpack.c.l.b16 %v859
  %v892 = vunpack.c.l.b16 %v860
  %v893 = vunpack.c.l.b16 %v861
  %v894 = vunpack.c.l.b16 %v862
  %v895 = vunpack.c.l.b16 %v863
  %v896 = vunpack.c.l.b16 %v864
  %v897 = vunpack.c.l.b16 %v865
  %v898 = vunpack.c.l.b16 %v866
  %v899 = vunpack.c.l.b16 %v867
  %v900 = vunpack.c.l.b16 %v868
  %v901 = vunpack.c.l.b16 %v869
  %v902 = vunpack.c.l.b16 %v870
  %v903 = vpack.c.b16 %v888, %v887
  %v904 = vpack.c.b16 %v890, %v889
  %v905 = vpack.c.b16 %v892, %v891
  %v906 = vpack.c.b16 %v894, %v893
  %v907 = vpack.c.b16 %v896, %v895
  %v908 = vpack.c.b16 %v898, %v897
  %v909 = vpack.c.b16 %v900, %v899
  %v910 = vpack.c.b16 %v902, %v901
  %919 = vmatprep.subr.bf16.mxu0 0
  %920 = vmatpush1.bf16.msra.mxu0 %v903
  %921 = vmatprep.subr.bf16.mxu0 0
  %922 = vmatpush1.bf16.msra.mxu0 %v904
  %923 = vmatprep.subr.bf16.mxu0 0
  %924 = vmatpush1.bf16.msra.mxu0 %v905
  %925 = vmatprep.subr.bf16.mxu0 0
  %926 = vmatpush1.bf16.msra.mxu0 %v906
  %927 = vmatprep.subr.bf16.mxu0 0
  %928 = vmatpush1.bf16.msra.mxu0 %v907
  %929 = vmatprep.subr.bf16.mxu0 0
  %930 = vmatpush1.bf16.msra.mxu0 %v908
  %931 = vmatprep.subr.bf16.mxu0 0
  %932 = vmatpush1.bf16.msra.mxu0 %v909
  %933 = vmatprep.subr.bf16.mxu0 0
  %934 = vmatpush1.bf16.msra.mxu0 %v910
  %935 = vmatprep.subr.bf16.mxu0 0
  %936 = vmatpush1.bf16.msra.mxu0 0
  %937 = vmatprep.subr.bf16.mxu0 0
  %938 = vmatpush1.bf16.msra.mxu0 0
  %939 = vmatprep.subr.bf16.mxu0 0
  %940 = vmatpush1.bf16.msra.mxu0 0
  %941 = vmatprep.subr.bf16.mxu0 0
  %942 = vmatpush1.bf16.msra.mxu0 0
  %943 = vmatprep.subr.bf16.mxu0 0
  %944 = vmatpush1.bf16.msra.mxu0 0
  %945 = vmatprep.subr.bf16.mxu0 0
  %946 = vmatpush1.bf16.msra.mxu0 0
  %947 = vmatprep.subr.bf16.mxu0 0
  %948 = vmatpush1.bf16.msra.mxu0 0
  %949 = vmatprep.subr.bf16.mxu0 0
  %950 = vmatpush1.bf16.msra.mxu0 0
  %951 = vmatprep.mubr.bf16.mxu0 0
  %952 = vmatmul.mubr.bf16.gmra.mrb[0].mxu0 %v851
  %v953 = vpop.f32.mrb[0].mxu0
  %v954 = vadd.f32 0.0, %v953
  %v955 = vpop.f32.mrb[0].mxu0
  %v956 = vpop.f32.mrb[0].mxu0
  %v957 = vadd.f32 0.0, %v956
  %v958 = vpop.f32.mrb[0].mxu0
  %959 = vmatprep.mubr.bf16.mxu0 0
  %960 = vmatmul.mubr.bf16.gmra.mrb[0].mxu0 %v852
  %v961 = vpop.f32.mrb[0].mxu0
  %v962 = vadd.f32 0.0, %v961
  %v963 = vpop.f32.mrb[0].mxu0
  %v964 = vpop.f32.mrb[0].mxu0
  %v965 = vadd.f32 0.0, %v964
  %v966 = vpop.f32.mrb[0].mxu0
  %967 = vmatprep.mubr.bf16.mxu0 0
  %968 = vmatmul.mubr.bf16.gmra.mrb[0].mxu0 %v853
  %v969 = vpop.f32.mrb[0].mxu0
  %v970 = vadd.f32 0.0, %v969
  %v971 = vpop.f32.mrb[0].mxu0
  %v972 = vpop.f32.mrb[0].mxu0
  %v973 = vadd.f32 0.0, %v972
  %v974 = vpop.f32.mrb[0].mxu0
  %975 = vmatprep.mubr.bf16.mxu0 0
  %976 = vmatmul.mubr.bf16.gmra.mrb[0].mxu0 %v854
  %v977 = vpop.f32.mrb[0].mxu0
  %v978 = vadd.f32 0.0, %v977
  %v979 = vpop.f32.mrb[0].mxu0
  %v980 = vpop.f32.mrb[0].mxu0
  %v981 = vadd.f32 0.0, %v980
  %v982 = vpop.f32.mrb[0].mxu0
  %983 = vdwg.mxu0
  %v984 = vld [vmem:[%s4] sm:$0xf]
  %v985 = vld [vmem:[%s4 + $0x4] sm:$0xf]
  %v986 = vld [vmem:[%s4 + $0x8] sm:$0xf]
  %v987 = vld [vmem:[%s4 + $0xc] sm:$0xf]
  %v988 = vld [vmem:[%s4 + $0x10] sm:$0xf]
  %v989 = vld [vmem:[%s4 + $0x14] sm:$0xf]
  %v990 = vld [vmem:[%s4 + $0x18] sm:$0xf]
  %v991 = vld [vmem:[%s4 + $0x1c] sm:$0xf]
  %v992 = vpack.c.bf16 %v957, %v954
  %v993 = vpack.c.bf16 %v965, %v962
  %v994 = vpack.c.bf16 %v973, %v970
  %v995 = vpack.c.bf16 %v981, %v978
  %s996 = scalar_lea.vmem %s5, 64
  %v997 = vld [vmem:[%s996] sm:$0xf]
  %v998 = vld [vmem:[%s996 + $0x4] sm:$0xf]
  %v999 = vld [vmem:[%s996 + $0x8] sm:$0xf]
  %v1000 = vld [vmem:[%s996 + $0xc] sm:$0xf]
  %v1001 = vld [vmem:[%s996 + $0x10] sm:$0xf]
  %v1002 = vld [vmem:[%s996 + $0x14] sm:$0xf]
  %v1003 = vld [vmem:[%s996 + $0x18] sm:$0xf]
  %v1004 = vld [vmem:[%s996 + $0x1c] sm:$0xf]
  %v1005 = vld [vmem:[%s996 + $0x20] sm:$0xf]
  %v1006 = vld [vmem:[%s996 + $0x24] sm:$0xf]
  %v1007 = vld [vmem:[%s996 + $0x28] sm:$0xf]
  %v1008 = vld [vmem:[%s996 + $0x2c] sm:$0xf]
  %v1009 = vld [vmem:[%s996 + $0x30] sm:$0xf]
  %v1010 = vld [vmem:[%s996 + $0x34] sm:$0xf]
  %v1011 = vld [vmem:[%s996 + $0x38] sm:$0xf]
  %v1012 = vld [vmem:[%s996 + $0x3c] sm:$0xf]
  %v1029 = vunpack.c.l.b16 %v997
  %v1030 = vunpack.c.l.b16 %v998
  %v1031 = vunpack.c.l.b16 %v999
  %v1032 = vunpack.c.l.b16 %v1000
  %v1033 = vunpack.c.l.b16 %v1001
  %v1034 = vunpack.c.l.b16 %v1002
  %v1035 = vunpack.c.l.b16 %v1003
  %v1036 = vunpack.c.l.b16 %v1004
  %v1037 = vunpack.c.l.b16 %v1005
  %v1038 = vunpack.c.l.b16 %v1006
  %v1039 = vunpack.c.l.b16 %v1007
  %v1040 = vunpack.c.l.b16 %v1008
  %v1041 = vunpack.c.l.b16 %v1009
  %v1042 = vunpack.c.l.b16 %v1010
  %v1043 = vunpack.c.l.b16 %v1011
  %v1044 = vunpack.c.l.b16 %v1012
  %v1045 = vpack.c.b16 %v1030, %v1029
  %v1046 = vpack.c.b16 %v1032, %v1031
  %v1047 = vpack.c.b16 %v1034, %v1033
  %v1048 = vpack.c.b16 %v1036, %v1035
  %v1049 = vpack.c.b16 %v1038, %v1037
  %v1050 = vpack.c.b16 %v1040, %v1039
  %v1051 = vpack.c.b16 %v1042, %v1041
  %v1052 = vpack.c.b16 %v1044, %v1043
  %1061 = vmatprep.subr.bf16.mxu0 0
  %1062 = vmatpush1.bf16.msra.mxu0 %v1045
  %1063 = vmatprep.subr.bf16.mxu0 0
  %1064 = vmatpush1.bf16.msra.mxu0 %v1046
  %1065 = vmatprep.subr.bf16.mxu0 0
  %1066 = vmatpush1.bf16.msra.mxu0 %v1047
  %1067 = vmatprep.subr.bf16.mxu0 0
  %1068 = vmatpush1.bf16.msra.mxu0 %v1048
  %1069 = vmatprep.subr.bf16.mxu0 0
  %1070 = vmatpush1.bf16.msra.mxu0 %v1049
  %1071 = vmatprep.subr.bf16.mxu0 0
  %1072 = vmatpush1.bf16.msra.mxu0 %v1050
  %1073 = vmatprep.subr.bf16.mxu0 0
  %1074 = vmatpush1.bf16.msra.mxu0 %v1051
  %1075 = vmatprep.subr.bf16.mxu0 0
  %1076 = vmatpush1.bf16.msra.mxu0 %v1052
  %1077 = vmatprep.subr.bf16.mxu0 0
  %1078 = vmatpush1.bf16.msra.mxu0 0
  %1079 = vmatprep.subr.bf16.mxu0 0
  %1080 = vmatpush1.bf16.msra.mxu0 0
  %1081 = vmatprep.subr.bf16.mxu0 0
  %1082 = vmatpush1.bf16.msra.mxu0 0
  %1083 = vmatprep.subr.bf16.mxu0 0
  %1084 = vmatpush1.bf16.msra.mxu0 0
  %1085 = vmatprep.subr.bf16.mxu0 0
  %1086 = vmatpush1.bf16.msra.mxu0 0
  %1087 = vmatprep.subr.bf16.mxu0 0
  %1088 = vmatpush1.bf16.msra.mxu0 0
  %1089 = vmatprep.subr.bf16.mxu0 0
  %1090 = vmatpush1.bf16.msra.mxu0 0
  %1091 = vmatprep.subr.bf16.mxu0 0
  %1092 = vmatpush1.bf16.msra.mxu0 0
  %1093 = vmatprep.mubr.bf16.mxu0 0
  %1094 = vmatmul.mubr.bf16.gmra.mrb[0].mxu0 %v851
  %v1095 = vpop.f32.mrb[0].mxu0
  %v1096 = vadd.f32 0.0, %v1095
  %v1097 = vpop.f32.mrb[0].mxu0
  %v1098 = vpop.f32.mrb[0].mxu0
  %v1099 = vadd.f32 0.0, %v1098
  %v1100 = vpop.f32.mrb[0].mxu0
  %1101 = vmatprep.mubr.bf16.mxu0 0
  %1102 = vmatmul.mubr.bf16.gmra.mrb[0].mxu0 %v852
  %v1103 = vpop.f32.mrb[0].mxu0
  %v1104 = vadd.f32 0.0, %v1103
  %v1105 = vpop.f32.mrb[0].mxu0
  %v1106 = vpop.f32.mrb[0].mxu0
  %v1107 = vadd.f32 0.0, %v1106
  %v1108 = vpop.f32.mrb[0].mxu0
  %1109 = vmatprep.mubr.bf16.mxu0 0
  %1110 = vmatmul.mubr.bf16.gmra.mrb[0].mxu0 %v853
  %v1111 = vpop.f32.mrb[0].mxu0
  %v1112 = vadd.f32 0.0, %v1111
  %v1113 = vpop.f32.mrb[0].mxu0
  %v1114 = vpop.f32.mrb[0].mxu0
  %v1115 = vadd.f32 0.0, %v1114
  %v1116 = vpop.f32.mrb[0].mxu0
  %1117 = vmatprep.mubr.bf16.mxu0 0
  %1118 = vmatmul.mubr.bf16.gmra.mrb[0].mxu0 %v854
  %v1119 = vpop.f32.mrb[0].mxu0
  %v1120 = vadd.f32 0.0, %v1119
  %v1121 = vpop.f32.mrb[0].mxu0
  %v1122 = vpop.f32.mrb[0].mxu0
  %v1123 = vadd.f32 0.0, %v1122
  %v1124 = vpop.f32.mrb[0].mxu0
  %1125 = vdwg.mxu0
  %s1126 = scalar_lea.vmem %s4, 32
  %v1127 = vld [vmem:[%s1126] sm:$0xf]
  %v1128 = vld [vmem:[%s1126 + $0x4] sm:$0xf]
  %v1129 = vld [vmem:[%s1126 + $0x8] sm:$0xf]
  %v1130 = vld [vmem:[%s1126 + $0xc] sm:$0xf]
  %v1131 = vld [vmem:[%s1126 + $0x10] sm:$0xf]
  %v1132 = vld [vmem:[%s1126 + $0x14] sm:$0xf]
  %v1133 = vld [vmem:[%s1126 + $0x18] sm:$0xf]
  %v1134 = vld [vmem:[%s1126 + $0x1c] sm:$0xf]
  %v1135 = vpack.c.bf16 %v1099, %v1096
  %v1136 = vpack.c.bf16 %v1107, %v1104
  %v1137 = vpack.c.bf16 %v1115, %v1112
  %v1138 = vpack.c.bf16 %v1123, %v1120
  %v1147 = vunpack.c.l.b16 %v1127
  %v1148 = vunpack.c.l.b16 %v1128
  %v1149 = vunpack.c.l.b16 %v1129
  %v1150 = vunpack.c.l.b16 %v1130
  %v1151 = vunpack.c.l.b16 %v1131
  %v1152 = vunpack.c.l.b16 %v1132
  %v1153 = vunpack.c.l.b16 %v1133
  %v1154 = vunpack.c.l.b16 %v1134
  %v1155 = vpack.c.b16 %v1148, %v1147
  %v1156 = vpack.c.b16 %v1150, %v1149
  %v1157 = vpack.c.b16 %v1152, %v1151
  %v1158 = vpack.c.b16 %v1154, %v1153
  %v1160 = vsel %vm364, %v1155, 0
  %v1163 = vsel %vm364, %v1156, 0
  %v1166 = vsel %vm364, %v1157, 0
  %v1169 = vsel %vm364, %v1158, 0
  %1171 = vmatprep.subr.bf16.mxu0 0
  %1172 = vmatpush1.bf16.msra.mxu0 %v1135
  %1173 = vmatprep.subr.bf16.mxu0 0
  %1174 = vmatpush1.bf16.msra.mxu0 %v1136
  %1175 = vmatprep.subr.bf16.mxu0 0
  %1176 = vmatpush1.bf16.msra.mxu0 %v1137
  %1177 = vmatprep.subr.bf16.mxu0 0
  %1178 = vmatpush1.bf16.msra.mxu0 %v1138
  %1179 = vmatprep.subr.bf16.mxu0 0
  %1180 = vmatpush1.bf16.msra.mxu0 0
  %1181 = vmatprep.subr.bf16.mxu0 0
  %1182 = vmatpush1.bf16.msra.mxu0 0
  %1183 = vmatprep.subr.bf16.mxu0 0
  %1184 = vmatpush1.bf16.msra.mxu0 0
  %1185 = vmatprep.subr.bf16.mxu0 0
  %1186 = vmatpush1.bf16.msra.mxu0 0
  %1187 = vmatprep.subr.bf16.mxu0 0
  %1188 = vmatpush1.bf16.msra.mxu0 0
  %1189 = vmatprep.subr.bf16.mxu0 0
  %1190 = vmatpush1.bf16.msra.mxu0 0
  %1191 = vmatprep.subr.bf16.mxu0 0
  %1192 = vmatpush1.bf16.msra.mxu0 0
  %1193 = vmatprep.subr.bf16.mxu0 0
  %1194 = vmatpush1.bf16.msra.mxu0 0
  %1195 = vmatprep.subr.bf16.mxu0 0
  %1196 = vmatpush1.bf16.msra.mxu0 0
  %1197 = vmatprep.subr.bf16.mxu0 0
  %1198 = vmatpush1.bf16.msra.mxu0 0
  %1199 = vmatprep.subr.bf16.mxu0 0
  %1200 = vmatpush1.bf16.msra.mxu0 0
  %1201 = vmatprep.subr.bf16.mxu0 0
  %1202 = vmatpush1.bf16.msra.mxu0 0
  %1203 = vmatprep.mubr.bf16.mxu0 0
  %1204 = vmatmul.mubr.bf16.gmra.mrb[0].mxu0 %v1160
  %v1205 = vpop.f32.mrb[0].mxu0
  %v1206 = vadd.f32 0.0, %v1205
  %v1207 = vpop.f32.mrb[0].mxu0
  %v1208 = vpop.f32.mrb[0].mxu0
  %v1209 = vadd.f32 0.0, %v1208
  %v1210 = vpop.f32.mrb[0].mxu0
  %1211 = vmatprep.mubr.bf16.mxu0 0
  %1212 = vmatmul.mubr.bf16.gmra.mrb[0].mxu0 %v1163
  %v1213 = vpop.f32.mrb[0].mxu0
  %v1214 = vadd.f32 0.0, %v1213
  %v1215 = vpop.f32.mrb[0].mxu0
  %v1216 = vpop.f32.mrb[0].mxu0
  %v1217 = vadd.f32 0.0, %v1216
  %v1218 = vpop.f32.mrb[0].mxu0
  %1219 = vmatprep.mubr.bf16.mxu0 0
  %1220 = vmatmul.mubr.bf16.gmra.mrb[0].mxu0 %v1166
  %v1221 = vpop.f32.mrb[0].mxu0
  %v1222 = vadd.f32 0.0, %v1221
  %v1223 = vpop.f32.mrb[0].mxu0
  %v1224 = vpop.f32.mrb[0].mxu0
  %v1225 = vadd.f32 0.0, %v1224
  %v1226 = vpop.f32.mrb[0].mxu0
  %1227 = vmatprep.mubr.bf16.mxu0 0
  %1228 = vmatmul.mubr.bf16.gmra.mrb[0].mxu0 %v1169
  %v1229 = vpop.f32.mrb[0].mxu0
  %v1230 = vadd.f32 0.0, %v1229
  %v1231 = vpop.f32.mrb[0].mxu0
  %v1232 = vpop.f32.mrb[0].mxu0
  %v1233 = vadd.f32 0.0, %v1232
  %v1234 = vpop.f32.mrb[0].mxu0
  %1235 = vdwg.mxu0
  %v1244 = vunpack.c.l.b16 %v984
  %v1245 = vunpack.c.l.b16 %v985
  %v1246 = vunpack.c.l.b16 %v986
  %v1247 = vunpack.c.l.b16 %v987
  %v1248 = vunpack.c.l.b16 %v988
  %v1249 = vunpack.c.l.b16 %v989
  %v1250 = vunpack.c.l.b16 %v990
  %v1251 = vunpack.c.l.b16 %v991
  %v1252 = vpack.c.b16 %v1245, %v1244
  %v1253 = vpack.c.b16 %v1247, %v1246
  %v1254 = vpack.c.b16 %v1249, %v1248
  %v1255 = vpack.c.b16 %v1251, %v1250
  %v1257 = vsel %vm364, %v1252, 0
  %v1260 = vsel %vm364, %v1253, 0
  %v1263 = vsel %vm364, %v1254, 0
  %v1266 = vsel %vm364, %v1255, 0
  %1268 = vmatprep.subr.bf16.mxu0 0
  %1269 = vmatpush1.bf16.msra.mxu0 %v992
  %1270 = vmatprep.subr.bf16.mxu0 0
  %1271 = vmatpush1.bf16.msra.mxu0 %v993
  %1272 = vmatprep.subr.bf16.mxu0 0
  %1273 = vmatpush1.bf16.msra.mxu0 %v994
  %1274 = vmatprep.subr.bf16.mxu0 0
  %1275 = vmatpush1.bf16.msra.mxu0 %v995
  %1276 = vmatprep.subr.bf16.mxu0 0
  %1277 = vmatpush1.bf16.msra.mxu0 0
  %1278 = vmatprep.subr.bf16.mxu0 0
  %1279 = vmatpush1.bf16.msra.mxu0 0
  %1280 = vmatprep.subr.bf16.mxu0 0
  %1281 = vmatpush1.bf16.msra.mxu0 0
  %1282 = vmatprep.subr.bf16.mxu0 0
  %1283 = vmatpush1.bf16.msra.mxu0 0
  %1284 = vmatprep.subr.bf16.mxu0 0
  %1285 = vmatpush1.bf16.msra.mxu0 0
  %1286 = vmatprep.subr.bf16.mxu0 0
  %1287 = vmatpush1.bf16.msra.mxu0 0
  %1288 = vmatprep.subr.bf16.mxu0 0
  %1289 = vmatpush1.bf16.msra.mxu0 0
  %1290 = vmatprep.subr.bf16.mxu0 0
  %1291 = vmatpush1.bf16.msra.mxu0 0
  %1292 = vmatprep.subr.bf16.mxu0 0
  %1293 = vmatpush1.bf16.msra.mxu0 0
  %1294 = vmatprep.subr.bf16.mxu0 0
  %1295 = vmatpush1.bf16.msra.mxu0 0
  %1296 = vmatprep.subr.bf16.mxu0 0
  %1297 = vmatpush1.bf16.msra.mxu0 0
  %1298 = vmatprep.subr.bf16.mxu0 0
  %1299 = vmatpush1.bf16.msra.mxu0 0
  %1300 = vmatprep.mubr.bf16.mxu0 0
  %1301 = vmatmul.mubr.bf16.gmra.mrb[0].mxu0 %v1257
  %v1302 = vpop.f32.mrb[0].mxu0
  %v1303 = vadd.f32 %v1206, %v1302
  %v1304 = vpop.f32.mrb[0].mxu0
  %v1305 = vpop.f32.mrb[0].mxu0
  %v1306 = vadd.f32 %v1209, %v1305
  %v1307 = vpop.f32.mrb[0].mxu0
  %1308 = vmatprep.mubr.bf16.mxu0 0
  %1309 = vmatmul.mubr.bf16.gmra.mrb[0].mxu0 %v1260
  %v1310 = vpop.f32.mrb[0].mxu0
  %v1311 = vadd.f32 %v1214, %v1310
  %v1312 = vpop.f32.mrb[0].mxu0
  %v1313 = vpop.f32.mrb[0].mxu0
  %v1314 = vadd.f32 %v1217, %v1313
  %v1315 = vpop.f32.mrb[0].mxu0
  %1316 = vmatprep.mubr.bf16.mxu0 0
  %1317 = vmatmul.mubr.bf16.gmra.mrb[0].mxu0 %v1263
  %v1318 = vpop.f32.mrb[0].mxu0
  %v1319 = vadd.f32 %v1222, %v1318
  %v1320 = vpop.f32.mrb[0].mxu0
  %v1321 = vpop.f32.mrb[0].mxu0
  %v1322 = vadd.f32 %v1225, %v1321
  %v1323 = vpop.f32.mrb[0].mxu0
  %1324 = vmatprep.mubr.bf16.mxu0 0
  %1325 = vmatmul.mubr.bf16.gmra.mrb[0].mxu0 %v1266
  %v1326 = vpop.f32.mrb[0].mxu0
  %v1327 = vadd.f32 %v1230, %v1326
  %v1328 = vpop.f32.mrb[0].mxu0
  %v1329 = vpop.f32.mrb[0].mxu0
  %v1330 = vadd.f32 %v1233, %v1329
  %v1331 = vpop.f32.mrb[0].mxu0
  %1332 = vdwg.mxu0
  %s1333 = scalar_lea.vmem %s5, 128
  %v1334 = vld [vmem:[%s1333] sm:$0xf]
  %v1335 = vld [vmem:[%s1333 + $0x4] sm:$0xf]
  %v1336 = vld [vmem:[%s1333 + $0x8] sm:$0xf]
  %v1337 = vld [vmem:[%s1333 + $0xc] sm:$0xf]
  %v1338 = vld [vmem:[%s1333 + $0x10] sm:$0xf]
  %v1339 = vld [vmem:[%s1333 + $0x14] sm:$0xf]
  %v1340 = vld [vmem:[%s1333 + $0x18] sm:$0xf]
  %v1341 = vld [vmem:[%s1333 + $0x1c] sm:$0xf]
  %v1342 = vld [vmem:[%s1333 + $0x20] sm:$0xf]
  %v1343 = vld [vmem:[%s1333 + $0x24] sm:$0xf]
  %v1344 = vld [vmem:[%s1333 + $0x28] sm:$0xf]
  %v1345 = vld [vmem:[%s1333 + $0x2c] sm:$0xf]
  %v1346 = vld [vmem:[%s1333 + $0x30] sm:$0xf]
  %v1347 = vld [vmem:[%s1333 + $0x34] sm:$0xf]
  %v1348 = vld [vmem:[%s1333 + $0x38] sm:$0xf]
  %v1349 = vld [vmem:[%s1333 + $0x3c] sm:$0xf]
  %v1366 = vunpack.c.l.b16 %v1334
  %v1367 = vunpack.c.l.b16 %v1335
  %v1368 = vunpack.c.l.b16 %v1336
  %v1369 = vunpack.c.l.b16 %v1337
  %v1370 = vunpack.c.l.b16 %v1338
  %v1371 = vunpack.c.l.b16 %v1339
  %v1372 = vunpack.c.l.b16 %v1340
  %v1373 = vunpack.c.l.b16 %v1341
  %v1374 = vunpack.c.l.b16 %v1342
  %v1375 = vunpack.c.l.b16 %v1343
  %v1376 = vunpack.c.l.b16 %v1344
  %v1377 = vunpack.c.l.b16 %v1345
  %v1378 = vunpack.c.l.b16 %v1346
  %v1379 = vunpack.c.l.b16 %v1347
  %v1380 = vunpack.c.l.b16 %v1348
  %v1381 = vunpack.c.l.b16 %v1349
  %v1382 = vpack.c.b16 %v1367, %v1366
  %v1383 = vpack.c.b16 %v1369, %v1368
  %v1384 = vpack.c.b16 %v1371, %v1370
  %v1385 = vpack.c.b16 %v1373, %v1372
  %v1386 = vpack.c.b16 %v1375, %v1374
  %v1387 = vpack.c.b16 %v1377, %v1376
  %v1388 = vpack.c.b16 %v1379, %v1378
  %v1389 = vpack.c.b16 %v1381, %v1380
  %1398 = vmatprep.subr.bf16.mxu0 0
  %1399 = vmatpush1.bf16.msra.mxu0 %v1382
  %1400 = vmatprep.subr.bf16.mxu0 0
  %1401 = vmatpush1.bf16.msra.mxu0 %v1383
  %1402 = vmatprep.subr.bf16.mxu0 0
  %1403 = vmatpush1.bf16.msra.mxu0 %v1384
  %1404 = vmatprep.subr.bf16.mxu0 0
  %1405 = vmatpush1.bf16.msra.mxu0 %v1385
  %1406 = vmatprep.subr.bf16.mxu0 0
  %1407 = vmatpush1.bf16.msra.mxu0 %v1386
  %1408 = vmatprep.subr.bf16.mxu0 0
  %1409 = vmatpush1.bf16.msra.mxu0 %v1387
  %1410 = vmatprep.subr.bf16.mxu0 0
  %1411 = vmatpush1.bf16.msra.mxu0 %v1388
  %1412 = vmatprep.subr.bf16.mxu0 0
  %1413 = vmatpush1.bf16.msra.mxu0 %v1389
  %1414 = vmatprep.subr.bf16.mxu0 0
  %1415 = vmatpush1.bf16.msra.mxu0 0
  %1416 = vmatprep.subr.bf16.mxu0 0
  %1417 = vmatpush1.bf16.msra.mxu0 0
  %1418 = vmatprep.subr.bf16.mxu0 0
  %1419 = vmatpush1.bf16.msra.mxu0 0
  %1420 = vmatprep.subr.bf16.mxu0 0
  %1421 = vmatpush1.bf16.msra.mxu0 0
  %1422 = vmatprep.subr.bf16.mxu0 0
  %1423 = vmatpush1.bf16.msra.mxu0 0
  %1424 = vmatprep.subr.bf16.mxu0 0
  %1425 = vmatpush1.bf16.msra.mxu0 0
  %1426 = vmatprep.subr.bf16.mxu0 0
  %1427 = vmatpush1.bf16.msra.mxu0 0
  %1428 = vmatprep.subr.bf16.mxu0 0
  %1429 = vmatpush1.bf16.msra.mxu0 0
  %1430 = vmatprep.mubr.bf16.mxu0 0
  %1431 = vmatmul.mubr.bf16.gmra.mrb[0].mxu0 %v851
  %v1432 = vpop.f32.mrb[0].mxu0
  %v1433 = vadd.f32 0.0, %v1432
  %v1434 = vpop.f32.mrb[0].mxu0
  %v1435 = vpop.f32.mrb[0].mxu0
  %v1436 = vadd.f32 0.0, %v1435
  %v1437 = vpop.f32.mrb[0].mxu0
  %1438 = vmatprep.mubr.bf16.mxu0 0
  %1439 = vmatmul.mubr.bf16.gmra.mrb[0].mxu0 %v852
  %v1440 = vpop.f32.mrb[0].mxu0
  %v1441 = vadd.f32 0.0, %v1440
  %v1442 = vpop.f32.mrb[0].mxu0
  %v1443 = vpop.f32.mrb[0].mxu0
  %v1444 = vadd.f32 0.0, %v1443
  %v1445 = vpop.f32.mrb[0].mxu0
  %1446 = vmatprep.mubr.bf16.mxu0 0
  %1447 = vmatmul.mubr.bf16.gmra.mrb[0].mxu0 %v853
  %v1448 = vpop.f32.mrb[0].mxu0
  %v1449 = vadd.f32 0.0, %v1448
  %v1450 = vpop.f32.mrb[0].mxu0
  %v1451 = vpop.f32.mrb[0].mxu0
  %v1452 = vadd.f32 0.0, %v1451
  %v1453 = vpop.f32.mrb[0].mxu0
  %1454 = vmatprep.mubr.bf16.mxu0 0
  %1455 = vmatmul.mubr.bf16.gmra.mrb[0].mxu0 %v854
  %v1456 = vpop.f32.mrb[0].mxu0
  %v1457 = vadd.f32 0.0, %v1456
  %v1458 = vpop.f32.mrb[0].mxu0
  %v1459 = vpop.f32.mrb[0].mxu0
  %v1460 = vadd.f32 0.0, %v1459
  %v1461 = vpop.f32.mrb[0].mxu0
  %1462 = vdwg.mxu0
  %s1463 = scalar_lea.vmem %s4, 64
  %v1464 = vld [vmem:[%s1463] sm:$0xf]
  %v1465 = vld [vmem:[%s1463 + $0x4] sm:$0xf]
  %v1466 = vld [vmem:[%s1463 + $0x8] sm:$0xf]
  %v1467 = vld [vmem:[%s1463 + $0xc] sm:$0xf]
  %v1468 = vld [vmem:[%s1463 + $0x10] sm:$0xf]
  %v1469 = vld [vmem:[%s1463 + $0x14] sm:$0xf]
  %v1470 = vld [vmem:[%s1463 + $0x18] sm:$0xf]
  %v1471 = vld [vmem:[%s1463 + $0x1c] sm:$0xf]
  %v1472 = vpack.c.bf16 %v1436, %v1433
  %v1473 = vpack.c.bf16 %v1444, %v1441
  %v1474 = vpack.c.bf16 %v1452, %v1449
  %v1475 = vpack.c.bf16 %v1460, %v1457
  %v1484 = vunpack.c.l.b16 %v1464
  %v1485 = vunpack.c.l.b16 %v1465
  %v1486 = vunpack.c.l.b16 %v1466
  %v1487 = vunpack.c.l.b16 %v1467
  %v1488 = vunpack.c.l.b16 %v1468
  %v1489 = vunpack.c.l.b16 %v1469
  %v1490 = vunpack.c.l.b16 %v1470
  %v1491 = vunpack.c.l.b16 %v1471
  %v1492 = vpack.c.b16 %v1485, %v1484
  %v1493 = vpack.c.b16 %v1487, %v1486
  %v1494 = vpack.c.b16 %v1489, %v1488
  %v1495 = vpack.c.b16 %v1491, %v1490
  %v1497 = vsel %vm364, %v1492, 0
  %v1500 = vsel %vm364, %v1493, 0
  %v1503 = vsel %vm364, %v1494, 0
  %v1506 = vsel %vm364, %v1495, 0
  %1508 = vmatprep.subr.bf16.mxu0 0
  %1509 = vmatpush1.bf16.msra.mxu0 %v1472
  %1510 = vmatprep.subr.bf16.mxu0 0
  %1511 = vmatpush1.bf16.msra.mxu0 %v1473
  %1512 = vmatprep.subr.bf16.mxu0 0
  %1513 = vmatpush1.bf16.msra.mxu0 %v1474
  %1514 = vmatprep.subr.bf16.mxu0 0
  %1515 = vmatpush1.bf16.msra.mxu0 %v1475
  %1516 = vmatprep.subr.bf16.mxu0 0
  %1517 = vmatpush1.bf16.msra.mxu0 0
  %1518 = vmatprep.subr.bf16.mxu0 0
  %1519 = vmatpush1.bf16.msra.mxu0 0
  %1520 = vmatprep.subr.bf16.mxu0 0
  %1521 = vmatpush1.bf16.msra.mxu0 0
  %1522 = vmatprep.subr.bf16.mxu0 0
  %1523 = vmatpush1.bf16.msra.mxu0 0
  %1524 = vmatprep.subr.bf16.mxu0 0
  %1525 = vmatpush1.bf16.msra.mxu0 0
  %1526 = vmatprep.subr.bf16.mxu0 0
  %1527 = vmatpush1.bf16.msra.mxu0 0
  %1528 = vmatprep.subr.bf16.mxu0 0
  %1529 = vmatpush1.bf16.msra.mxu0 0
  %1530 = vmatprep.subr.bf16.mxu0 0
  %1531 = vmatpush1.bf16.msra.mxu0 0
  %1532 = vmatprep.subr.bf16.mxu0 0
  %1533 = vmatpush1.bf16.msra.mxu0 0
  %1534 = vmatprep.subr.bf16.mxu0 0
  %1535 = vmatpush1.bf16.msra.mxu0 0
  %1536 = vmatprep.subr.bf16.mxu0 0
  %1537 = vmatpush1.bf16.msra.mxu0 0
  %1538 = vmatprep.subr.bf16.mxu0 0
  %1539 = vmatpush1.bf16.msra.mxu0 0
  %1540 = vmatprep.mubr.bf16.mxu0 0
  %1541 = vmatmul.mubr.bf16.gmra.mrb[0].mxu0 %v1497
  %v1542 = vpop.f32.mrb[0].mxu0
  %v1543 = vadd.f32 0.0, %v1542
  %v1544 = vpop.f32.mrb[0].mxu0
  %v1545 = vpop.f32.mrb[0].mxu0
  %v1546 = vadd.f32 0.0, %v1545
  %v1547 = vpop.f32.mrb[0].mxu0
  %1548 = vmatprep.mubr.bf16.mxu0 0
  %1549 = vmatmul.mubr.bf16.gmra.mrb[0].mxu0 %v1500
  %v1550 = vpop.f32.mrb[0].mxu0
  %v1551 = vadd.f32 0.0, %v1550
  %v1552 = vpop.f32.mrb[0].mxu0
  %v1553 = vpop.f32.mrb[0].mxu0
  %v1554 = vadd.f32 0.0, %v1553
  %v1555 = vpop.f32.mrb[0].mxu0
  %1556 = vmatprep.mubr.bf16.mxu0 0
  %1557 = vmatmul.mubr.bf16.gmra.mrb[0].mxu0 %v1503
  %v1558 = vpop.f32.mrb[0].mxu0
  %v1559 = vadd.f32 0.0, %v1558
  %v1560 = vpop.f32.mrb[0].mxu0
  %v1561 = vpop.f32.mrb[0].mxu0
  %v1562 = vadd.f32 0.0, %v1561
  %v1563 = vpop.f32.mrb[0].mxu0
  %1564 = vmatprep.mubr.bf16.mxu0 0
  %1565 = vmatmul.mubr.bf16.gmra.mrb[0].mxu0 %v1506
  %v1566 = vpop.f32.mrb[0].mxu0
  %v1567 = vadd.f32 0.0, %v1566
  %v1568 = vpop.f32.mrb[0].mxu0
  %v1569 = vpop.f32.mrb[0].mxu0
  %v1570 = vadd.f32 0.0, %v1569
  %v1571 = vpop.f32.mrb[0].mxu0
  %1572 = vdwg.mxu0
  %v1573 = vadd.f32 %v1303, %v1543
  %v1574 = vadd.f32 %v1306, %v1546
  %v1575 = vadd.f32 %v1311, %v1551
  %v1576 = vadd.f32 %v1314, %v1554
  %v1577 = vadd.f32 %v1319, %v1559
  %v1578 = vadd.f32 %v1322, %v1562
  %v1579 = vadd.f32 %v1327, %v1567
  %v1580 = vadd.f32 %v1330, %v1570
  %v1581 = vld [vmem:[%s6] sm:$0xff]
  %v1582 = vld [vmem:[%s6 + $0x8] sm:$0xff]
  %v1583 = vld [vmem:[%s6 + $0x10] sm:$0xff]
  %v1584 = vld [vmem:[%s6 + $0x18] sm:$0xff]
  %v1585 = vld [vmem:[%s6 + $0x20] sm:$0xff]
  %v1586 = vld [vmem:[%s6 + $0x28] sm:$0xff]
  %v1587 = vld [vmem:[%s6 + $0x30] sm:$0xff]
  %v1588 = vld [vmem:[%s6 + $0x38] sm:$0xff]
  %1590 = vset.pattern.permute.xlu0 0
  %1591 = vperm.xlu0 %1590, %v1581
  %v1592 = vpop.permute.xlu0 %1591
  %1595 = vset.pattern.permute.xlu0 0
  %1596 = vperm.xlu0 %1595, %v1582
  %v1597 = vpop.permute.xlu0 %1596
  %1600 = vset.pattern.permute.xlu0 0
  %1601 = vperm.xlu0 %1600, %v1583
  %v1602 = vpop.permute.xlu0 %1601
  %1605 = vset.pattern.permute.xlu0 0
  %1606 = vperm.xlu0 %1605, %v1584
  %v1607 = vpop.permute.xlu0 %1606
  %1610 = vset.pattern.permute.xlu0 0
  %1611 = vperm.xlu0 %1610, %v1585
  %v1612 = vpop.permute.xlu0 %1611
  %1615 = vset.pattern.permute.xlu0 0
  %1616 = vperm.xlu0 %1615, %v1586
  %v1617 = vpop.permute.xlu0 %1616
  %1620 = vset.pattern.permute.xlu0 0
  %1621 = vperm.xlu0 %1620, %v1587
  %v1622 = vpop.permute.xlu0 %1621
  %1625 = vset.pattern.permute.xlu0 0
  %1626 = vperm.xlu0 %1625, %v1588
  %v1627 = vpop.permute.xlu0 %1626
  %v1629 = vadd.f32 %v1573, %v1592
  %v1630 = vadd.f32 %v1574, %v1597
  %v1631 = vadd.f32 %v1575, %v1602
  %v1632 = vadd.f32 %v1576, %v1607
  %v1633 = vadd.f32 %v1577, %v1612
  %v1634 = vadd.f32 %v1578, %v1617
  %v1635 = vadd.f32 %v1579, %v1622
  %v1636 = vadd.f32 %v1580, %v1627
  %v1637 = vmax.f32 %v1629, 0.0
  %v1638 = vmax.f32 %v1630, 0.0
  %v1639 = vmax.f32 %v1631, 0.0
  %v1640 = vmax.f32 %v1632, 0.0
  %v1641 = vmax.f32 %v1633, 0.0
  %v1642 = vmax.f32 %v1634, 0.0
  %v1643 = vmax.f32 %v1635, 0.0
  %v1644 = vmax.f32 %v1636, 0.0
  %v1645 = vpack.c.bf16 %v1638, %v1637
  %v1646 = vpack.c.bf16 %v1640, %v1639
  %v1647 = vpack.c.bf16 %v1642, %v1641
  %v1648 = vpack.c.bf16 %v1644, %v1643
  %v1649 = vld [vmem:[%s8] sm:$0xf]
  %v1650 = vld [vmem:[%s8 + $0x4] sm:$0xf]
  %v1651 = vld [vmem:[%s8 + $0x8] sm:$0xf]
  %v1652 = vld [vmem:[%s8 + $0xc] sm:$0xf]
  %v1653 = vld [vmem:[%s8 + $0x10] sm:$0xf]
  %v1654 = vld [vmem:[%s8 + $0x14] sm:$0xf]
  %v1655 = vld [vmem:[%s8 + $0x18] sm:$0xf]
  %v1656 = vld [vmem:[%s8 + $0x1c] sm:$0xf]
  %v1665 = vunpack.c.l.b16 %v1649
  %v1666 = vunpack.c.l.b16 %v1650
  %v1667 = vunpack.c.l.b16 %v1651
  %v1668 = vunpack.c.l.b16 %v1652
  %v1669 = vunpack.c.l.b16 %v1653
  %v1670 = vunpack.c.l.b16 %v1654
  %v1671 = vunpack.c.l.b16 %v1655
  %v1672 = vunpack.c.l.b16 %v1656
  %v1673 = vpack.c.b16 %v1666, %v1665
  %v1674 = vpack.c.b16 %v1668, %v1667
  %v1675 = vpack.c.b16 %v1670, %v1669
  %v1676 = vpack.c.b16 %v1672, %v1671
  %v1682 = vsel %vm364, %v1645, 0
  %v1685 = vsel %vm364, %v1646, 0
  %v1688 = vsel %vm364, %v1647, 0
  %v1691 = vsel %vm364, %v1648, 0
  %1693 = vmatprep.subr.bf16.mxu0 0
  %1694 = vmatpush1.bf16.msra.mxu0 %v1673
  %1695 = vmatprep.subr.bf16.mxu0 0
  %1696 = vmatpush1.bf16.msra.mxu0 %v1674
  %1697 = vmatprep.subr.bf16.mxu0 0
  %1698 = vmatpush1.bf16.msra.mxu0 %v1675
  %1699 = vmatprep.subr.bf16.mxu0 0
  %1700 = vmatpush1.bf16.msra.mxu0 %v1676
  %1701 = vmatprep.subr.bf16.mxu0 0
  %1702 = vmatpush1.bf16.msra.mxu0 0
  %1703 = vmatprep.subr.bf16.mxu0 0
  %1704 = vmatpush1.bf16.msra.mxu0 0
  %1705 = vmatprep.subr.bf16.mxu0 0
  %1706 = vmatpush1.bf16.msra.mxu0 0
  %1707 = vmatprep.subr.bf16.mxu0 0
  %1708 = vmatpush1.bf16.msra.mxu0 0
  %1709 = vmatprep.subr.bf16.mxu0 0
  %1710 = vmatpush1.bf16.msra.mxu0 0
  %1711 = vmatprep.subr.bf16.mxu0 0
  %1712 = vmatpush1.bf16.msra.mxu0 0
  %1713 = vmatprep.subr.bf16.mxu0 0
  %1714 = vmatpush1.bf16.msra.mxu0 0
  %1715 = vmatprep.subr.bf16.mxu0 0
  %1716 = vmatpush1.bf16.msra.mxu0 0
  %1717 = vmatprep.subr.bf16.mxu0 0
  %1718 = vmatpush1.bf16.msra.mxu0 0
  %1719 = vmatprep.subr.bf16.mxu0 0
  %1720 = vmatpush1.bf16.msra.mxu0 0
  %1721 = vmatprep.subr.bf16.mxu0 0
  %1722 = vmatpush1.bf16.msra.mxu0 0
  %1723 = vmatprep.subr.bf16.mxu0 0
  %1724 = vmatpush1.bf16.msra.mxu0 0
  %1725 = vmatprep.mubr.bf16.mxu0 0
  %1726 = vmatmul.mubr.bf16.gmra.mrb[0].mxu0 %v1682
  %v1727 = vpop.f32.mrb[0].mxu0
  %v1728 = vadd.f32 0.0, %v1727
  %v1729 = vpop.f32.mrb[0].mxu0
  %v1730 = vpop.f32.mrb[0].mxu0
  %v1731 = vadd.f32 0.0, %v1730
  %v1732 = vpop.f32.mrb[0].mxu0
  %1733 = vmatprep.mubr.bf16.mxu0 0
  %1734 = vmatmul.mubr.bf16.gmra.mrb[0].mxu0 %v1685
  %v1735 = vpop.f32.mrb[0].mxu0
  %v1736 = vadd.f32 0.0, %v1735
  %v1737 = vpop.f32.mrb[0].mxu0
  %v1738 = vpop.f32.mrb[0].mxu0
  %v1739 = vadd.f32 0.0, %v1738
  %v1740 = vpop.f32.mrb[0].mxu0
  %1741 = vmatprep.mubr.bf16.mxu0 0
  %1742 = vmatmul.mubr.bf16.gmra.mrb[0].mxu0 %v1688
  %v1743 = vpop.f32.mrb[0].mxu0
  %v1744 = vadd.f32 0.0, %v1743
  %v1745 = vpop.f32.mrb[0].mxu0
  %v1746 = vpop.f32.mrb[0].mxu0
  %v1747 = vadd.f32 0.0, %v1746
  %v1748 = vpop.f32.mrb[0].mxu0
  %1749 = vmatprep.mubr.bf16.mxu0 0
  %1750 = vmatmul.mubr.bf16.gmra.mrb[0].mxu0 %v1691
  %v1751 = vpop.f32.mrb[0].mxu0
  %v1752 = vadd.f32 0.0, %v1751
  %v1753 = vpop.f32.mrb[0].mxu0
  %v1754 = vpop.f32.mrb[0].mxu0
  %v1755 = vadd.f32 0.0, %v1754
  %v1756 = vpop.f32.mrb[0].mxu0
  %1757 = vdwg.mxu0
  %v1758 = vld [vmem:[%s7] sm:$0xf]
  %v1759 = vld [vmem:[%s7 + $0x4] sm:$0xf]
  %v1760 = vld [vmem:[%s7 + $0x8] sm:$0xf]
  %v1761 = vld [vmem:[%s7 + $0xc] sm:$0xf]
  %v1762 = vld [vmem:[%s7 + $0x10] sm:$0xf]
  %v1763 = vld [vmem:[%s7 + $0x14] sm:$0xf]
  %v1764 = vld [vmem:[%s7 + $0x18] sm:$0xf]
  %v1765 = vld [vmem:[%s7 + $0x1c] sm:$0xf]
  %v1766 = vpack.c.bf16 %v1731, %v1728
  %v1767 = vpack.c.bf16 %v1739, %v1736
  %v1768 = vpack.c.bf16 %v1747, %v1744
  %v1769 = vpack.c.bf16 %v1755, %v1752
  %s1770 = scalar_lea.vmem %s8, 32
  %v1771 = vld [vmem:[%s1770] sm:$0xf]
  %v1772 = vld [vmem:[%s1770 + $0x4] sm:$0xf]
  %v1773 = vld [vmem:[%s1770 + $0x8] sm:$0xf]
  %v1774 = vld [vmem:[%s1770 + $0xc] sm:$0xf]
  %v1775 = vld [vmem:[%s1770 + $0x10] sm:$0xf]
  %v1776 = vld [vmem:[%s1770 + $0x14] sm:$0xf]
  %v1777 = vld [vmem:[%s1770 + $0x18] sm:$0xf]
  %v1778 = vld [vmem:[%s1770 + $0x1c] sm:$0xf]
  %v1787 = vunpack.c.l.b16 %v1771
  %v1788 = vunpack.c.l.b16 %v1772
  %v1789 = vunpack.c.l.b16 %v1773
  %v1790 = vunpack.c.l.b16 %v1774
  %v1791 = vunpack.c.l.b16 %v1775
  %v1792 = vunpack.c.l.b16 %v1776
  %v1793 = vunpack.c.l.b16 %v1777
  %v1794 = vunpack.c.l.b16 %v1778
  %v1795 = vpack.c.b16 %v1788, %v1787
  %v1796 = vpack.c.b16 %v1790, %v1789
  %v1797 = vpack.c.b16 %v1792, %v1791
  %v1798 = vpack.c.b16 %v1794, %v1793
  %1803 = vmatprep.subr.bf16.mxu0 0
  %1804 = vmatpush1.bf16.msra.mxu0 %v1795
  %1805 = vmatprep.subr.bf16.mxu0 0
  %1806 = vmatpush1.bf16.msra.mxu0 %v1796
  %1807 = vmatprep.subr.bf16.mxu0 0
  %1808 = vmatpush1.bf16.msra.mxu0 %v1797
  %1809 = vmatprep.subr.bf16.mxu0 0
  %1810 = vmatpush1.bf16.msra.mxu0 %v1798
  %1811 = vmatprep.subr.bf16.mxu0 0
  %1812 = vmatpush1.bf16.msra.mxu0 0
  %1813 = vmatprep.subr.bf16.mxu0 0
  %1814 = vmatpush1.bf16.msra.mxu0 0
  %1815 = vmatprep.subr.bf16.mxu0 0
  %1816 = vmatpush1.bf16.msra.mxu0 0
  %1817 = vmatprep.subr.bf16.mxu0 0
  %1818 = vmatpush1.bf16.msra.mxu0 0
  %1819 = vmatprep.subr.bf16.mxu0 0
  %1820 = vmatpush1.bf16.msra.mxu0 0
  %1821 = vmatprep.subr.bf16.mxu0 0
  %1822 = vmatpush1.bf16.msra.mxu0 0
  %1823 = vmatprep.subr.bf16.mxu0 0
  %1824 = vmatpush1.bf16.msra.mxu0 0
  %1825 = vmatprep.subr.bf16.mxu0 0
  %1826 = vmatpush1.bf16.msra.mxu0 0
  %1827 = vmatprep.subr.bf16.mxu0 0
  %1828 = vmatpush1.bf16.msra.mxu0 0
  %1829 = vmatprep.subr.bf16.mxu0 0
  %1830 = vmatpush1.bf16.msra.mxu0 0
  %1831 = vmatprep.subr.bf16.mxu0 0
  %1832 = vmatpush1.bf16.msra.mxu0 0
  %1833 = vmatprep.subr.bf16.mxu0 0
  %1834 = vmatpush1.bf16.msra.mxu0 0
  %1835 = vmatprep.mubr.bf16.mxu0 0
  %1836 = vmatmul.mubr.bf16.gmra.mrb[0].mxu0 %v1682
  %v1837 = vpop.f32.mrb[0].mxu0
  %v1838 = vadd.f32 0.0, %v1837
  %v1839 = vpop.f32.mrb[0].mxu0
  %v1840 = vpop.f32.mrb[0].mxu0
  %v1841 = vadd.f32 0.0, %v1840
  %v1842 = vpop.f32.mrb[0].mxu0
  %1843 = vmatprep.mubr.bf16.mxu0 0
  %1844 = vmatmul.mubr.bf16.gmra.mrb[0].mxu0 %v1685
  %v1845 = vpop.f32.mrb[0].mxu0
  %v1846 = vadd.f32 0.0, %v1845
  %v1847 = vpop.f32.mrb[0].mxu0
  %v1848 = vpop.f32.mrb[0].mxu0
  %v1849 = vadd.f32 0.0, %v1848
  %v1850 = vpop.f32.mrb[0].mxu0
  %1851 = vmatprep.mubr.bf16.mxu0 0
  %1852 = vmatmul.mubr.bf16.gmra.mrb[0].mxu0 %v1688
  %v1853 = vpop.f32.mrb[0].mxu0
  %v1854 = vadd.f32 0.0, %v1853
  %v1855 = vpop.f32.mrb[0].mxu0
  %v1856 = vpop.f32.mrb[0].mxu0
  %v1857 = vadd.f32 0.0, %v1856
  %v1858 = vpop.f32.mrb[0].mxu0
  %1859 = vmatprep.mubr.bf16.mxu0 0
  %1860 = vmatmul.mubr.bf16.gmra.mrb[0].mxu0 %v1691
  %v1861 = vpop.f32.mrb[0].mxu0
  %v1862 = vadd.f32 0.0, %v1861
  %v1863 = vpop.f32.mrb[0].mxu0
  %v1864 = vpop.f32.mrb[0].mxu0
  %v1865 = vadd.f32 0.0, %v1864
  %v1866 = vpop.f32.mrb[0].mxu0
  %1867 = vdwg.mxu0
  %s1868 = scalar_lea.vmem %s7, 32
  %v1869 = vld [vmem:[%s1868] sm:$0xf]
  %v1870 = vld [vmem:[%s1868 + $0x4] sm:$0xf]
  %v1871 = vld [vmem:[%s1868 + $0x8] sm:$0xf]
  %v1872 = vld [vmem:[%s1868 + $0xc] sm:$0xf]
  %v1873 = vld [vmem:[%s1868 + $0x10] sm:$0xf]
  %v1874 = vld [vmem:[%s1868 + $0x14] sm:$0xf]
  %v1875 = vld [vmem:[%s1868 + $0x18] sm:$0xf]
  %v1876 = vld [vmem:[%s1868 + $0x1c] sm:$0xf]
  %v1877 = vpack.c.bf16 %v1841, %v1838
  %v1878 = vpack.c.bf16 %v1849, %v1846
  %v1879 = vpack.c.bf16 %v1857, %v1854
  %v1880 = vpack.c.bf16 %v1865, %v1862
  %v1889 = vunpack.c.l.b16 %v1869
  %v1890 = vunpack.c.l.b16 %v1870
  %v1891 = vunpack.c.l.b16 %v1871
  %v1892 = vunpack.c.l.b16 %v1872
  %v1893 = vunpack.c.l.b16 %v1873
  %v1894 = vunpack.c.l.b16 %v1874
  %v1895 = vunpack.c.l.b16 %v1875
  %v1896 = vunpack.c.l.b16 %v1876
  %v1897 = vpack.c.b16 %v1890, %v1889
  %v1898 = vpack.c.b16 %v1892, %v1891
  %v1899 = vpack.c.b16 %v1894, %v1893
  %v1900 = vpack.c.b16 %v1896, %v1895
  %v1902 = vsel %vm364, %v1897, 0
  %v1905 = vsel %vm364, %v1898, 0
  %v1908 = vsel %vm364, %v1899, 0
  %v1911 = vsel %vm364, %v1900, 0
  %1913 = vmatprep.subr.bf16.mxu0 0
  %1914 = vmatpush1.bf16.msra.mxu0 %v1877
  %1915 = vmatprep.subr.bf16.mxu0 0
  %1916 = vmatpush1.bf16.msra.mxu0 %v1878
  %1917 = vmatprep.subr.bf16.mxu0 0
  %1918 = vmatpush1.bf16.msra.mxu0 %v1879
  %1919 = vmatprep.subr.bf16.mxu0 0
  %1920 = vmatpush1.bf16.msra.mxu0 %v1880
  %1921 = vmatprep.subr.bf16.mxu0 0
  %1922 = vmatpush1.bf16.msra.mxu0 0
  %1923 = vmatprep.subr.bf16.mxu0 0
  %1924 = vmatpush1.bf16.msra.mxu0 0
  %1925 = vmatprep.subr.bf16.mxu0 0
  %1926 = vmatpush1.bf16.msra.mxu0 0
  %1927 = vmatprep.subr.bf16.mxu0 0
  %1928 = vmatpush1.bf16.msra.mxu0 0
  %1929 = vmatprep.subr.bf16.mxu0 0
  %1930 = vmatpush1.bf16.msra.mxu0 0
  %1931 = vmatprep.subr.bf16.mxu0 0
  %1932 = vmatpush1.bf16.msra.mxu0 0
  %1933 = vmatprep.subr.bf16.mxu0 0
  %1934 = vmatpush1.bf16.msra.mxu0 0
  %1935 = vmatprep.subr.bf16.mxu0 0
  %1936 = vmatpush1.bf16.msra.mxu0 0
  %1937 = vmatprep.subr.bf16.mxu0 0
  %1938 = vmatpush1.bf16.msra.mxu0 0
  %1939 = vmatprep.subr.bf16.mxu0 0
  %1940 = vmatpush1.bf16.msra.mxu0 0
  %1941 = vmatprep.subr.bf16.mxu0 0
  %1942 = vmatpush1.bf16.msra.mxu0 0
  %1943 = vmatprep.subr.bf16.mxu0 0
  %1944 = vmatpush1.bf16.msra.mxu0 0
  %1945 = vmatprep.mubr.bf16.mxu0 0
  %1946 = vmatmul.mubr.bf16.gmra.mrb[0].mxu0 %v1902
  %v1947 = vpop.f32.mrb[0].mxu0
  %v1948 = vadd.f32 0.0, %v1947
  %v1949 = vpop.f32.mrb[0].mxu0
  %v1950 = vpop.f32.mrb[0].mxu0
  %v1951 = vadd.f32 0.0, %v1950
  %v1952 = vpop.f32.mrb[0].mxu0
  %1953 = vmatprep.mubr.bf16.mxu0 0
  %1954 = vmatmul.mubr.bf16.gmra.mrb[0].mxu0 %v1905
  %v1955 = vpop.f32.mrb[0].mxu0
  %v1956 = vadd.f32 0.0, %v1955
  %v1957 = vpop.f32.mrb[0].mxu0
  %v1958 = vpop.f32.mrb[0].mxu0
  %v1959 = vadd.f32 0.0, %v1958
  %v1960 = vpop.f32.mrb[0].mxu0
  %1961 = vmatprep.mubr.bf16.mxu0 0
  %1962 = vmatmul.mubr.bf16.gmra.mrb[0].mxu0 %v1908
  %v1963 = vpop.f32.mrb[0].mxu0
  %v1964 = vadd.f32 0.0, %v1963
  %v1965 = vpop.f32.mrb[0].mxu0
  %v1966 = vpop.f32.mrb[0].mxu0
  %v1967 = vadd.f32 0.0, %v1966
  %v1968 = vpop.f32.mrb[0].mxu0
  %1969 = vmatprep.mubr.bf16.mxu0 0
  %1970 = vmatmul.mubr.bf16.gmra.mrb[0].mxu0 %v1911
  %v1971 = vpop.f32.mrb[0].mxu0
  %v1972 = vadd.f32 0.0, %v1971
  %v1973 = vpop.f32.mrb[0].mxu0
  %v1974 = vpop.f32.mrb[0].mxu0
  %v1975 = vadd.f32 0.0, %v1974
  %v1976 = vpop.f32.mrb[0].mxu0
  %1977 = vdwg.mxu0
  %v1986 = vunpack.c.l.b16 %v1758
  %v1987 = vunpack.c.l.b16 %v1759
  %v1988 = vunpack.c.l.b16 %v1760
  %v1989 = vunpack.c.l.b16 %v1761
  %v1990 = vunpack.c.l.b16 %v1762
  %v1991 = vunpack.c.l.b16 %v1763
  %v1992 = vunpack.c.l.b16 %v1764
  %v1993 = vunpack.c.l.b16 %v1765
  %v1994 = vpack.c.b16 %v1987, %v1986
  %v1995 = vpack.c.b16 %v1989, %v1988
  %v1996 = vpack.c.b16 %v1991, %v1990
  %v1997 = vpack.c.b16 %v1993, %v1992
  %v1999 = vsel %vm364, %v1994, 0
  %v2002 = vsel %vm364, %v1995, 0
  %v2005 = vsel %vm364, %v1996, 0
  %v2008 = vsel %vm364, %v1997, 0
  %2010 = vmatprep.subr.bf16.mxu0 0
  %2011 = vmatpush1.bf16.msra.mxu0 %v1766
  %2012 = vmatprep.subr.bf16.mxu0 0
  %2013 = vmatpush1.bf16.msra.mxu0 %v1767
  %2014 = vmatprep.subr.bf16.mxu0 0
  %2015 = vmatpush1.bf16.msra.mxu0 %v1768
  %2016 = vmatprep.subr.bf16.mxu0 0
  %2017 = vmatpush1.bf16.msra.mxu0 %v1769
  %2018 = vmatprep.subr.bf16.mxu0 0
  %2019 = vmatpush1.bf16.msra.mxu0 0
  %2020 = vmatprep.subr.bf16.mxu0 0
  %2021 = vmatpush1.bf16.msra.mxu0 0
  %2022 = vmatprep.subr.bf16.mxu0 0
  %2023 = vmatpush1.bf16.msra.mxu0 0
  %2024 = vmatprep.subr.bf16.mxu0 0
  %2025 = vmatpush1.bf16.msra.mxu0 0
  %2026 = vmatprep.subr.bf16.mxu0 0
  %2027 = vmatpush1.bf16.msra.mxu0 0
  %2028 = vmatprep.subr.bf16.mxu0 0
  %2029 = vmatpush1.bf16.msra.mxu0 0
  %2030 = vmatprep.subr.bf16.mxu0 0
  %2031 = vmatpush1.bf16.msra.mxu0 0
  %2032 = vmatprep.subr.bf16.mxu0 0
  %2033 = vmatpush1.bf16.msra.mxu0 0
  %2034 = vmatprep.subr.bf16.mxu0 0
  %2035 = vmatpush1.bf16.msra.mxu0 0
  %2036 = vmatprep.subr.bf16.mxu0 0
  %2037 = vmatpush1.bf16.msra.mxu0 0
  %2038 = vmatprep.subr.bf16.mxu0 0
  %2039 = vmatpush1.bf16.msra.mxu0 0
  %2040 = vmatprep.subr.bf16.mxu0 0
  %2041 = vmatpush1.bf16.msra.mxu0 0
  %2042 = vmatprep.mubr.bf16.mxu0 0
  %2043 = vmatmul.mubr.bf16.gmra.mrb[0].mxu0 %v1999
  %v2044 = vpop.f32.mrb[0].mxu0
  %v2045 = vadd.f32 %v1948, %v2044
  %v2046 = vpop.f32.mrb[0].mxu0
  %v2047 = vpop.f32.mrb[0].mxu0
  %v2048 = vadd.f32 %v1951, %v2047
  %v2049 = vpop.f32.mrb[0].mxu0
  %2050 = vmatprep.mubr.bf16.mxu0 0
  %2051 = vmatmul.mubr.bf16.gmra.mrb[0].mxu0 %v2002
  %v2052 = vpop.f32.mrb[0].mxu0
  %v2053 = vadd.f32 %v1956, %v2052
  %v2054 = vpop.f32.mrb[0].mxu0
  %v2055 = vpop.f32.mrb[0].mxu0
  %v2056 = vadd.f32 %v1959, %v2055
  %v2057 = vpop.f32.mrb[0].mxu0
  %2058 = vmatprep.mubr.bf16.mxu0 0
  %2059 = vmatmul.mubr.bf16.gmra.mrb[0].mxu0 %v2005
  %v2060 = vpop.f32.mrb[0].mxu0
  %v2061 = vadd.f32 %v1964, %v2060
  %v2062 = vpop.f32.mrb[0].mxu0
  %v2063 = vpop.f32.mrb[0].mxu0
  %v2064 = vadd.f32 %v1967, %v2063
  %v2065 = vpop.f32.mrb[0].mxu0
  %2066 = vmatprep.mubr.bf16.mxu0 0
  %2067 = vmatmul.mubr.bf16.gmra.mrb[0].mxu0 %v2008
  %v2068 = vpop.f32.mrb[0].mxu0
  %v2069 = vadd.f32 %v1972, %v2068
  %v2070 = vpop.f32.mrb[0].mxu0
  %v2071 = vpop.f32.mrb[0].mxu0
  %v2072 = vadd.f32 %v1975, %v2071
  %v2073 = vpop.f32.mrb[0].mxu0
  %2074 = vdwg.mxu0
  %s2075 = scalar_lea.vmem %s8, 64
  %v2076 = vld [vmem:[%s2075] sm:$0xf]
  %v2077 = vld [vmem:[%s2075 + $0x4] sm:$0xf]
  %v2078 = vld [vmem:[%s2075 + $0x8] sm:$0xf]
  %v2079 = vld [vmem:[%s2075 + $0xc] sm:$0xf]
  %v2080 = vld [vmem:[%s2075 + $0x10] sm:$0xf]
  %v2081 = vld [vmem:[%s2075 + $0x14] sm:$0xf]
  %v2082 = vld [vmem:[%s2075 + $0x18] sm:$0xf]
  %v2083 = vld [vmem:[%s2075 + $0x1c] sm:$0xf]
  %v2092 = vunpack.c.l.b16 %v2076
  %v2093 = vunpack.c.l.b16 %v2077
  %v2094 = vunpack.c.l.b16 %v2078
  %v2095 = vunpack.c.l.b16 %v2079
  %v2096 = vunpack.c.l.b16 %v2080
  %v2097 = vunpack.c.l.b16 %v2081
  %v2098 = vunpack.c.l.b16 %v2082
  %v2099 = vunpack.c.l.b16 %v2083
  %v2100 = vpack.c.b16 %v2093, %v2092
  %v2101 = vpack.c.b16 %v2095, %v2094
  %v2102 = vpack.c.b16 %v2097, %v2096
  %v2103 = vpack.c.b16 %v2099, %v2098
  %2108 = vmatprep.subr.bf16.mxu0 0
  %2109 = vmatpush1.bf16.msra.mxu0 %v2100
  %2110 = vmatprep.subr.bf16.mxu0 0
  %2111 = vmatpush1.bf16.msra.mxu0 %v2101
  %2112 = vmatprep.subr.bf16.mxu0 0
  %2113 = vmatpush1.bf16.msra.mxu0 %v2102
  %2114 = vmatprep.subr.bf16.mxu0 0
  %2115 = vmatpush1.bf16.msra.mxu0 %v2103
  %2116 = vmatprep.subr.bf16.mxu0 0
  %2117 = vmatpush1.bf16.msra.mxu0 0
  %2118 = vmatprep.subr.bf16.mxu0 0
  %2119 = vmatpush1.bf16.msra.mxu0 0
  %2120 = vmatprep.subr.bf16.mxu0 0
  %2121 = vmatpush1.bf16.msra.mxu0 0
  %2122 = vmatprep.subr.bf16.mxu0 0
  %2123 = vmatpush1.bf16.msra.mxu0 0
  %2124 = vmatprep.subr.bf16.mxu0 0
  %2125 = vmatpush1.bf16.msra.mxu0 0
  %2126 = vmatprep.subr.bf16.mxu0 0
  %2127 = vmatpush1.bf16.msra.mxu0 0
  %2128 = vmatprep.subr.bf16.mxu0 0
  %2129 = vmatpush1.bf16.msra.mxu0 0
  %2130 = vmatprep.subr.bf16.mxu0 0
  %2131 = vmatpush1.bf16.msra.mxu0 0
  %2132 = vmatprep.subr.bf16.mxu0 0
  %2133 = vmatpush1.bf16.msra.mxu0 0
  %2134 = vmatprep.subr.bf16.mxu0 0
  %2135 = vmatpush1.bf16.msra.mxu0 0
  %2136 = vmatprep.subr.bf16.mxu0 0
  %2137 = vmatpush1.bf16.msra.mxu0 0
  %2138 = vmatprep.subr.bf16.mxu0 0
  %2139 = vmatpush1.bf16.msra.mxu0 0
  %2140 = vmatprep.mubr.bf16.mxu0 0
  %2141 = vmatmul.mubr.bf16.gmra.mrb[0].mxu0 %v1682
  %v2142 = vpop.f32.mrb[0].mxu0
  %v2143 = vadd.f32 0.0, %v2142
  %v2144 = vpop.f32.mrb[0].mxu0
  %v2145 = vpop.f32.mrb[0].mxu0
  %v2146 = vadd.f32 0.0, %v2145
  %v2147 = vpop.f32.mrb[0].mxu0
  %2148 = vmatprep.mubr.bf16.mxu0 0
  %2149 = vmatmul.mubr.bf16.gmra.mrb[0].mxu0 %v1685
  %v2150 = vpop.f32.mrb[0].mxu0
  %v2151 = vadd.f32 0.0, %v2150
  %v2152 = vpop.f32.mrb[0].mxu0
  %v2153 = vpop.f32.mrb[0].mxu0
  %v2154 = vadd.f32 0.0, %v2153
  %v2155 = vpop.f32.mrb[0].mxu0
  %2156 = vmatprep.mubr.bf16.mxu0 0
  %2157 = vmatmul.mubr.bf16.gmra.mrb[0].mxu0 %v1688
  %v2158 = vpop.f32.mrb[0].mxu0
  %v2159 = vadd.f32 0.0, %v2158
  %v2160 = vpop.f32.mrb[0].mxu0
  %v2161 = vpop.f32.mrb[0].mxu0
  %v2162 = vadd.f32 0.0, %v2161
  %v2163 = vpop.f32.mrb[0].mxu0
  %2164 = vmatprep.mubr.bf16.mxu0 0
  %2165 = vmatmul.mubr.bf16.gmra.mrb[0].mxu0 %v1691
  %v2166 = vpop.f32.mrb[0].mxu0
  %v2167 = vadd.f32 0.0, %v2166
  %v2168 = vpop.f32.mrb[0].mxu0
  %v2169 = vpop.f32.mrb[0].mxu0
  %v2170 = vadd.f32 0.0, %v2169
  %v2171 = vpop.f32.mrb[0].mxu0
  %2172 = vdwg.mxu0
  %s2173 = scalar_lea.vmem %s7, 64
  %v2174 = vld [vmem:[%s2173] sm:$0xf]
  %v2175 = vld [vmem:[%s2173 + $0x4] sm:$0xf]
  %v2176 = vld [vmem:[%s2173 + $0x8] sm:$0xf]
  %v2177 = vld [vmem:[%s2173 + $0xc] sm:$0xf]
  %v2178 = vld [vmem:[%s2173 + $0x10] sm:$0xf]
  %v2179 = vld [vmem:[%s2173 + $0x14] sm:$0xf]
  %v2180 = vld [vmem:[%s2173 + $0x18] sm:$0xf]
  %v2181 = vld [vmem:[%s2173 + $0x1c] sm:$0xf]
  %v2182 = vpack.c.bf16 %v2146, %v2143
  %v2183 = vpack.c.bf16 %v2154, %v2151
  %v2184 = vpack.c.bf16 %v2162, %v2159
  %v2185 = vpack.c.bf16 %v2170, %v2167
  %v2194 = vunpack.c.l.b16 %v2174
  %v2195 = vunpack.c.l.b16 %v2175
  %v2196 = vunpack.c.l.b16 %v2176
  %v2197 = vunpack.c.l.b16 %v2177
  %v2198 = vunpack.c.l.b16 %v2178
  %v2199 = vunpack.c.l.b16 %v2179
  %v2200 = vunpack.c.l.b16 %v2180
  %v2201 = vunpack.c.l.b16 %v2181
  %v2202 = vpack.c.b16 %v2195, %v2194
  %v2203 = vpack.c.b16 %v2197, %v2196
  %v2204 = vpack.c.b16 %v2199, %v2198
  %v2205 = vpack.c.b16 %v2201, %v2200
  %v2207 = vsel %vm364, %v2202, 0
  %v2210 = vsel %vm364, %v2203, 0
  %v2213 = vsel %vm364, %v2204, 0
  %v2216 = vsel %vm364, %v2205, 0
  %2218 = vmatprep.subr.bf16.mxu0 0
  %2219 = vmatpush1.bf16.msra.mxu0 %v2182
  %2220 = vmatprep.subr.bf16.mxu0 0
  %2221 = vmatpush1.bf16.msra.mxu0 %v2183
  %2222 = vmatprep.subr.bf16.mxu0 0
  %2223 = vmatpush1.bf16.msra.mxu0 %v2184
  %2224 = vmatprep.subr.bf16.mxu0 0
  %2225 = vmatpush1.bf16.msra.mxu0 %v2185
  %2226 = vmatprep.subr.bf16.mxu0 0
  %2227 = vmatpush1.bf16.msra.mxu0 0
  %2228 = vmatprep.subr.bf16.mxu0 0
  %2229 = vmatpush1.bf16.msra.mxu0 0
  %2230 = vmatprep.subr.bf16.mxu0 0
  %2231 = vmatpush1.bf16.msra.mxu0 0
  %2232 = vmatprep.subr.bf16.mxu0 0
  %2233 = vmatpush1.bf16.msra.mxu0 0
  %2234 = vmatprep.subr.bf16.mxu0 0
  %2235 = vmatpush1.bf16.msra.mxu0 0
  %2236 = vmatprep.subr.bf16.mxu0 0
  %2237 = vmatpush1.bf16.msra.mxu0 0
  %2238 = vmatprep.subr.bf16.mxu0 0
  %2239 = vmatpush1.bf16.msra.mxu0 0
  %2240 = vmatprep.subr.bf16.mxu0 0
  %2241 = vmatpush1.bf16.msra.mxu0 0
  %2242 = vmatprep.subr.bf16.mxu0 0
  %2243 = vmatpush1.bf16.msra.mxu0 0
  %2244 = vmatprep.subr.bf16.mxu0 0
  %2245 = vmatpush1.bf16.msra.mxu0 0
  %2246 = vmatprep.subr.bf16.mxu0 0
  %2247 = vmatpush1.bf16.msra.mxu0 0
  %2248 = vmatprep.subr.bf16.mxu0 0
  %2249 = vmatpush1.bf16.msra.mxu0 0
  %2250 = vmatprep.mubr.bf16.mxu0 0
  %2251 = vmatmul.mubr.bf16.gmra.mrb[0].mxu0 %v2207
  %v2252 = vpop.f32.mrb[0].mxu0
  %v2253 = vadd.f32 0.0, %v2252
  %v2254 = vpop.f32.mrb[0].mxu0
  %v2255 = vpop.f32.mrb[0].mxu0
  %v2256 = vadd.f32 0.0, %v2255
  %v2257 = vpop.f32.mrb[0].mxu0
  %2258 = vmatprep.mubr.bf16.mxu0 0
  %2259 = vmatmul.mubr.bf16.gmra.mrb[0].mxu0 %v2210
  %v2260 = vpop.f32.mrb[0].mxu0
  %v2261 = vadd.f32 0.0, %v2260
  %v2262 = vpop.f32.mrb[0].mxu0
  %v2263 = vpop.f32.mrb[0].mxu0
  %v2264 = vadd.f32 0.0, %v2263
  %v2265 = vpop.f32.mrb[0].mxu0
  %2266 = vmatprep.mubr.bf16.mxu0 0
  %2267 = vmatmul.mubr.bf16.gmra.mrb[0].mxu0 %v2213
  %v2268 = vpop.f32.mrb[0].mxu0
  %v2269 = vadd.f32 0.0, %v2268
  %v2270 = vpop.f32.mrb[0].mxu0
  %v2271 = vpop.f32.mrb[0].mxu0
  %v2272 = vadd.f32 0.0, %v2271
  %v2273 = vpop.f32.mrb[0].mxu0
  %2274 = vmatprep.mubr.bf16.mxu0 0
  %2275 = vmatmul.mubr.bf16.gmra.mrb[0].mxu0 %v2216
  %v2276 = vpop.f32.mrb[0].mxu0
  %v2277 = vadd.f32 0.0, %v2276
  %v2278 = vpop.f32.mrb[0].mxu0
  %v2279 = vpop.f32.mrb[0].mxu0
  %v2280 = vadd.f32 0.0, %v2279
  %v2281 = vpop.f32.mrb[0].mxu0
  %2282 = vdwg.mxu0
  %v2283 = vadd.f32 %v2045, %v2253
  %v2284 = vadd.f32 %v2048, %v2256
  %v2285 = vadd.f32 %v2053, %v2261
  %v2286 = vadd.f32 %v2056, %v2264
  %v2287 = vadd.f32 %v2061, %v2269
  %v2288 = vadd.f32 %v2064, %v2272
  %v2289 = vadd.f32 %v2069, %v2277
  %v2290 = vadd.f32 %v2072, %v2280
  %v2291 = vld [vmem:[%s9] sm:$0xff]
  %v2292 = vld [vmem:[%s9 + $0x8] sm:$0xff]
  %v2293 = vld [vmem:[%s9 + $0x10] sm:$0xff]
  %v2294 = vld [vmem:[%s9 + $0x18] sm:$0xff]
  %v2295 = vld [vmem:[%s9 + $0x20] sm:$0xff]
  %v2296 = vld [vmem:[%s9 + $0x28] sm:$0xff]
  %v2297 = vld [vmem:[%s9 + $0x30] sm:$0xff]
  %v2298 = vld [vmem:[%s9 + $0x38] sm:$0xff]
  %2300 = vset.pattern.permute.xlu0 0
  %2301 = vperm.xlu0 %2300, %v2291
  %v2302 = vpop.permute.xlu0 %2301
  %2305 = vset.pattern.permute.xlu0 0
  %2306 = vperm.xlu0 %2305, %v2292
  %v2307 = vpop.permute.xlu0 %2306
  %2310 = vset.pattern.permute.xlu0 0
  %2311 = vperm.xlu0 %2310, %v2293
  %v2312 = vpop.permute.xlu0 %2311
  %2315 = vset.pattern.permute.xlu0 0
  %2316 = vperm.xlu0 %2315, %v2294
  %v2317 = vpop.permute.xlu0 %2316
  %2320 = vset.pattern.permute.xlu0 0
  %2321 = vperm.xlu0 %2320, %v2295
  %v2322 = vpop.permute.xlu0 %2321
  %2325 = vset.pattern.permute.xlu0 0
  %2326 = vperm.xlu0 %2325, %v2296
  %v2327 = vpop.permute.xlu0 %2326
  %2330 = vset.pattern.permute.xlu0 0
  %2331 = vperm.xlu0 %2330, %v2297
  %v2332 = vpop.permute.xlu0 %2331
  %2335 = vset.pattern.permute.xlu0 0
  %2336 = vperm.xlu0 %2335, %v2298
  %v2337 = vpop.permute.xlu0 %2336
  %v2339 = vadd.f32 %v2283, %v2302
  %v2340 = vadd.f32 %v2284, %v2307
  %v2341 = vadd.f32 %v2285, %v2312
  %v2342 = vadd.f32 %v2286, %v2317
  %v2343 = vadd.f32 %v2287, %v2322
  %v2344 = vadd.f32 %v2288, %v2327
  %v2345 = vadd.f32 %v2289, %v2332
  %v2346 = vadd.f32 %v2290, %v2337
  %v2347 = vmax.f32 %v2339, 0.0
  %v2348 = vmax.f32 %v2340, 0.0
  %v2349 = vmax.f32 %v2341, 0.0
  %v2350 = vmax.f32 %v2342, 0.0
  %v2351 = vmax.f32 %v2343, 0.0
  %v2352 = vmax.f32 %v2344, 0.0
  %v2353 = vmax.f32 %v2345, 0.0
  %v2354 = vmax.f32 %v2346, 0.0
  %v2355 = vpack.c.bf16 %v2348, %v2347
  %v2356 = vpack.c.bf16 %v2350, %v2349
  %v2357 = vpack.c.bf16 %v2352, %v2351
  %v2358 = vpack.c.bf16 %v2354, %v2353
  %v2359 = vld [vmem:[%s10] sm:$0xf]
  %v2360 = vld [vmem:[%s10 + $0x4] sm:$0xf]
  %v2361 = vld [vmem:[%s10 + $0x8] sm:$0xf]
  %v2362 = vld [vmem:[%s10 + $0xc] sm:$0xf]
  %s2363 = scalar_lea.vmem %s10, 16
  %v2364 = vld [vmem:[%s2363] sm:$0xf]
  %v2365 = vld [vmem:[%s2363 + $0x4] sm:$0xf]
  %v2366 = vld [vmem:[%s2363 + $0x8] sm:$0xf]
  %v2367 = vld [vmem:[%s2363 + $0xc] sm:$0xf]
  %v2372 = vunpack.c.l.b16 %v2364
  %v2373 = vunpack.c.l.b16 %v2365
  %v2374 = vunpack.c.l.b16 %v2366
  %v2375 = vunpack.c.l.b16 %v2367
  %v2376 = vpack.c.b16 %v2373, %v2372
  %v2377 = vpack.c.b16 %v2375, %v2374
  %2382 = vrot.lane.b32.xlu0 %v2355, 120
  %v2383 = vpop.permute.xlu0 %2382
  %2384 = vrot.lane.b32.xlu0 %v2356, 120
  %v2385 = vpop.permute.xlu0 %2384
  %2386 = vrot.lane.b32.xlu0 %v2357, 120
  %v2387 = vpop.permute.xlu0 %2386
  %2388 = vrot.lane.b32.xlu0 %v2358, 120
  %v2389 = vpop.permute.xlu0 %2388
  %v2395 = vsel %vm364, %v2376, 0
  %v2398 = vsel %vm364, %v2377, 0
  %2400 = vmatprep.subr.bf16.mxu0 0
  %2401 = vmatpush1.bf16.msra.mxu0 %v2383
  %2402 = vmatprep.subr.bf16.mxu0 0
  %2403 = vmatpush1.bf16.msra.mxu0 %v2385
  %2404 = vmatprep.subr.bf16.mxu0 0
  %2405 = vmatpush1.bf16.msra.mxu0 %v2387
  %2406 = vmatprep.subr.bf16.mxu0 0
  %2407 = vmatpush1.bf16.msra.mxu0 %v2389
  %2408 = vmatprep.subr.bf16.mxu0 0
  %2409 = vmatpush1.bf16.msra.mxu0 0
  %2410 = vmatprep.subr.bf16.mxu0 0
  %2411 = vmatpush1.bf16.msra.mxu0 0
  %2412 = vmatprep.subr.bf16.mxu0 0
  %2413 = vmatpush1.bf16.msra.mxu0 0
  %2414 = vmatprep.subr.bf16.mxu0 0
  %2415 = vmatpush1.bf16.msra.mxu0 0
  %2416 = vmatprep.subr.bf16.mxu0 0
  %2417 = vmatpush1.bf16.msra.mxu0 0
  %2418 = vmatprep.subr.bf16.mxu0 0
  %2419 = vmatpush1.bf16.msra.mxu0 0
  %2420 = vmatprep.subr.bf16.mxu0 0
  %2421 = vmatpush1.bf16.msra.mxu0 0
  %2422 = vmatprep.subr.bf16.mxu0 0
  %2423 = vmatpush1.bf16.msra.mxu0 0
  %2424 = vmatprep.subr.bf16.mxu0 0
  %2425 = vmatpush1.bf16.msra.mxu0 0
  %2426 = vmatprep.subr.bf16.mxu0 0
  %2427 = vmatpush1.bf16.msra.mxu0 0
  %2428 = vmatprep.subr.bf16.mxu0 0
  %2429 = vmatpush1.bf16.msra.mxu0 0
  %2430 = vmatprep.subr.bf16.mxu0 0
  %2431 = vmatpush1.bf16.msra.mxu0 0
  %2432 = vmatprep.mubr.bf16.mxu0 0
  %2433 = vmatmul.mubr.bf16.gmra.mrb[0].mxu0 %v2395
  %v2434 = vpop.f32.mrb[0].mxu0
  %v2435 = vadd.f32 0.0, %v2434
  %v2436 = vpop.f32.mrb[0].mxu0
  %v2437 = vpop.f32.mrb[0].mxu0
  %v2438 = vadd.f32 0.0, %v2437
  %v2439 = vpop.f32.mrb[0].mxu0
  %2440 = vmatprep.mubr.bf16.mxu0 0
  %2441 = vmatmul.mubr.bf16.gmra.mrb[0].mxu0 %v2398
  %v2442 = vpop.f32.mrb[0].mxu0
  %v2443 = vadd.f32 0.0, %v2442
  %v2444 = vpop.f32.mrb[0].mxu0
  %v2445 = vpop.f32.mrb[0].mxu0
  %v2446 = vadd.f32 0.0, %v2445
  %v2447 = vpop.f32.mrb[0].mxu0
  %2448 = vdwg.mxu0
  %v2453 = vunpack.c.l.b16 %v2359
  %v2454 = vunpack.c.l.b16 %v2360
  %v2455 = vunpack.c.l.b16 %v2361
  %v2456 = vunpack.c.l.b16 %v2362
  %v2457 = vpack.c.b16 %v2454, %v2453
  %v2458 = vpack.c.b16 %v2456, %v2455
  %v2460 = vsel %vm364, %v2457, 0
  %v2463 = vsel %vm364, %v2458, 0
  %2465 = vmatprep.subr.bf16.mxu0 0
  %2466 = vmatpush1.bf16.msra.mxu0 %v2355
  %2467 = vmatprep.subr.bf16.mxu0 0
  %2468 = vmatpush1.bf16.msra.mxu0 %v2356
  %2469 = vmatprep.subr.bf16.mxu0 0
  %2470 = vmatpush1.bf16.msra.mxu0 %v2357
  %2471 = vmatprep.subr.bf16.mxu0 0
  %2472 = vmatpush1.bf16.msra.mxu0 %v2358
  %2473 = vmatprep.subr.bf16.mxu0 0
  %2474 = vmatpush1.bf16.msra.mxu0 0
  %2475 = vmatprep.subr.bf16.mxu0 0
  %2476 = vmatpush1.bf16.msra.mxu0 0
  %2477 = vmatprep.subr.bf16.mxu0 0
  %2478 = vmatpush1.bf16.msra.mxu0 0
  %2479 = vmatprep.subr.bf16.mxu0 0
  %2480 = vmatpush1.bf16.msra.mxu0 0
  %2481 = vmatprep.subr.bf16.mxu0 0
  %2482 = vmatpush1.bf16.msra.mxu0 0
  %2483 = vmatprep.subr.bf16.mxu0 0
  %2484 = vmatpush1.bf16.msra.mxu0 0
  %2485 = vmatprep.subr.bf16.mxu0 0
  %2486 = vmatpush1.bf16.msra.mxu0 0
  %2487 = vmatprep.subr.bf16.mxu0 0
  %2488 = vmatpush1.bf16.msra.mxu0 0
  %2489 = vmatprep.subr.bf16.mxu0 0
  %2490 = vmatpush1.bf16.msra.mxu0 0
  %2491 = vmatprep.subr.bf16.mxu0 0
  %2492 = vmatpush1.bf16.msra.mxu0 0
  %2493 = vmatprep.subr.bf16.mxu0 0
  %2494 = vmatpush1.bf16.msra.mxu0 0
  %2495 = vmatprep.subr.bf16.mxu0 0
  %2496 = vmatpush1.bf16.msra.mxu0 0
  %2497 = vmatprep.mubr.bf16.mxu0 0
  %2498 = vmatmul.mubr.bf16.gmra.mrb[0].mxu0 %v2460
  %v2499 = vpop.f32.mrb[0].mxu0
  %v2500 = vadd.f32 %v2435, %v2499
  %v2501 = vpop.f32.mrb[0].mxu0
  %v2502 = vpop.f32.mrb[0].mxu0
  %v2503 = vadd.f32 %v2438, %v2502
  %v2504 = vpop.f32.mrb[0].mxu0
  %2505 = vmatprep.mubr.bf16.mxu0 0
  %2506 = vmatmul.mubr.bf16.gmra.mrb[0].mxu0 %v2463
  %v2507 = vpop.f32.mrb[0].mxu0
  %v2508 = vadd.f32 %v2443, %v2507
  %v2509 = vpop.f32.mrb[0].mxu0
  %v2510 = vpop.f32.mrb[0].mxu0
  %v2511 = vadd.f32 %v2446, %v2510
  %v2512 = vpop.f32.mrb[0].mxu0
  %2513 = vdwg.mxu0
  %s2514 = scalar_lea.vmem %s10, 32
  %v2515 = vld [vmem:[%s2514] sm:$0xf]
  %v2516 = vld [vmem:[%s2514 + $0x4] sm:$0xf]
  %v2517 = vld [vmem:[%s2514 + $0x8] sm:$0xf]
  %v2518 = vld [vmem:[%s2514 + $0xc] sm:$0xf]
  %v2523 = vunpack.c.l.b16 %v2515
  %v2524 = vunpack.c.l.b16 %v2516
  %v2525 = vunpack.c.l.b16 %v2517
  %v2526 = vunpack.c.l.b16 %v2518
  %v2527 = vpack.c.b16 %v2524, %v2523
  %v2528 = vpack.c.b16 %v2526, %v2525
  %2529 = vrot.lane.b32.xlu0 %v2355, 112
  %v2530 = vpop.permute.xlu0 %2529
  %2531 = vrot.lane.b32.xlu0 %v2356, 112
  %v2532 = vpop.permute.xlu0 %2531
  %2533 = vrot.lane.b32.xlu0 %v2357, 112
  %v2534 = vpop.permute.xlu0 %2533
  %2535 = vrot.lane.b32.xlu0 %v2358, 112
  %v2536 = vpop.permute.xlu0 %2535
  %v2542 = vsel %vm364, %v2527, 0
  %v2545 = vsel %vm364, %v2528, 0
  %2547 = vmatprep.subr.bf16.mxu0 0
  %2548 = vmatpush1.bf16.msra.mxu0 %v2530
  %2549 = vmatprep.subr.bf16.mxu0 0
  %2550 = vmatpush1.bf16.msra.mxu0 %v2532
  %2551 = vmatprep.subr.bf16.mxu0 0
  %2552 = vmatpush1.bf16.msra.mxu0 %v2534
  %2553 = vmatprep.subr.bf16.mxu0 0
  %2554 = vmatpush1.bf16.msra.mxu0 %v2536
  %2555 = vmatprep.subr.bf16.mxu0 0
  %2556 = vmatpush1.bf16.msra.mxu0 0
  %2557 = vmatprep.subr.bf16.mxu0 0
  %2558 = vmatpush1.bf16.msra.mxu0 0
  %2559 = vmatprep.subr.bf16.mxu0 0
  %2560 = vmatpush1.bf16.msra.mxu0 0
  %2561 = vmatprep.subr.bf16.mxu0 0
  %2562 = vmatpush1.bf16.msra.mxu0 0
  %2563 = vmatprep.subr.bf16.mxu0 0
  %2564 = vmatpush1.bf16.msra.mxu0 0
  %2565 = vmatprep.subr.bf16.mxu0 0
  %2566 = vmatpush1.bf16.msra.mxu0 0
  %2567 = vmatprep.subr.bf16.mxu0 0
  %2568 = vmatpush1.bf16.msra.mxu0 0
  %2569 = vmatprep.subr.bf16.mxu0 0
  %2570 = vmatpush1.bf16.msra.mxu0 0
  %2571 = vmatprep.subr.bf16.mxu0 0
  %2572 = vmatpush1.bf16.msra.mxu0 0
  %2573 = vmatprep.subr.bf16.mxu0 0
  %2574 = vmatpush1.bf16.msra.mxu0 0
  %2575 = vmatprep.subr.bf16.mxu0 0
  %2576 = vmatpush1.bf16.msra.mxu0 0
  %2577 = vmatprep.subr.bf16.mxu0 0
  %2578 = vmatpush1.bf16.msra.mxu0 0
  %2579 = vmatprep.mubr.bf16.mxu0 0
  %2580 = vmatmul.mubr.bf16.gmra.mrb[0].mxu0 %v2542
  %v2581 = vpop.f32.mrb[0].mxu0
  %v2582 = vadd.f32 0.0, %v2581
  %v2583 = vpop.f32.mrb[0].mxu0
  %v2584 = vpop.f32.mrb[0].mxu0
  %v2585 = vadd.f32 0.0, %v2584
  %v2586 = vpop.f32.mrb[0].mxu0
  %2587 = vmatprep.mubr.bf16.mxu0 0
  %2588 = vmatmul.mubr.bf16.gmra.mrb[0].mxu0 %v2545
  %v2589 = vpop.f32.mrb[0].mxu0
  %v2590 = vadd.f32 0.0, %v2589
  %v2591 = vpop.f32.mrb[0].mxu0
  %v2592 = vpop.f32.mrb[0].mxu0
  %v2593 = vadd.f32 0.0, %v2592
  %v2594 = vpop.f32.mrb[0].mxu0
  %2595 = vdwg.mxu0
  %v2596 = vadd.f32 %v2500, %v2582
  %v2597 = vadd.f32 %v2503, %v2585
  %v2598 = vadd.f32 %v2508, %v2590
  %v2599 = vadd.f32 %v2511, %v2593
  %s2600 = scalar_lea.vmem %s10, 48
  %v2601 = vld [vmem:[%s2600] sm:$0xf]
  %v2602 = vld [vmem:[%s2600 + $0x4] sm:$0xf]
  %v2603 = vld [vmem:[%s2600 + $0x8] sm:$0xf]
  %v2604 = vld [vmem:[%s2600 + $0xc] sm:$0xf]
  %v2609 = vunpack.c.l.b16 %v2601
  %v2610 = vunpack.c.l.b16 %v2602
  %v2611 = vunpack.c.l.b16 %v2603
  %v2612 = vunpack.c.l.b16 %v2604
  %v2613 = vpack.c.b16 %v2610, %v2609
  %v2614 = vpack.c.b16 %v2612, %v2611
  %2615 = vrot.lane.b32.xlu0 %v2355, 104
  %v2616 = vpop.permute.xlu0 %2615
  %2617 = vrot.lane.b32.xlu0 %v2356, 104
  %v2618 = vpop.permute.xlu0 %2617
  %2619 = vrot.lane.b32.xlu0 %v2357, 104
  %v2620 = vpop.permute.xlu0 %2619
  %2621 = vrot.lane.b32.xlu0 %v2358, 104
  %v2622 = vpop.permute.xlu0 %2621
  %v2628 = vsel %vm364, %v2613, 0
  %v2631 = vsel %vm364, %v2614, 0
  %2633 = vmatprep.subr.bf16.mxu0 0
  %2634 = vmatpush1.bf16.msra.mxu0 %v2616
  %2635 = vmatprep.subr.bf16.mxu0 0
  %2636 = vmatpush1.bf16.msra.mxu0 %v2618
  %2637 = vmatprep.subr.bf16.mxu0 0
  %2638 = vmatpush1.bf16.msra.mxu0 %v2620
  %2639 = vmatprep.subr.bf16.mxu0 0
  %2640 = vmatpush1.bf16.msra.mxu0 %v2622
  %2641 = vmatprep.subr.bf16.mxu0 0
  %2642 = vmatpush1.bf16.msra.mxu0 0
  %2643 = vmatprep.subr.bf16.mxu0 0
  %2644 = vmatpush1.bf16.msra.mxu0 0
  %2645 = vmatprep.subr.bf16.mxu0 0
  %2646 = vmatpush1.bf16.msra.mxu0 0
  %2647 = vmatprep.subr.bf16.mxu0 0
  %2648 = vmatpush1.bf16.msra.mxu0 0
  %2649 = vmatprep.subr.bf16.mxu0 0
  %2650 = vmatpush1.bf16.msra.mxu0 0
  %2651 = vmatprep.subr.bf16.mxu0 0
  %2652 = vmatpush1.bf16.msra.mxu0 0
  %2653 = vmatprep.subr.bf16.mxu0 0
  %2654 = vmatpush1.bf16.msra.mxu0 0
  %2655 = vmatprep.subr.bf16.mxu0 0
  %2656 = vmatpush1.bf16.msra.mxu0 0
  %2657 = vmatprep.subr.bf16.mxu0 0
  %2658 = vmatpush1.bf16.msra.mxu0 0
  %2659 = vmatprep.subr.bf16.mxu0 0
  %2660 = vmatpush1.bf16.msra.mxu0 0
  %2661 = vmatprep.subr.bf16.mxu0 0
  %2662 = vmatpush1.bf16.msra.mxu0 0
  %2663 = vmatprep.subr.bf16.mxu0 0
  %2664 = vmatpush1.bf16.msra.mxu0 0
  %2665 = vmatprep.mubr.bf16.mxu0 0
  %2666 = vmatmul.mubr.bf16.gmra.mrb[0].mxu0 %v2628
  %v2667 = vpop.f32.mrb[0].mxu0
  %v2668 = vadd.f32 0.0, %v2667
  %v2669 = vpop.f32.mrb[0].mxu0
  %v2670 = vpop.f32.mrb[0].mxu0
  %v2671 = vadd.f32 0.0, %v2670
  %v2672 = vpop.f32.mrb[0].mxu0
  %2673 = vmatprep.mubr.bf16.mxu0 0
  %2674 = vmatmul.mubr.bf16.gmra.mrb[0].mxu0 %v2631
  %v2675 = vpop.f32.mrb[0].mxu0
  %v2676 = vadd.f32 0.0, %v2675
  %v2677 = vpop.f32.mrb[0].mxu0
  %v2678 = vpop.f32.mrb[0].mxu0
  %v2679 = vadd.f32 0.0, %v2678
  %v2680 = vpop.f32.mrb[0].mxu0
  %2681 = vdwg.mxu0
  %v2682 = vadd.f32 %v2596, %v2668
  %v2683 = vadd.f32 %v2597, %v2671
  %v2684 = vadd.f32 %v2598, %v2676
  %v2685 = vadd.f32 %v2599, %v2679
  %v2686 = vld [vmem:[%s11] sm:$0xff]
  %v2687 = vld [vmem:[%s11 + $0x8] sm:$0xff]
  %v2688 = vld [vmem:[%s11 + $0x10] sm:$0xff]
  %v2689 = vld [vmem:[%s11 + $0x18] sm:$0xff]
  %2691 = vset.pattern.permute.xlu0 0
  %2692 = vperm.xlu0 %2691, %v2686
  %v2693 = vpop.permute.xlu0 %2692
  %2696 = vset.pattern.permute.xlu0 0
  %2697 = vperm.xlu0 %2696, %v2687
  %v2698 = vpop.permute.xlu0 %2697
  %2701 = vset.pattern.permute.xlu0 0
  %2702 = vperm.xlu0 %2701, %v2688
  %v2703 = vpop.permute.xlu0 %2702
  %2706 = vset.pattern.permute.xlu0 0
  %2707 = vperm.xlu0 %2706, %v2689
  %v2708 = vpop.permute.xlu0 %2707
  %v2710 = vadd.f32 %v2682, %v2693
  %v2711 = vadd.f32 %v2683, %v2698
  %v2712 = vadd.f32 %v2684, %v2703
  %v2713 = vadd.f32 %v2685, %v2708
  %v2714 = vmax.f32 %v2710, 0.0
  %v2715 = vmax.f32 %v2711, 0.0
  %v2716 = vmax.f32 %v2712, 0.0
  %v2717 = vmax.f32 %v2713, 0.0
  %v2718 = vld [vmem:[%s12] sm:$0xf]
  %v2719 = vld [vmem:[%s12 + $0x4] sm:$0xf]
  %v2720 = vpack.c.bf16 %v2715, %v2714
  %v2721 = vpack.c.bf16 %v2717, %v2716
  %v2722 = vld [vmem:[%s13] sm:$0xff]
  %v2723 = vld [vmem:[%s13 + $0x8] sm:$0xff]
  %2725 = vset.pattern.permute.xlu0 0
  %2726 = vperm.xlu0 %2725, %v2722
  %v2727 = vpop.permute.xlu0 %2726
  %2730 = vset.pattern.permute.xlu0 0
  %2731 = vperm.xlu0 %2730, %v2723
  %v2732 = vpop.permute.xlu0 %2731
  %v2736 = vunpack.c.l.b16 %v2718
  %v2737 = vunpack.c.l.b16 %v2719
  %v2738 = vpack.c.b16 %v2737, %v2736
  %vm2739 = vcmask 261120
  %v2741 = vsel %vm2739, %v2738, 0
  %2743 = vmatprep.subr.bf16.mxu0 0
  %2744 = vmatpush1.bf16.msra.mxu0 %v2720
  %2745 = vmatprep.subr.bf16.mxu0 0
  %2746 = vmatpush1.bf16.msra.mxu0 %v2721
  %2747 = vmatprep.subr.bf16.mxu0 0
  %2748 = vmatpush1.bf16.msra.mxu0 0
  %2749 = vmatprep.subr.bf16.mxu0 0
  %2750 = vmatpush1.bf16.msra.mxu0 0
  %2751 = vmatprep.subr.bf16.mxu0 0
  %2752 = vmatpush1.bf16.msra.mxu0 0
  %2753 = vmatprep.subr.bf16.mxu0 0
  %2754 = vmatpush1.bf16.msra.mxu0 0
  %2755 = vmatprep.subr.bf16.mxu0 0
  %2756 = vmatpush1.bf16.msra.mxu0 0
  %2757 = vmatprep.subr.bf16.mxu0 0
  %2758 = vmatpush1.bf16.msra.mxu0 0
  %2759 = vmatprep.subr.bf16.mxu0 0
  %2760 = vmatpush1.bf16.msra.mxu0 0
  %2761 = vmatprep.subr.bf16.mxu0 0
  %2762 = vmatpush1.bf16.msra.mxu0 0
  %2763 = vmatprep.subr.bf16.mxu0 0
  %2764 = vmatpush1.bf16.msra.mxu0 0
  %2765 = vmatprep.subr.bf16.mxu0 0
  %2766 = vmatpush1.bf16.msra.mxu0 0
  %2767 = vmatprep.subr.bf16.mxu0 0
  %2768 = vmatpush1.bf16.msra.mxu0 0
  %2769 = vmatprep.subr.bf16.mxu0 0
  %2770 = vmatpush1.bf16.msra.mxu0 0
  %2771 = vmatprep.subr.bf16.mxu0 0
  %2772 = vmatpush1.bf16.msra.mxu0 0
  %2773 = vmatprep.subr.bf16.mxu0 0
  %2774 = vmatpush1.bf16.msra.mxu0 0
  %2775 = vmatprep.mubr.bf16.mxu0 0
  %2776 = vmatmul.mubr.bf16.gmra.mrb[0].mxu0 %v2741
  %v2777 = vpop.f32.mrb[0].mxu0
  %v2778 = vadd.f32 %v2727, %v2777
  %v2779 = vpop.f32.mrb[0].mxu0
  %v2780 = vpop.f32.mrb[0].mxu0
  %v2781 = vadd.f32 %v2732, %v2780
  %v2782 = vpop.f32.mrb[0].mxu0
  %2783 = vdwg.mxu0
  %v2784 = vmax.f32 %v2781, 0.0
  %v2785 = vand.u32 2147483647, %v2781
  %v2786 = vsub.f32 0.0, %v2785
  %v2787 = vmul.f32 %v2786, 1.442695
  %v2788 = vpow.pop %v2787
  %v2789 = vadd.f32 %v2788, 1.0
  %v2790 = vlog2.pop %v2789
  %v2791 = vmul.f32 %v2790, 0.6931472
  %v2792 = vadd.f32 %v2784, %v2791
  %v2793 = vadd.f32 %v2792, 0.01
  %vm2794 = vcmask 64512
  %2795 = vst.msk [vmem:[%s14] sm:$0xff] %vm2794, %v2778
  %2796 = vst.msk [vmem:[%s14 + $0x8] sm:$0xff] %vm2794, %v2793
  // Predicated region
  $region58: #{_lambda_.1} parent=0 // pred_check
    _
  $region59: #{_lambda_.1} parent=0 // pred_check_branch
    %2798 = sbr.rel (0) target = $region61
  $region60: #{_lambda_.1} parent=0 // pred_region
    _
  $region61: #{_lambda_.1} parent=0 // pred_fallthru
    _
  // Predicated region
  $region62: #{_lambda_.1} parent=0 // pred_check
    _
  $region63: #{_lambda_.1} parent=0 // pred_check_branch
    %2800 = sbr.rel (0) target = $region65
  $region64: #{_lambda_.1} parent=0 // pred_region
    _
  $region65: #{_lambda_.1} parent=0 // pred_fallthru
    _

</llo_original>
